<compile_context>
chip_gen: v7x
topology: tpu7x:2x2x1
jax: 0.10.0
libtpu: 0.0.40
codegen_flags: <defaults>
</compile_context>

<pallas_src>
import jax
import jax.numpy as jnp
from jax import lax
from jax.experimental import pallas as pl
from jax.experimental.pallas import tpu as pltpu

# ---------------- problem sizes (small, consistent with the module) -------------
B, N, FD = 2, 64, 32        # batch, tokens, feature_dim
D = 32                      # object_dim == kvq_dim (n_heads = 1)
S = 8                       # number of slots
K = 16                      # pool codebook size (num_entries)
RANK = 8
KR = K * RANK               # flattened (codebook entry, rank) axis = 128
LORA_SCALE = 8
ITERS = 3
EPS = 1e-8                  # slot-attention eps
LN_EPS = 1e-5               # torch LayerNorm default eps
SCALE = D ** -0.5
HID = 4 * D                 # ff_mlp hidden width = 128

BF16 = jnp.bfloat16
F32 = jnp.float32

# --- bf16 weight-slab row offsets (lane width 256); all offsets multiples of 16 ---
W_LANES = HID + KR          # 256
R_WKV = 0                   # (FD, 2D)      [wk | wv]
R_WQ = R_WKV + FD           # (D, D)
R_WGRU = R_WQ + D           # (2D, 4D)      [[W_ih;W_hh] | [0;W_hh_n]]
R_W1A1 = R_WGRU + 2 * D     # (D, HID+KR)   [w1 | A1_bank]
R_B1S = R_W1A1 + D          # (KR, HID)     B1_bank * scale/rank
R_W2A2 = R_B1S + KR         # (HID, D+KR)   [w2 | A2_bank]
R_B2S = R_W2A2 + HID        # (KR, D)       B2_bank * scale/rank
W_ROWS = R_B2S + KR         # 544

# --- f32 vector slab (lane width 128) ---
V_ROWS = 24
R_CB = 8                    # codebook occupies rows 8..23, lanes 0:D


def _ln(x, g, b):
    mu = jnp.mean(x, axis=-1, keepdims=True)
    var = jnp.mean((x - mu) ** 2, axis=-1, keepdims=True)
    return (x - mu) * lax.rsqrt(var + LN_EPS) * g + b


# =============================== Pallas kernel ===================================
def fused_grouping_kernel(feat_ref, cond_ref, wslab_ref, vslab_ref, out_ref):
    # ---- hoisted parameter loads (pass/iteration invariant) ----
    ln_in_g = vslab_ref[0:1, 0:FD]
    ln_in_b = vslab_ref[0:1, FD:2 * FD]
    ln_s_g = jnp.broadcast_to(vslab_ref[0:1, 2 * FD:2 * FD + D], (S, D))
    ln_s_b = jnp.broadcast_to(vslab_ref[0:1, 2 * FD + D:2 * FD + 2 * D], (S, D))
    ln_f_g = jnp.broadcast_to(vslab_ref[1:2, 0:D], (S, D))
    ln_f_b = jnp.broadcast_to(vslab_ref[1:2, D:2 * D], (S, D))
    b2_b = jnp.broadcast_to(vslab_ref[1:2, 2 * D:3 * D], (S, D))
    b_gru = jnp.broadcast_to(vslab_ref[2:3, 0:4 * D], (S, 4 * D))
    b1_b = jnp.broadcast_to(vslab_ref[3:4, 0:HID], (S, HID))
    cb = vslab_ref[R_CB:R_CB + K, 0:D]                           # (K, D) f32

    wkv = wslab_ref[R_WKV:R_WKV + FD, 0:2 * D]                   # bf16 weights
    wq = wslab_ref[R_WQ:R_WQ + D, 0:D]
    wgru = wslab_ref[R_WGRU:R_WGRU + 2 * D, 0:4 * D]
    w1a1 = wslab_ref[R_W1A1:R_W1A1 + D, 0:HID + KR]
    b1s = wslab_ref[R_B1S:R_B1S + KR, 0:HID]
    w2a2 = wslab_ref[R_W2A2:R_W2A2 + HID, 0:D + KR]
    b2s = wslab_ref[R_B2S:R_B2S + KR, 0:D]

    # ---- shared LayerNorm + fused k/v projection (used by both passes) ----
    xn = _ln(feat_ref[0], ln_in_g, ln_in_b)                      # (N, FD) f32
    kv = jnp.dot(xn.astype(BF16), wkv, preferred_element_type=F32)   # (N, 2D)
    ktb = jnp.transpose(kv[:, :D]).astype(BF16)                  # (D, N), transposed once
    vb = kv[:, D:].astype(BF16)                                  # (N, D)

    cond = cond_ref[0]                                           # (S, D) f32

    def slot_pass(lora_mask):
        """3 unrolled slot-attention iterations; lora_mask=None -> no adapter."""
        slots = cond
        attn = jnp.zeros((S, N), F32)
        for _ in range(ITERS):
            slots_prev = slots
            sn = _ln(slots, ln_s_g, ln_s_b)
            q = jnp.dot(sn.astype(BF16), wq, preferred_element_type=F32)       # (S, D)
            dots = jnp.dot(q.astype(BF16), ktb, preferred_element_type=F32) * SCALE
            # softmax over the slot axis (n_heads == 1); exact division
            e = jnp.exp(dots - jnp.max(dots, axis=0, keepdims=True))
            attn = e / jnp.sum(e, axis=0, keepdims=True)                        # (S, N)
            a = attn + EPS
            a = a / jnp.sum(a, axis=-1, keepdims=True)
            upd = jnp.dot(a.astype(BF16), vb, preferred_element_type=F32)       # (S, D)

            # GRUCell(updates, slots_prev): single fused matmul; the hidden
            # n-gate (gh_n) rides along as a 4th gate block of the weight.
            uh = jnp.concatenate([upd, slots_prev], axis=-1).astype(BF16)       # (S, 2D)
            g = jnp.dot(uh, wgru, preferred_element_type=F32) + b_gru           # (S, 4D)
            r = jax.nn.sigmoid(g[:, :D])
            z = jax.nn.sigmoid(g[:, D:2 * D])
            n_c = jnp.tanh(g[:, 2 * D:3 * D] - (1.0 - r) * g[:, 3 * D:])        # = gi_n + r*gh_n
            slots = (1.0 - z) * n_c + z * slots_prev

            # ff_mlp (+ masked full-bank LoRA when enabled, mod_position='f')
            sp_ff = slots
            y = _ln(slots, ln_f_g, ln_f_b).astype(BF16)
            if lora_mask is None:
                h1 = jnp.dot(y, w1a1[:, :HID], preferred_element_type=F32) + b1_b
                h1 = jnp.maximum(h1, 0.0)
                h2 = jnp.dot(h1.astype(BF16), w2a2[:, :D],
                             preferred_element_type=F32) + b2_b
            else:
                h1t = jnp.dot(y, w1a1, preferred_element_type=F32)              # (S, HID+KR)
                t1 = (h1t[:, HID:] * lora_mask).astype(BF16)
                h1 = (h1t[:, :HID] + b1_b
                      + jnp.dot(t1, b1s, preferred_element_type=F32))
                h1 = jnp.maximum(h1, 0.0)
                h2t = jnp.dot(h1.astype(BF16), w2a2, preferred_element_type=F32)
                t2 = (h2t[:, D:] * lora_mask).astype(BF16)
                h2 = (h2t[:, :D] + b2_b
                      + jnp.dot(t2, b2s, preferred_element_type=F32))
            slots = h2 + sp_ff
        return slots, attn

    # ---- pass 1: no LoRA ----
    pre_slots, pre_attn = slot_pass(None)

    # ---- VQ pool: nearest codebook entry, f32 on the VPU (no 3D, no matmul) ----
    dmin = jnp.sum((pre_slots - cb[0:1, :]) ** 2, axis=-1, keepdims=True)       # (S, 1)
    idx_f = jnp.zeros((S, 1), F32)
    for i in range(1, K):
        di = jnp.sum((pre_slots - cb[i:i + 1, :]) ** 2, axis=-1, keepdims=True)
        better = di < dmin                                       # strict -> first-match argmin
        dmin = jnp.where(better, di, dmin)
        idx_f = jnp.where(better, jnp.float32(i), idx_f)
    idx_i = idx_f.astype(jnp.int32)                              # (S, 1)
    commit = dmin * (1.0 / D)                                    # mean squared distance

    # per-slot LoRA selection mask over the flattened (entry, rank) lane axis
    jio = lax.broadcasted_iota(jnp.int32, (S, KR), 1)
    lo = idx_i * RANK
    lora_mask = ((jio >= lo) & (jio < lo + RANK)).astype(F32)    # (S, KR)

    # ---- pass 2: with per-slot LoRA adapters ----
    slots, attn = slot_pass(lora_mask)

    # ---- lane-dense packed output: one full (2S, 128) store ----
    final_block = jnp.concatenate(
        [slots, attn, jnp.broadcast_to(idx_f, (S, 16)),
         jnp.broadcast_to(commit, (S, 16))], axis=-1)            # (S, 128)
    pre_block = jnp.concatenate(
        [pre_slots, pre_attn, jnp.zeros((S, 32), F32)], axis=-1)  # (S, 128)
    out_ref[0] = jnp.concatenate([final_block, pre_block], axis=0)


# =============================== pallas_call wrapper =============================
def run_fused(features, conditioning, wslab, vslab):
    out = pl.pallas_call(
        fused_grouping_kernel,
        out_shape=jax.ShapeDtypeStruct((B, 2 * S, 128), F32),
        grid=(B,),
        in_specs=[
            pl.BlockSpec((1, N, FD), lambda i: (i, 0, 0)),
            pl.BlockSpec((1, S, D), lambda i: (i, 0, 0)),
            pl.BlockSpec((W_ROWS, W_LANES), lambda i: (0, 0)),
            pl.BlockSpec((V_ROWS, 128), lambda i: (0, 0)),
        ],
        out_specs=pl.BlockSpec((1, 2 * S, 128), lambda i: (i, 0, 0)),
        compiler_params=pltpu.CompilerParams(dimension_semantics=("parallel",)),
    )(features, conditioning, wslab, vslab)
    slots = out[:, :S, :D]
    attn = out[:, :S, D:D + N]
    indices = out[:, :S, D + N].astype(jnp.int32)                # exact small-int floats
    commit = out[:, :S, D + N + 16]
    pre_slots = out[:, S:, :D]
    pre_attn = out[:, S:, D:D + N]
    return slots, attn, indices, commit, pre_slots, pre_attn


@jax.jit
def grouping_forward(features, conditioning, wslab, vslab):
    slots, attn, indices, commit, pre_slots, pre_attn = run_fused(
        features, conditioning, wslab, vslab)
    return {
        "objects": slots,
        "feature_attributions": attn,
        "is_empty": None,                # slot_mask not provided
        "pool_indices": indices,
        "commit_loss": jnp.sum(commit),
        "pre_slots": pre_slots,
        "pre_attn": pre_attn,
    }


# =============================== host-side slab packing ==========================
def prepare_slabs(p, lora, codebook):
    """Pack all parameters into one bf16 weight slab and one f32 vector slab."""
    a1, b1l, a2, b2l = lora
    s = LORA_SCALE / RANK
    # A*_bank[d, k*R + r] = a*[k, d, r]; B*_bank[k*R + r, :] = b*[k, r, :] * scale/rank
    A1 = jnp.transpose(a1, (1, 0, 2)).reshape(D, KR)
    B1 = b1l.reshape(KR, HID) * s
    A2 = jnp.transpose(a2, (1, 0, 2)).reshape(HID, KR)
    B2 = b2l.reshape(KR, D) * s

    w_gru_ext = jnp.concatenate(
        [jnp.concatenate([p["w_ih"], p["w_hh"]], axis=0),
         jnp.concatenate([jnp.zeros((D, D), F32), p["w_hh"][:, 2 * D:]], axis=0)],
        axis=1)                                                  # (2D, 4D)
    b_gru_ext = jnp.concatenate([p["b_ih"] + p["b_hh"], p["b_hh"][:, 2 * D:]], axis=1)

    def pad(x, cols):
        return jnp.pad(x, ((0, 0), (0, cols - x.shape[1])))

    wslab = jnp.concatenate([
        pad(jnp.concatenate([p["wk"], p["wv"]], axis=1), W_LANES),   # rows   0: 32
        pad(p["wq"], W_LANES),                                       # rows  32: 64
        pad(w_gru_ext, W_LANES),                                     # rows  64:128
        pad(jnp.concatenate([p["w1"], A1], axis=1), W_LANES),        # rows 128:160
        pad(B1, W_LANES),                                            # rows 160:288
        pad(jnp.concatenate([p["w2"], A2], axis=1), W_LANES),        # rows 288:416
        pad(B2, W_LANES),                                            # rows 416:544
    ], axis=0).astype(BF16)
    assert wslab.shape == (W_ROWS, W_LANES)

    vslab = jnp.concatenate([
        jnp.concatenate([p["ln_in_g"], p["ln_in_b"], p["ln_s_g"], p["ln_s_b"]], axis=1),
        jnp.concatenate([p["ln_f_g"], p["ln_f_b"], p["b2"], jnp.zeros((1, 32), F32)], axis=1),
        b_gru_ext,
        p["b1"],
        jnp.zeros((4, 128), F32),
        pad(codebook, 128),
    ], axis=0)
    assert vslab.shape == (V_ROWS, 128)
    return wslab, vslab


# =============================== pure-JAX reference ==============================
def lora_delta(A, Bm, indices):
    return jnp.einsum("bsir,bsro->bsio", A[indices], Bm[indices]) * (LORA_SCALE / RANK)


def ref_slot_attention(features, conditioning, p, d1, d2):
    xn = _ln(features, p["ln_in_g"], p["ln_in_b"])
    k = xn @ p["wk"]
    v = xn @ p["wv"]
    slots = conditioning
    attn_before = None
    for _ in range(ITERS):
        sp = slots
        sn = _ln(slots, p["ln_s_g"], p["ln_s_b"])
        q = sn @ p["wq"]
        dots = jnp.einsum("bsd,bnd->bsn", q, k) * SCALE
        attn = jax.nn.softmax(dots, axis=1)
        attn_before = attn
        a = attn + EPS
        a = a / jnp.sum(a, axis=-1, keepdims=True)
        upd = jnp.einsum("bsn,bnd->bsd", a, v)
        gi = upd @ p["w_ih"] + p["b_ih"]
        gh = sp @ p["w_hh"] + p["b_hh"]
        r = jax.nn.sigmoid(gi[..., :D] + gh[..., :D])
        z = jax.nn.sigmoid(gi[..., D:2 * D] + gh[..., D:2 * D])
        nc = jnp.tanh(gi[..., 2 * D:] + r * gh[..., 2 * D:])
        slots = (1.0 - z) * nc + z * sp
        spf = slots
        y = _ln(slots, p["ln_f_g"], p["ln_f_b"])
        h1 = y @ p["w1"] + p["b1"] + jnp.einsum("bsd,bsdf->bsf", y, d1)
        h1 = jnp.maximum(h1, 0.0)
        h2 = h1 @ p["w2"] + p["b2"] + jnp.einsum("bsf,bsfd->bsd", h1, d2)
        slots = h2 + spf
    return slots, attn_before


def ref_pool(pre_slots, codebook):
    diff = pre_slots[:, :, None, :] - codebook[None, None, :, :]
    d2 = jnp.sum(diff * diff, axis=-1)                           # (B, S, K)
    indices = jnp.argmin(d2, axis=-1)
    commit = jnp.min(d2, axis=-1) / D
    return indices, commit


# ==================================== main =======================================
if __name__ == "__main__":
    key = jax.random.PRNGKey(0)
    ks = jax.random.split(key, 20)

    def rnd(k, shape, scale=0.1):
        return jax.random.normal(k, shape, F32) * scale

    params = {
        "ln_in_g": jnp.ones((1, FD), F32), "ln_in_b": jnp.zeros((1, FD), F32),
        "wk": rnd(ks[0], (FD, D)), "wv": rnd(ks[1], (FD, D)), "wq": rnd(ks[2], (D, D)),
        "ln_s_g": jnp.ones((1, D), F32), "ln_s_b": jnp.zeros((1, D), F32),
        "ln_f_g": jnp.ones((1, D), F32), "ln_f_b": jnp.zeros((1, D), F32),
        "w_ih": rnd(ks[3], (D, 3 * D)), "w_hh": rnd(ks[4], (D, 3 * D)),
        "b_ih": rnd(ks[5], (1, 3 * D)), "b_hh": rnd(ks[6], (1, 3 * D)),
        "w1": rnd(ks[7], (D, HID)), "b1": rnd(ks[8], (1, HID)),
        "w2": rnd(ks[9], (HID, D)), "b2": rnd(ks[10], (1, D)),
    }
    # AdaLoRA per-codebook-entry factors (f_lora1: dim->4*dim, f_lora2: 4*dim->dim)
    a1 = rnd(ks[11], (K, D, RANK))
    b1l = rnd(ks[12], (K, RANK, HID))
    a2 = rnd(ks[13], (K, HID, RANK))
    b2l = rnd(ks[14], (K, RANK, D))
    codebook = rnd(ks[15], (K, D), 1.0)

    features = rnd(ks[16], (B, N, FD), 1.0)        # FeatureExtractorOutput.features
    conditioning = rnd(ks[17], (B, S, D), 1.0)     # ConditioningOutput

    wslab, vslab = prepare_slabs(params, (a1, b1l, a2, b2l), codebook)

    out = grouping_forward(features, conditioning, wslab, vslab)
    out = jax.tree_util.tree_map(
        lambda t: jax.block_until_ready(t) if t is not None else t, out)

    # ---- correctness checks against a pure-JAX f32 reference --------------------
    with jax.default_matmul_precision("highest"):
        ref_pre_slots, ref_pre_attn = ref_slot_attention(
            features, conditioning, params,
            jnp.zeros((B, S, D, HID), F32), jnp.zeros((B, S, HID, D), F32))
        d1 = lora_delta(a1, b1l, out["pool_indices"])
        d2 = lora_delta(a2, b2l, out["pool_indices"])
        ref_slots, ref_attn = ref_slot_attention(features, conditioning, params, d1, d2)
    ref_idx, ref_commit = ref_pool(out["pre_slots"], codebook)

    assert bool(jnp.all(out["pool_indices"] == ref_idx))
    ref_commit_sum = float(jnp.sum(ref_commit))
    assert abs(float(out["commit_loss"]) - ref_commit_sum) < 1e-3 + 1e-3 * abs(ref_commit_sum)

    # tolerance 3e-2 accommodates bf16 MXU operands through 3 GRU/FF iterations
    for got, want in [(out["pre_slots"], ref_pre_slots),
                      (out["pre_attn"], ref_pre_attn),
                      (out["objects"], ref_slots),
                      (out["feature_attributions"], ref_attn)]:
        assert bool(jnp.all(jnp.isfinite(got)))
        err = float(jnp.max(jnp.abs(got - want)))
        assert err < 3e-2, err

    print("KERNEL_OK")
</pallas_src>

<mosaic_0001>
module attributes {stable_mosaic.version = 11 : i64} {
  func.func @fused_grouping_kernel(%arg0: i32, %arg1: memref<1x64x32xf32, #tpu.memory_space<vmem>>, %arg2: memref<1x8x32xf32, #tpu.memory_space<vmem>>, %arg3: memref<544x256xbf16, #tpu.memory_space<vmem>>, %arg4: memref<24x128xf32, #tpu.memory_space<vmem>>, %arg5: memref<1x16x128xf32, #tpu.memory_space<vmem>>) attributes {dimension_semantics = [#tpu.dimension_semantics<parallel>], iteration_bounds = array<i64: 2>, scalar_prefetch = 0 : i64, scratch_operands = 0 : i64, tpu.core_type = #tpu.core_type<tc>, window_params = [{transform_indices = @transform_0, window_bounds = array<i64: 1, 64, 32>}, {transform_indices = @transform_1, window_bounds = array<i64: 1, 8, 32>}, {pipeline_mode = #tpu.pipeline_mode<synchronous>, transform_indices = @transform_2, window_bounds = array<i64: 544, 256>}, {pipeline_mode = #tpu.pipeline_mode<synchronous>, transform_indices = @transform_3, window_bounds = array<i64: 24, 128>}, {transform_indices = @transform_4, window_bounds = array<i64: 1, 16, 128>}]} {
    %c0 = arith.constant 0 : index
    %c0_0 = arith.constant 0 : index
    %0 = vector.load %arg4[%c0, %c0_0] : memref<24x128xf32, #tpu.memory_space<vmem>>, vector<1x32xf32>
    %c0_1 = arith.constant 0 : index
    %c32 = arith.constant 32 : index
    %1 = vector.load %arg4[%c0_1, %c32] : memref<24x128xf32, #tpu.memory_space<vmem>>, vector<1x32xf32>
    %c0_2 = arith.constant 0 : index
    %c64 = arith.constant 64 : index
    %2 = vector.load %arg4[%c0_2, %c64] : memref<24x128xf32, #tpu.memory_space<vmem>>, vector<1x32xf32>
    %3 = vector.shape_cast %2 : vector<1x32xf32> to vector<1x32xf32>
    %4 = vector.broadcast %3 : vector<1x32xf32> to vector<8x32xf32>
    %c0_3 = arith.constant 0 : index
    %c96 = arith.constant 96 : index
    %5 = vector.load %arg4[%c0_3, %c96] : memref<24x128xf32, #tpu.memory_space<vmem>>, vector<1x32xf32>
    %6 = vector.shape_cast %5 : vector<1x32xf32> to vector<1x32xf32>
    %7 = vector.broadcast %6 : vector<1x32xf32> to vector<8x32xf32>
    %c1 = arith.constant 1 : index
    %c0_4 = arith.constant 0 : index
    %8 = vector.load %arg4[%c1, %c0_4] : memref<24x128xf32, #tpu.memory_space<vmem>>, vector<1x32xf32>
    %9 = vector.shape_cast %8 : vector<1x32xf32> to vector<1x32xf32>
    %10 = vector.broadcast %9 : vector<1x32xf32> to vector<8x32xf32>
    %c1_5 = arith.constant 1 : index
    %c32_6 = arith.constant 32 : index
    %11 = vector.load %arg4[%c1_5, %c32_6] : memref<24x128xf32, #tpu.memory_space<vmem>>, vector<1x32xf32>
    %12 = vector.shape_cast %11 : vector<1x32xf32> to vector<1x32xf32>
    %13 = vector.broadcast %12 : vector<1x32xf32> to vector<8x32xf32>
    %c1_7 = arith.constant 1 : index
    %c64_8 = arith.constant 64 : index
    %14 = vector.load %arg4[%c1_7, %c64_8] : memref<24x128xf32, #tpu.memory_space<vmem>>, vector<1x32xf32>
    %15 = vector.shape_cast %14 : vector<1x32xf32> to vector<1x32xf32>
    %16 = vector.broadcast %15 : vector<1x32xf32> to vector<8x32xf32>
    %c2 = arith.constant 2 : index
    %c0_9 = arith.constant 0 : index
    %17 = vector.load %arg4[%c2, %c0_9] : memref<24x128xf32, #tpu.memory_space<vmem>>, vector<1x128xf32>
    %18 = vector.shape_cast %17 : vector<1x128xf32> to vector<1x128xf32>
    %19 = vector.broadcast %18 : vector<1x128xf32> to vector<8x128xf32>
    %c3 = arith.constant 3 : index
    %c0_10 = arith.constant 0 : index
    %20 = vector.load %arg4[%c3, %c0_10] : memref<24x128xf32, #tpu.memory_space<vmem>>, vector<1x128xf32>
    %21 = vector.shape_cast %20 : vector<1x128xf32> to vector<1x128xf32>
    %22 = vector.broadcast %21 : vector<1x128xf32> to vector<8x128xf32>
    %c8 = arith.constant 8 : index
    %c0_11 = arith.constant 0 : index
    %23 = vector.load %arg4[%c8, %c0_11] : memref<24x128xf32, #tpu.memory_space<vmem>>, vector<16x32xf32>
    %c0_12 = arith.constant 0 : index
    %c0_13 = arith.constant 0 : index
    %24 = vector.load %arg3[%c0_12, %c0_13] : memref<544x256xbf16, #tpu.memory_space<vmem>>, vector<32x64xbf16>
    %c32_14 = arith.constant 32 : index
    %c0_15 = arith.constant 0 : index
    %25 = vector.load %arg3[%c32_14, %c0_15] : memref<544x256xbf16, #tpu.memory_space<vmem>>, vector<32x32xbf16>
    %c64_16 = arith.constant 64 : index
    %c0_17 = arith.constant 0 : index
    %26 = vector.load %arg3[%c64_16, %c0_17] : memref<544x256xbf16, #tpu.memory_space<vmem>>, vector<64x128xbf16>
    %c128 = arith.constant 128 : index
    %c0_18 = arith.constant 0 : index
    %27 = vector.load %arg3[%c128, %c0_18] : memref<544x256xbf16, #tpu.memory_space<vmem>>, vector<32x256xbf16>
    %c160 = arith.constant 160 : index
    %c0_19 = arith.constant 0 : index
    %28 = vector.load %arg3[%c160, %c0_19] : memref<544x256xbf16, #tpu.memory_space<vmem>>, vector<128x128xbf16>
    %c288 = arith.constant 288 : index
    %c0_20 = arith.constant 0 : index
    %29 = vector.load %arg3[%c288, %c0_20] : memref<544x256xbf16, #tpu.memory_space<vmem>>, vector<128x160xbf16>
    %c416 = arith.constant 416 : index
    %c0_21 = arith.constant 0 : index
    %30 = vector.load %arg3[%c416, %c0_21] : memref<544x256xbf16, #tpu.memory_space<vmem>>, vector<128x32xbf16>
    %c0_22 = arith.constant 0 : index
    %c0_23 = arith.constant 0 : index
    %c0_24 = arith.constant 0 : index
    %31 = vector.load %arg1[%c0_22, %c0_23, %c0_24] : memref<1x64x32xf32, #tpu.memory_space<vmem>>, vector<1x64x32xf32>
    %32 = vector.shape_cast %31 : vector<1x64x32xf32> to vector<64x32xf32>
    %cst = arith.constant dense<0.000000e+00> : vector<64xf32>
    %33 = vector.multi_reduction <add>, %32, %cst [1] : vector<64x32xf32> to vector<64xf32>
    %34 = vector.shape_cast %33 : vector<64xf32> to vector<64x1xf32>
    %cst_25 = arith.constant 3.200000e+01 : f32
    %35 = vector.broadcast %cst_25 : f32 to vector<64x1xf32>
    %36 = arith.divf %34, %35 : vector<64x1xf32>
    %37 = vector.broadcast %36 : vector<64x1xf32> to vector<64x32xf32>
    %38 = arith.subf %32, %37 : vector<64x32xf32>
    %39 = arith.mulf %38, %38 : vector<64x32xf32>
    %cst_26 = arith.constant dense<0.000000e+00> : vector<64xf32>
    %40 = vector.multi_reduction <add>, %39, %cst_26 [1] : vector<64x32xf32> to vector<64xf32>
    %41 = vector.shape_cast %40 : vector<64xf32> to vector<64x1xf32>
    %cst_27 = arith.constant 3.200000e+01 : f32
    %42 = vector.broadcast %cst_27 : f32 to vector<64x1xf32>
    %43 = arith.divf %41, %42 : vector<64x1xf32>
    %44 = vector.broadcast %36 : vector<64x1xf32> to vector<64x32xf32>
    %45 = arith.subf %32, %44 : vector<64x32xf32>
    %cst_28 = arith.constant 9.99999974E-6 : f32
    %46 = vector.broadcast %cst_28 : f32 to vector<64x1xf32>
    %47 = arith.addf %43, %46 : vector<64x1xf32>
    %48 = math.rsqrt %47 : vector<64x1xf32>
    %49 = vector.broadcast %48 : vector<64x1xf32> to vector<64x32xf32>
    %50 = arith.mulf %45, %49 : vector<64x32xf32>
    %51 = vector.broadcast %0 : vector<1x32xf32> to vector<64x32xf32>
    %52 = arith.mulf %50, %51 : vector<64x32xf32>
    %53 = vector.broadcast %1 : vector<1x32xf32> to vector<64x32xf32>
    %54 = arith.addf %52, %53 : vector<64x32xf32>
    %55 = arith.truncf %54 : vector<64x32xf32> to vector<64x32xbf16>
    %cst_29 = arith.constant dense<0.000000e+00> : vector<64x64xf32>
    %56 = tpu.matmul %55, %24, %cst_29 {dimension_numbers = #tpu.dot_dimension_numbers<[1], [0], [0], [1], [0, 0, 1, 1], [], []>} : vector<64x32xbf16>, vector<32x64xbf16>, vector<64x64xf32> -> vector<64x64xf32>
    %57 = vector.extract_strided_slice %56 {offsets = [0, 0], sizes = [64, 32], strides = [1, 1]} : vector<64x64xf32> to vector<64x32xf32>
    %58 = tpu.transpose %57, [1, 0] : vector<64x32xf32> -> vector<32x64xf32>
    %59 = arith.truncf %58 : vector<32x64xf32> to vector<32x64xbf16>
    %60 = vector.extract_strided_slice %56 {offsets = [0, 32], sizes = [64, 32], strides = [1, 1]} : vector<64x64xf32> to vector<64x32xf32>
    %61 = arith.truncf %60 : vector<64x32xf32> to vector<64x32xbf16>
    %c0_30 = arith.constant 0 : index
    %c0_31 = arith.constant 0 : index
    %c0_32 = arith.constant 0 : index
    %62 = vector.load %arg2[%c0_30, %c0_31, %c0_32] : memref<1x8x32xf32, #tpu.memory_space<vmem>>, vector<1x8x32xf32>
    %63 = vector.shape_cast %62 : vector<1x8x32xf32> to vector<8x32xf32>
    %cst_33 = arith.constant dense<0.000000e+00> : vector<8xf32>
    %64 = vector.multi_reduction <add>, %63, %cst_33 [1] : vector<8x32xf32> to vector<8xf32>
    %65 = vector.shape_cast %64 : vector<8xf32> to vector<8x1xf32>
    %cst_34 = arith.constant 3.200000e+01 : f32
    %66 = vector.broadcast %cst_34 : f32 to vector<8x1xf32>
    %67 = arith.divf %65, %66 : vector<8x1xf32>
    %68 = vector.broadcast %67 : vector<8x1xf32> to vector<8x32xf32>
    %69 = arith.subf %63, %68 : vector<8x32xf32>
    %70 = arith.mulf %69, %69 : vector<8x32xf32>
    %cst_35 = arith.constant dense<0.000000e+00> : vector<8xf32>
    %71 = vector.multi_reduction <add>, %70, %cst_35 [1] : vector<8x32xf32> to vector<8xf32>
    %72 = vector.shape_cast %71 : vector<8xf32> to vector<8x1xf32>
    %cst_36 = arith.constant 3.200000e+01 : f32
    %73 = vector.broadcast %cst_36 : f32 to vector<8x1xf32>
    %74 = arith.divf %72, %73 : vector<8x1xf32>
    %75 = vector.broadcast %67 : vector<8x1xf32> to vector<8x32xf32>
    %76 = arith.subf %63, %75 : vector<8x32xf32>
    %cst_37 = arith.constant 9.99999974E-6 : f32
    %77 = vector.broadcast %cst_37 : f32 to vector<8x1xf32>
    %78 = arith.addf %74, %77 : vector<8x1xf32>
    %79 = math.rsqrt %78 : vector<8x1xf32>
    %80 = vector.broadcast %79 : vector<8x1xf32> to vector<8x32xf32>
    %81 = arith.mulf %76, %80 : vector<8x32xf32>
    %82 = arith.mulf %81, %4 : vector<8x32xf32>
    %83 = arith.addf %82, %7 : vector<8x32xf32>
    %84 = arith.truncf %83 : vector<8x32xf32> to vector<8x32xbf16>
    %cst_38 = arith.constant dense<0.000000e+00> : vector<8x32xf32>
    %85 = tpu.matmul %84, %25, %cst_38 {dimension_numbers = #tpu.dot_dimension_numbers<[1], [0], [0], [1], [0, 0, 1, 1], [], []>} : vector<8x32xbf16>, vector<32x32xbf16>, vector<8x32xf32> -> vector<8x32xf32>
    %86 = arith.truncf %85 : vector<8x32xf32> to vector<8x32xbf16>
    %cst_39 = arith.constant dense<0.000000e+00> : vector<8x64xf32>
    %87 = tpu.matmul %86, %59, %cst_39 {dimension_numbers = #tpu.dot_dimension_numbers<[1], [0], [0], [1], [0, 0, 1, 1], [], []>} : vector<8x32xbf16>, vector<32x64xbf16>, vector<8x64xf32> -> vector<8x64xf32>
    %cst_40 = arith.constant 0.176776692 : f32
    %88 = vector.broadcast %cst_40 : f32 to vector<8x64xf32>
    %89 = arith.mulf %87, %88 : vector<8x64xf32>
    %cst_41 = arith.constant dense<0xFF800000> : vector<64xf32>
    %90 = vector.multi_reduction <maximumf>, %89, %cst_41 [0] : vector<8x64xf32> to vector<64xf32>
    %91 = vector.shape_cast %90 : vector<64xf32> to vector<1x64xf32>
    %92 = vector.broadcast %91 : vector<1x64xf32> to vector<8x64xf32>
    %93 = arith.subf %89, %92 : vector<8x64xf32>
    %94 = math.exp %93 : vector<8x64xf32>
    %cst_42 = arith.constant dense<0.000000e+00> : vector<64xf32>
    %95 = vector.multi_reduction <add>, %94, %cst_42 [0] : vector<8x64xf32> to vector<64xf32>
    %96 = vector.shape_cast %95 : vector<64xf32> to vector<1x64xf32>
    %97 = vector.broadcast %96 : vector<1x64xf32> to vector<8x64xf32>
    %98 = arith.divf %94, %97 : vector<8x64xf32>
    %cst_43 = arith.constant 9.99999993E-9 : f32
    %99 = vector.broadcast %cst_43 : f32 to vector<8x64xf32>
    %100 = arith.addf %98, %99 : vector<8x64xf32>
    %cst_44 = arith.constant dense<0.000000e+00> : vector<8xf32>
    %101 = vector.multi_reduction <add>, %100, %cst_44 [1] : vector<8x64xf32> to vector<8xf32>
    %102 = vector.shape_cast %101 : vector<8xf32> to vector<8x1xf32>
    %103 = vector.broadcast %102 : vector<8x1xf32> to vector<8x64xf32>
    %104 = arith.divf %100, %103 : vector<8x64xf32>
    %105 = arith.truncf %104 : vector<8x64xf32> to vector<8x64xbf16>
    %cst_45 = arith.constant dense<0.000000e+00> : vector<8x32xf32>
    %106 = tpu.matmul %105, %61, %cst_45 {dimension_numbers = #tpu.dot_dimension_numbers<[1], [0], [0], [1], [0, 0, 1, 1], [], []>} : vector<8x64xbf16>, vector<64x32xbf16>, vector<8x32xf32> -> vector<8x32xf32>
    %107 = tpu.concatenate %106, %63 in 1 : vector<8x32xf32>, vector<8x32xf32> -> vector<8x64xf32>
    %108 = arith.truncf %107 : vector<8x64xf32> to vector<8x64xbf16>
    %cst_46 = arith.constant dense<0.000000e+00> : vector<8x128xf32>
    %109 = tpu.matmul %108, %26, %cst_46 {dimension_numbers = #tpu.dot_dimension_numbers<[1], [0], [0], [1], [0, 0, 1, 1], [], []>} : vector<8x64xbf16>, vector<64x128xbf16>, vector<8x128xf32> -> vector<8x128xf32>
    %110 = arith.addf %109, %19 : vector<8x128xf32>
    %111 = vector.extract_strided_slice %110 {offsets = [0, 0], sizes = [8, 32], strides = [1, 1]} : vector<8x128xf32> to vector<8x32xf32>
    %112 = arith.negf %111 : vector<8x32xf32>
    %113 = math.exp %112 : vector<8x32xf32>
    %cst_47 = arith.constant 1.000000e+00 : f32
    %114 = vector.broadcast %cst_47 : f32 to vector<8x32xf32>
    %115 = arith.addf %114, %113 : vector<8x32xf32>
    %116 = arith.divf %114, %115 : vector<8x32xf32>
    %117 = vector.extract_strided_slice %110 {offsets = [0, 32], sizes = [8, 32], strides = [1, 1]} : vector<8x128xf32> to vector<8x32xf32>
    %118 = arith.negf %117 : vector<8x32xf32>
    %119 = math.exp %118 : vector<8x32xf32>
    %cst_48 = arith.constant 1.000000e+00 : f32
    %120 = vector.broadcast %cst_48 : f32 to vector<8x32xf32>
    %121 = arith.addf %120, %119 : vector<8x32xf32>
    %122 = arith.divf %120, %121 : vector<8x32xf32>
    %123 = vector.extract_strided_slice %110 {offsets = [0, 64], sizes = [8, 32], strides = [1, 1]} : vector<8x128xf32> to vector<8x32xf32>
    %cst_49 = arith.constant 1.000000e+00 : f32
    %124 = vector.broadcast %cst_49 : f32 to vector<8x32xf32>
    %125 = arith.subf %124, %116 : vector<8x32xf32>
    %126 = vector.extract_strided_slice %110 {offsets = [0, 96], sizes = [8, 32], strides = [1, 1]} : vector<8x128xf32> to vector<8x32xf32>
    %127 = arith.mulf %125, %126 : vector<8x32xf32>
    %128 = arith.subf %123, %127 : vector<8x32xf32>
    %129 = math.tanh %128 : vector<8x32xf32>
    %cst_50 = arith.constant 1.000000e+00 : f32
    %130 = vector.broadcast %cst_50 : f32 to vector<8x32xf32>
    %131 = arith.subf %130, %122 : vector<8x32xf32>
    %132 = arith.mulf %131, %129 : vector<8x32xf32>
    %133 = arith.mulf %122, %63 : vector<8x32xf32>
    %134 = arith.addf %132, %133 : vector<8x32xf32>
    %cst_51 = arith.constant dense<0.000000e+00> : vector<8xf32>
    %135 = vector.multi_reduction <add>, %134, %cst_51 [1] : vector<8x32xf32> to vector<8xf32>
    %136 = vector.shape_cast %135 : vector<8xf32> to vector<8x1xf32>
    %cst_52 = arith.constant 3.200000e+01 : f32
    %137 = vector.broadcast %cst_52 : f32 to vector<8x1xf32>
    %138 = arith.divf %136, %137 : vector<8x1xf32>
    %139 = vector.broadcast %138 : vector<8x1xf32> to vector<8x32xf32>
    %140 = arith.subf %134, %139 : vector<8x32xf32>
    %141 = arith.mulf %140, %140 : vector<8x32xf32>
    %cst_53 = arith.constant dense<0.000000e+00> : vector<8xf32>
    %142 = vector.multi_reduction <add>, %141, %cst_53 [1] : vector<8x32xf32> to vector<8xf32>
    %143 = vector.shape_cast %142 : vector<8xf32> to vector<8x1xf32>
    %cst_54 = arith.constant 3.200000e+01 : f32
    %144 = vector.broadcast %cst_54 : f32 to vector<8x1xf32>
    %145 = arith.divf %143, %144 : vector<8x1xf32>
    %146 = vector.broadcast %138 : vector<8x1xf32> to vector<8x32xf32>
    %147 = arith.subf %134, %146 : vector<8x32xf32>
    %cst_55 = arith.constant 9.99999974E-6 : f32
    %148 = vector.broadcast %cst_55 : f32 to vector<8x1xf32>
    %149 = arith.addf %145, %148 : vector<8x1xf32>
    %150 = math.rsqrt %149 : vector<8x1xf32>
    %151 = vector.broadcast %150 : vector<8x1xf32> to vector<8x32xf32>
    %152 = arith.mulf %147, %151 : vector<8x32xf32>
    %153 = arith.mulf %152, %10 : vector<8x32xf32>
    %154 = arith.addf %153, %13 : vector<8x32xf32>
    %155 = arith.truncf %154 : vector<8x32xf32> to vector<8x32xbf16>
    %156 = vector.extract_strided_slice %27 {offsets = [0, 0], sizes = [32, 128], strides = [1, 1]} : vector<32x256xbf16> to vector<32x128xbf16>
    %cst_56 = arith.constant dense<0.000000e+00> : vector<8x128xf32>
    %157 = tpu.matmul %155, %156, %cst_56 {dimension_numbers = #tpu.dot_dimension_numbers<[1], [0], [0], [1], [0, 0, 1, 1], [], []>} : vector<8x32xbf16>, vector<32x128xbf16>, vector<8x128xf32> -> vector<8x128xf32>
    %158 = arith.addf %157, %22 : vector<8x128xf32>
    %cst_57 = arith.constant 0.000000e+00 : f32
    %159 = vector.broadcast %cst_57 : f32 to vector<8x128xf32>
    %160 = arith.maximumf %158, %159 : vector<8x128xf32>
    %161 = arith.truncf %160 : vector<8x128xf32> to vector<8x128xbf16>
    %162 = vector.extract_strided_slice %29 {offsets = [0, 0], sizes = [128, 32], strides = [1, 1]} : vector<128x160xbf16> to vector<128x32xbf16>
    %cst_58 = arith.constant dense<0.000000e+00> : vector<8x32xf32>
    %163 = tpu.matmul %161, %162, %cst_58 {dimension_numbers = #tpu.dot_dimension_numbers<[1], [0], [0], [1], [0, 0, 1, 1], [], []>} : vector<8x128xbf16>, vector<128x32xbf16>, vector<8x32xf32> -> vector<8x32xf32>
    %164 = arith.addf %163, %16 : vector<8x32xf32>
    %165 = arith.addf %164, %134 : vector<8x32xf32>
    %cst_59 = arith.constant dense<0.000000e+00> : vector<8xf32>
    %166 = vector.multi_reduction <add>, %165, %cst_59 [1] : vector<8x32xf32> to vector<8xf32>
    %167 = vector.shape_cast %166 : vector<8xf32> to vector<8x1xf32>
    %cst_60 = arith.constant 3.200000e+01 : f32
    %168 = vector.broadcast %cst_60 : f32 to vector<8x1xf32>
    %169 = arith.divf %167, %168 : vector<8x1xf32>
    %170 = vector.broadcast %169 : vector<8x1xf32> to vector<8x32xf32>
    %171 = arith.subf %165, %170 : vector<8x32xf32>
    %172 = arith.mulf %171, %171 : vector<8x32xf32>
    %cst_61 = arith.constant dense<0.000000e+00> : vector<8xf32>
    %173 = vector.multi_reduction <add>, %172, %cst_61 [1] : vector<8x32xf32> to vector<8xf32>
    %174 = vector.shape_cast %173 : vector<8xf32> to vector<8x1xf32>
    %cst_62 = arith.constant 3.200000e+01 : f32
    %175 = vector.broadcast %cst_62 : f32 to vector<8x1xf32>
    %176 = arith.divf %174, %175 : vector<8x1xf32>
    %177 = vector.broadcast %169 : vector<8x1xf32> to vector<8x32xf32>
    %178 = arith.subf %165, %177 : vector<8x32xf32>
    %cst_63 = arith.constant 9.99999974E-6 : f32
    %179 = vector.broadcast %cst_63 : f32 to vector<8x1xf32>
    %180 = arith.addf %176, %179 : vector<8x1xf32>
    %181 = math.rsqrt %180 : vector<8x1xf32>
    %182 = vector.broadcast %181 : vector<8x1xf32> to vector<8x32xf32>
    %183 = arith.mulf %178, %182 : vector<8x32xf32>
    %184 = arith.mulf %183, %4 : vector<8x32xf32>
    %185 = arith.addf %184, %7 : vector<8x32xf32>
    %186 = arith.truncf %185 : vector<8x32xf32> to vector<8x32xbf16>
    %cst_64 = arith.constant dense<0.000000e+00> : vector<8x32xf32>
    %187 = tpu.matmul %186, %25, %cst_64 {dimension_numbers = #tpu.dot_dimension_numbers<[1], [0], [0], [1], [0, 0, 1, 1], [], []>} : vector<8x32xbf16>, vector<32x32xbf16>, vector<8x32xf32> -> vector<8x32xf32>
    %188 = arith.truncf %187 : vector<8x32xf32> to vector<8x32xbf16>
    %cst_65 = arith.constant dense<0.000000e+00> : vector<8x64xf32>
    %189 = tpu.matmul %188, %59, %cst_65 {dimension_numbers = #tpu.dot_dimension_numbers<[1], [0], [0], [1], [0, 0, 1, 1], [], []>} : vector<8x32xbf16>, vector<32x64xbf16>, vector<8x64xf32> -> vector<8x64xf32>
    %cst_66 = arith.constant 0.176776692 : f32
    %190 = vector.broadcast %cst_66 : f32 to vector<8x64xf32>
    %191 = arith.mulf %189, %190 : vector<8x64xf32>
    %cst_67 = arith.constant dense<0xFF800000> : vector<64xf32>
    %192 = vector.multi_reduction <maximumf>, %191, %cst_67 [0] : vector<8x64xf32> to vector<64xf32>
    %193 = vector.shape_cast %192 : vector<64xf32> to vector<1x64xf32>
    %194 = vector.broadcast %193 : vector<1x64xf32> to vector<8x64xf32>
    %195 = arith.subf %191, %194 : vector<8x64xf32>
    %196 = math.exp %195 : vector<8x64xf32>
    %cst_68 = arith.constant dense<0.000000e+00> : vector<64xf32>
    %197 = vector.multi_reduction <add>, %196, %cst_68 [0] : vector<8x64xf32> to vector<64xf32>
    %198 = vector.shape_cast %197 : vector<64xf32> to vector<1x64xf32>
    %199 = vector.broadcast %198 : vector<1x64xf32> to vector<8x64xf32>
    %200 = arith.divf %196, %199 : vector<8x64xf32>
    %cst_69 = arith.constant 9.99999993E-9 : f32
    %201 = vector.broadcast %cst_69 : f32 to vector<8x64xf32>
    %202 = arith.addf %200, %201 : vector<8x64xf32>
    %cst_70 = arith.constant dense<0.000000e+00> : vector<8xf32>
    %203 = vector.multi_reduction <add>, %202, %cst_70 [1] : vector<8x64xf32> to vector<8xf32>
    %204 = vector.shape_cast %203 : vector<8xf32> to vector<8x1xf32>
    %205 = vector.broadcast %204 : vector<8x1xf32> to vector<8x64xf32>
    %206 = arith.divf %202, %205 : vector<8x64xf32>
    %207 = arith.truncf %206 : vector<8x64xf32> to vector<8x64xbf16>
    %cst_71 = arith.constant dense<0.000000e+00> : vector<8x32xf32>
    %208 = tpu.matmul %207, %61, %cst_71 {dimension_numbers = #tpu.dot_dimension_numbers<[1], [0], [0], [1], [0, 0, 1, 1], [], []>} : vector<8x64xbf16>, vector<64x32xbf16>, vector<8x32xf32> -> vector<8x32xf32>
    %209 = tpu.concatenate %208, %165 in 1 : vector<8x32xf32>, vector<8x32xf32> -> vector<8x64xf32>
    %210 = arith.truncf %209 : vector<8x64xf32> to vector<8x64xbf16>
    %cst_72 = arith.constant dense<0.000000e+00> : vector<8x128xf32>
    %211 = tpu.matmul %210, %26, %cst_72 {dimension_numbers = #tpu.dot_dimension_numbers<[1], [0], [0], [1], [0, 0, 1, 1], [], []>} : vector<8x64xbf16>, vector<64x128xbf16>, vector<8x128xf32> -> vector<8x128xf32>
    %212 = arith.addf %211, %19 : vector<8x128xf32>
    %213 = vector.extract_strided_slice %212 {offsets = [0, 0], sizes = [8, 32], strides = [1, 1]} : vector<8x128xf32> to vector<8x32xf32>
    %214 = arith.negf %213 : vector<8x32xf32>
    %215 = math.exp %214 : vector<8x32xf32>
    %cst_73 = arith.constant 1.000000e+00 : f32
    %216 = vector.broadcast %cst_73 : f32 to vector<8x32xf32>
    %217 = arith.addf %216, %215 : vector<8x32xf32>
    %218 = arith.divf %216, %217 : vector<8x32xf32>
    %219 = vector.extract_strided_slice %212 {offsets = [0, 32], sizes = [8, 32], strides = [1, 1]} : vector<8x128xf32> to vector<8x32xf32>
    %220 = arith.negf %219 : vector<8x32xf32>
    %221 = math.exp %220 : vector<8x32xf32>
    %cst_74 = arith.constant 1.000000e+00 : f32
    %222 = vector.broadcast %cst_74 : f32 to vector<8x32xf32>
    %223 = arith.addf %222, %221 : vector<8x32xf32>
    %224 = arith.divf %222, %223 : vector<8x32xf32>
    %225 = vector.extract_strided_slice %212 {offsets = [0, 64], sizes = [8, 32], strides = [1, 1]} : vector<8x128xf32> to vector<8x32xf32>
    %cst_75 = arith.constant 1.000000e+00 : f32
    %226 = vector.broadcast %cst_75 : f32 to vector<8x32xf32>
    %227 = arith.subf %226, %218 : vector<8x32xf32>
    %228 = vector.extract_strided_slice %212 {offsets = [0, 96], sizes = [8, 32], strides = [1, 1]} : vector<8x128xf32> to vector<8x32xf32>
    %229 = arith.mulf %227, %228 : vector<8x32xf32>
    %230 = arith.subf %225, %229 : vector<8x32xf32>
    %231 = math.tanh %230 : vector<8x32xf32>
    %cst_76 = arith.constant 1.000000e+00 : f32
    %232 = vector.broadcast %cst_76 : f32 to vector<8x32xf32>
    %233 = arith.subf %232, %224 : vector<8x32xf32>
    %234 = arith.mulf %233, %231 : vector<8x32xf32>
    %235 = arith.mulf %224, %165 : vector<8x32xf32>
    %236 = arith.addf %234, %235 : vector<8x32xf32>
    %cst_77 = arith.constant dense<0.000000e+00> : vector<8xf32>
    %237 = vector.multi_reduction <add>, %236, %cst_77 [1] : vector<8x32xf32> to vector<8xf32>
    %238 = vector.shape_cast %237 : vector<8xf32> to vector<8x1xf32>
    %cst_78 = arith.constant 3.200000e+01 : f32
    %239 = vector.broadcast %cst_78 : f32 to vector<8x1xf32>
    %240 = arith.divf %238, %239 : vector<8x1xf32>
    %241 = vector.broadcast %240 : vector<8x1xf32> to vector<8x32xf32>
    %242 = arith.subf %236, %241 : vector<8x32xf32>
    %243 = arith.mulf %242, %242 : vector<8x32xf32>
    %cst_79 = arith.constant dense<0.000000e+00> : vector<8xf32>
    %244 = vector.multi_reduction <add>, %243, %cst_79 [1] : vector<8x32xf32> to vector<8xf32>
    %245 = vector.shape_cast %244 : vector<8xf32> to vector<8x1xf32>
    %cst_80 = arith.constant 3.200000e+01 : f32
    %246 = vector.broadcast %cst_80 : f32 to vector<8x1xf32>
    %247 = arith.divf %245, %246 : vector<8x1xf32>
    %248 = vector.broadcast %240 : vector<8x1xf32> to vector<8x32xf32>
    %249 = arith.subf %236, %248 : vector<8x32xf32>
    %cst_81 = arith.constant 9.99999974E-6 : f32
    %250 = vector.broadcast %cst_81 : f32 to vector<8x1xf32>
    %251 = arith.addf %247, %250 : vector<8x1xf32>
    %252 = math.rsqrt %251 : vector<8x1xf32>
    %253 = vector.broadcast %252 : vector<8x1xf32> to vector<8x32xf32>
    %254 = arith.mulf %249, %253 : vector<8x32xf32>
    %255 = arith.mulf %254, %10 : vector<8x32xf32>
    %256 = arith.addf %255, %13 : vector<8x32xf32>
    %257 = arith.truncf %256 : vector<8x32xf32> to vector<8x32xbf16>
    %258 = vector.extract_strided_slice %27 {offsets = [0, 0], sizes = [32, 128], strides = [1, 1]} : vector<32x256xbf16> to vector<32x128xbf16>
    %cst_82 = arith.constant dense<0.000000e+00> : vector<8x128xf32>
    %259 = tpu.matmul %257, %258, %cst_82 {dimension_numbers = #tpu.dot_dimension_numbers<[1], [0], [0], [1], [0, 0, 1, 1], [], []>} : vector<8x32xbf16>, vector<32x128xbf16>, vector<8x128xf32> -> vector<8x128xf32>
    %260 = arith.addf %259, %22 : vector<8x128xf32>
    %cst_83 = arith.constant 0.000000e+00 : f32
    %261 = vector.broadcast %cst_83 : f32 to vector<8x128xf32>
    %262 = arith.maximumf %260, %261 : vector<8x128xf32>
    %263 = arith.truncf %262 : vector<8x128xf32> to vector<8x128xbf16>
    %264 = vector.extract_strided_slice %29 {offsets = [0, 0], sizes = [128, 32], strides = [1, 1]} : vector<128x160xbf16> to vector<128x32xbf16>
    %cst_84 = arith.constant dense<0.000000e+00> : vector<8x32xf32>
    %265 = tpu.matmul %263, %264, %cst_84 {dimension_numbers = #tpu.dot_dimension_numbers<[1], [0], [0], [1], [0, 0, 1, 1], [], []>} : vector<8x128xbf16>, vector<128x32xbf16>, vector<8x32xf32> -> vector<8x32xf32>
    %266 = arith.addf %265, %16 : vector<8x32xf32>
    %267 = arith.addf %266, %236 : vector<8x32xf32>
    %cst_85 = arith.constant dense<0.000000e+00> : vector<8xf32>
    %268 = vector.multi_reduction <add>, %267, %cst_85 [1] : vector<8x32xf32> to vector<8xf32>
    %269 = vector.shape_cast %268 : vector<8xf32> to vector<8x1xf32>
    %cst_86 = arith.constant 3.200000e+01 : f32
    %270 = vector.broadcast %cst_86 : f32 to vector<8x1xf32>
    %271 = arith.divf %269, %270 : vector<8x1xf32>
    %272 = vector.broadcast %271 : vector<8x1xf32> to vector<8x32xf32>
    %273 = arith.subf %267, %272 : vector<8x32xf32>
    %274 = arith.mulf %273, %273 : vector<8x32xf32>
    %cst_87 = arith.constant dense<0.000000e+00> : vector<8xf32>
    %275 = vector.multi_reduction <add>, %274, %cst_87 [1] : vector<8x32xf32> to vector<8xf32>
    %276 = vector.shape_cast %275 : vector<8xf32> to vector<8x1xf32>
    %cst_88 = arith.constant 3.200000e+01 : f32
    %277 = vector.broadcast %cst_88 : f32 to vector<8x1xf32>
    %278 = arith.divf %276, %277 : vector<8x1xf32>
    %279 = vector.broadcast %271 : vector<8x1xf32> to vector<8x32xf32>
    %280 = arith.subf %267, %279 : vector<8x32xf32>
    %cst_89 = arith.constant 9.99999974E-6 : f32
    %281 = vector.broadcast %cst_89 : f32 to vector<8x1xf32>
    %282 = arith.addf %278, %281 : vector<8x1xf32>
    %283 = math.rsqrt %282 : vector<8x1xf32>
    %284 = vector.broadcast %283 : vector<8x1xf32> to vector<8x32xf32>
    %285 = arith.mulf %280, %284 : vector<8x32xf32>
    %286 = arith.mulf %285, %4 : vector<8x32xf32>
    %287 = arith.addf %286, %7 : vector<8x32xf32>
    %288 = arith.truncf %287 : vector<8x32xf32> to vector<8x32xbf16>
    %cst_90 = arith.constant dense<0.000000e+00> : vector<8x32xf32>
    %289 = tpu.matmul %288, %25, %cst_90 {dimension_numbers = #tpu.dot_dimension_numbers<[1], [0], [0], [1], [0, 0, 1, 1], [], []>} : vector<8x32xbf16>, vector<32x32xbf16>, vector<8x32xf32> -> vector<8x32xf32>
    %290 = arith.truncf %289 : vector<8x32xf32> to vector<8x32xbf16>
    %cst_91 = arith.constant dense<0.000000e+00> : vector<8x64xf32>
    %291 = tpu.matmul %290, %59, %cst_91 {dimension_numbers = #tpu.dot_dimension_numbers<[1], [0], [0], [1], [0, 0, 1, 1], [], []>} : vector<8x32xbf16>, vector<32x64xbf16>, vector<8x64xf32> -> vector<8x64xf32>
    %cst_92 = arith.constant 0.176776692 : f32
    %292 = vector.broadcast %cst_92 : f32 to vector<8x64xf32>
    %293 = arith.mulf %291, %292 : vector<8x64xf32>
    %cst_93 = arith.constant dense<0xFF800000> : vector<64xf32>
    %294 = vector.multi_reduction <maximumf>, %293, %cst_93 [0] : vector<8x64xf32> to vector<64xf32>
    %295 = vector.shape_cast %294 : vector<64xf32> to vector<1x64xf32>
    %296 = vector.broadcast %295 : vector<1x64xf32> to vector<8x64xf32>
    %297 = arith.subf %293, %296 : vector<8x64xf32>
    %298 = math.exp %297 : vector<8x64xf32>
    %cst_94 = arith.constant dense<0.000000e+00> : vector<64xf32>
    %299 = vector.multi_reduction <add>, %298, %cst_94 [0] : vector<8x64xf32> to vector<64xf32>
    %300 = vector.shape_cast %299 : vector<64xf32> to vector<1x64xf32>
    %301 = vector.broadcast %300 : vector<1x64xf32> to vector<8x64xf32>
    %302 = arith.divf %298, %301 : vector<8x64xf32>
    %cst_95 = arith.constant 9.99999993E-9 : f32
    %303 = vector.broadcast %cst_95 : f32 to vector<8x64xf32>
    %304 = arith.addf %302, %303 : vector<8x64xf32>
    %cst_96 = arith.constant dense<0.000000e+00> : vector<8xf32>
    %305 = vector.multi_reduction <add>, %304, %cst_96 [1] : vector<8x64xf32> to vector<8xf32>
    %306 = vector.shape_cast %305 : vector<8xf32> to vector<8x1xf32>
    %307 = vector.broadcast %306 : vector<8x1xf32> to vector<8x64xf32>
    %308 = arith.divf %304, %307 : vector<8x64xf32>
    %309 = arith.truncf %308 : vector<8x64xf32> to vector<8x64xbf16>
    %cst_97 = arith.constant dense<0.000000e+00> : vector<8x32xf32>
    %310 = tpu.matmul %309, %61, %cst_97 {dimension_numbers = #tpu.dot_dimension_numbers<[1], [0], [0], [1], [0, 0, 1, 1], [], []>} : vector<8x64xbf16>, vector<64x32xbf16>, vector<8x32xf32> -> vector<8x32xf32>
    %311 = tpu.concatenate %310, %267 in 1 : vector<8x32xf32>, vector<8x32xf32> -> vector<8x64xf32>
    %312 = arith.truncf %311 : vector<8x64xf32> to vector<8x64xbf16>
    %cst_98 = arith.constant dense<0.000000e+00> : vector<8x128xf32>
    %313 = tpu.matmul %312, %26, %cst_98 {dimension_numbers = #tpu.dot_dimension_numbers<[1], [0], [0], [1], [0, 0, 1, 1], [], []>} : vector<8x64xbf16>, vector<64x128xbf16>, vector<8x128xf32> -> vector<8x128xf32>
    %314 = arith.addf %313, %19 : vector<8x128xf32>
    %315 = vector.extract_strided_slice %314 {offsets = [0, 0], sizes = [8, 32], strides = [1, 1]} : vector<8x128xf32> to vector<8x32xf32>
    %316 = arith.negf %315 : vector<8x32xf32>
    %317 = math.exp %316 : vector<8x32xf32>
    %cst_99 = arith.constant 1.000000e+00 : f32
    %318 = vector.broadcast %cst_99 : f32 to vector<8x32xf32>
    %319 = arith.addf %318, %317 : vector<8x32xf32>
    %320 = arith.divf %318, %319 : vector<8x32xf32>
    %321 = vector.extract_strided_slice %314 {offsets = [0, 32], sizes = [8, 32], strides = [1, 1]} : vector<8x128xf32> to vector<8x32xf32>
    %322 = arith.negf %321 : vector<8x32xf32>
    %323 = math.exp %322 : vector<8x32xf32>
    %cst_100 = arith.constant 1.000000e+00 : f32
    %324 = vector.broadcast %cst_100 : f32 to vector<8x32xf32>
    %325 = arith.addf %324, %323 : vector<8x32xf32>
    %326 = arith.divf %324, %325 : vector<8x32xf32>
    %327 = vector.extract_strided_slice %314 {offsets = [0, 64], sizes = [8, 32], strides = [1, 1]} : vector<8x128xf32> to vector<8x32xf32>
    %cst_101 = arith.constant 1.000000e+00 : f32
    %328 = vector.broadcast %cst_101 : f32 to vector<8x32xf32>
    %329 = arith.subf %328, %320 : vector<8x32xf32>
    %330 = vector.extract_strided_slice %314 {offsets = [0, 96], sizes = [8, 32], strides = [1, 1]} : vector<8x128xf32> to vector<8x32xf32>
    %331 = arith.mulf %329, %330 : vector<8x32xf32>
    %332 = arith.subf %327, %331 : vector<8x32xf32>
    %333 = math.tanh %332 : vector<8x32xf32>
    %cst_102 = arith.constant 1.000000e+00 : f32
    %334 = vector.broadcast %cst_102 : f32 to vector<8x32xf32>
    %335 = arith.subf %334, %326 : vector<8x32xf32>
    %336 = arith.mulf %335, %333 : vector<8x32xf32>
    %337 = arith.mulf %326, %267 : vector<8x32xf32>
    %338 = arith.addf %336, %337 : vector<8x32xf32>
    %cst_103 = arith.constant dense<0.000000e+00> : vector<8xf32>
    %339 = vector.multi_reduction <add>, %338, %cst_103 [1] : vector<8x32xf32> to vector<8xf32>
    %340 = vector.shape_cast %339 : vector<8xf32> to vector<8x1xf32>
    %cst_104 = arith.constant 3.200000e+01 : f32
    %341 = vector.broadcast %cst_104 : f32 to vector<8x1xf32>
    %342 = arith.divf %340, %341 : vector<8x1xf32>
    %343 = vector.broadcast %342 : vector<8x1xf32> to vector<8x32xf32>
    %344 = arith.subf %338, %343 : vector<8x32xf32>
    %345 = arith.mulf %344, %344 : vector<8x32xf32>
    %cst_105 = arith.constant dense<0.000000e+00> : vector<8xf32>
    %346 = vector.multi_reduction <add>, %345, %cst_105 [1] : vector<8x32xf32> to vector<8xf32>
    %347 = vector.shape_cast %346 : vector<8xf32> to vector<8x1xf32>
    %cst_106 = arith.constant 3.200000e+01 : f32
    %348 = vector.broadcast %cst_106 : f32 to vector<8x1xf32>
    %349 = arith.divf %347, %348 : vector<8x1xf32>
    %350 = vector.broadcast %342 : vector<8x1xf32> to vector<8x32xf32>
    %351 = arith.subf %338, %350 : vector<8x32xf32>
    %cst_107 = arith.constant 9.99999974E-6 : f32
    %352 = vector.broadcast %cst_107 : f32 to vector<8x1xf32>
    %353 = arith.addf %349, %352 : vector<8x1xf32>
    %354 = math.rsqrt %353 : vector<8x1xf32>
    %355 = vector.broadcast %354 : vector<8x1xf32> to vector<8x32xf32>
    %356 = arith.mulf %351, %355 : vector<8x32xf32>
    %357 = arith.mulf %356, %10 : vector<8x32xf32>
    %358 = arith.addf %357, %13 : vector<8x32xf32>
    %359 = arith.truncf %358 : vector<8x32xf32> to vector<8x32xbf16>
    %360 = vector.extract_strided_slice %27 {offsets = [0, 0], sizes = [32, 128], strides = [1, 1]} : vector<32x256xbf16> to vector<32x128xbf16>
    %cst_108 = arith.constant dense<0.000000e+00> : vector<8x128xf32>
    %361 = tpu.matmul %359, %360, %cst_108 {dimension_numbers = #tpu.dot_dimension_numbers<[1], [0], [0], [1], [0, 0, 1, 1], [], []>} : vector<8x32xbf16>, vector<32x128xbf16>, vector<8x128xf32> -> vector<8x128xf32>
    %362 = arith.addf %361, %22 : vector<8x128xf32>
    %cst_109 = arith.constant 0.000000e+00 : f32
    %363 = vector.broadcast %cst_109 : f32 to vector<8x128xf32>
    %364 = arith.maximumf %362, %363 : vector<8x128xf32>
    %365 = arith.truncf %364 : vector<8x128xf32> to vector<8x128xbf16>
    %366 = vector.extract_strided_slice %29 {offsets = [0, 0], sizes = [128, 32], strides = [1, 1]} : vector<128x160xbf16> to vector<128x32xbf16>
    %cst_110 = arith.constant dense<0.000000e+00> : vector<8x32xf32>
    %367 = tpu.matmul %365, %366, %cst_110 {dimension_numbers = #tpu.dot_dimension_numbers<[1], [0], [0], [1], [0, 0, 1, 1], [], []>} : vector<8x128xbf16>, vector<128x32xbf16>, vector<8x32xf32> -> vector<8x32xf32>
    %368 = arith.addf %367, %16 : vector<8x32xf32>
    %369 = arith.addf %368, %338 : vector<8x32xf32>
    %370 = vector.extract_strided_slice %23 {offsets = [0, 0], sizes = [1, 32], strides = [1, 1]} : vector<16x32xf32> to vector<1x32xf32>
    %371 = vector.broadcast %370 : vector<1x32xf32> to vector<8x32xf32>
    %372 = arith.subf %369, %371 : vector<8x32xf32>
    %373 = arith.mulf %372, %372 : vector<8x32xf32>
    %cst_111 = arith.constant dense<0.000000e+00> : vector<8xf32>
    %374 = vector.multi_reduction <add>, %373, %cst_111 [1] : vector<8x32xf32> to vector<8xf32>
    %375 = vector.shape_cast %374 : vector<8xf32> to vector<8x1xf32>
    %cst_112 = arith.constant 0.000000e+00 : f32
    %376 = vector.broadcast %cst_112 : f32 to vector<8x1xf32>
    %377 = vector.extract_strided_slice %23 {offsets = [1, 0], sizes = [1, 32], strides = [1, 1]} : vector<16x32xf32> to vector<1x32xf32>
    %378 = vector.broadcast %377 : vector<1x32xf32> to vector<8x32xf32>
    %379 = arith.subf %369, %378 : vector<8x32xf32>
    %380 = arith.mulf %379, %379 : vector<8x32xf32>
    %cst_113 = arith.constant dense<0.000000e+00> : vector<8xf32>
    %381 = vector.multi_reduction <add>, %380, %cst_113 [1] : vector<8x32xf32> to vector<8xf32>
    %382 = vector.shape_cast %381 : vector<8xf32> to vector<8x1xf32>
    %383 = arith.cmpf olt, %382, %375 : vector<8x1xf32>
    %384 = arith.select %383, %382, %375 : vector<8x1xi1>, vector<8x1xf32>
    %cst_114 = arith.constant 1.000000e+00 : f32
    %385 = vector.broadcast %cst_114 : f32 to vector<8x1xf32>
    %386 = arith.select %383, %385, %376 : vector<8x1xi1>, vector<8x1xf32>
    %387 = vector.extract_strided_slice %23 {offsets = [2, 0], sizes = [1, 32], strides = [1, 1]} : vector<16x32xf32> to vector<1x32xf32>
    %388 = vector.broadcast %387 : vector<1x32xf32> to vector<8x32xf32>
    %389 = arith.subf %369, %388 : vector<8x32xf32>
    %390 = arith.mulf %389, %389 : vector<8x32xf32>
    %cst_115 = arith.constant dense<0.000000e+00> : vector<8xf32>
    %391 = vector.multi_reduction <add>, %390, %cst_115 [1] : vector<8x32xf32> to vector<8xf32>
    %392 = vector.shape_cast %391 : vector<8xf32> to vector<8x1xf32>
    %393 = arith.cmpf olt, %392, %384 : vector<8x1xf32>
    %394 = arith.select %393, %392, %384 : vector<8x1xi1>, vector<8x1xf32>
    %cst_116 = arith.constant 2.000000e+00 : f32
    %395 = vector.broadcast %cst_116 : f32 to vector<8x1xf32>
    %396 = arith.select %393, %395, %386 : vector<8x1xi1>, vector<8x1xf32>
    %397 = vector.extract_strided_slice %23 {offsets = [3, 0], sizes = [1, 32], strides = [1, 1]} : vector<16x32xf32> to vector<1x32xf32>
    %398 = vector.broadcast %397 : vector<1x32xf32> to vector<8x32xf32>
    %399 = arith.subf %369, %398 : vector<8x32xf32>
    %400 = arith.mulf %399, %399 : vector<8x32xf32>
    %cst_117 = arith.constant dense<0.000000e+00> : vector<8xf32>
    %401 = vector.multi_reduction <add>, %400, %cst_117 [1] : vector<8x32xf32> to vector<8xf32>
    %402 = vector.shape_cast %401 : vector<8xf32> to vector<8x1xf32>
    %403 = arith.cmpf olt, %402, %394 : vector<8x1xf32>
    %404 = arith.select %403, %402, %394 : vector<8x1xi1>, vector<8x1xf32>
    %cst_118 = arith.constant 3.000000e+00 : f32
    %405 = vector.broadcast %cst_118 : f32 to vector<8x1xf32>
    %406 = arith.select %403, %405, %396 : vector<8x1xi1>, vector<8x1xf32>
    %407 = vector.extract_strided_slice %23 {offsets = [4, 0], sizes = [1, 32], strides = [1, 1]} : vector<16x32xf32> to vector<1x32xf32>
    %408 = vector.broadcast %407 : vector<1x32xf32> to vector<8x32xf32>
    %409 = arith.subf %369, %408 : vector<8x32xf32>
    %410 = arith.mulf %409, %409 : vector<8x32xf32>
    %cst_119 = arith.constant dense<0.000000e+00> : vector<8xf32>
    %411 = vector.multi_reduction <add>, %410, %cst_119 [1] : vector<8x32xf32> to vector<8xf32>
    %412 = vector.shape_cast %411 : vector<8xf32> to vector<8x1xf32>
    %413 = arith.cmpf olt, %412, %404 : vector<8x1xf32>
    %414 = arith.select %413, %412, %404 : vector<8x1xi1>, vector<8x1xf32>
    %cst_120 = arith.constant 4.000000e+00 : f32
    %415 = vector.broadcast %cst_120 : f32 to vector<8x1xf32>
    %416 = arith.select %413, %415, %406 : vector<8x1xi1>, vector<8x1xf32>
    %417 = vector.extract_strided_slice %23 {offsets = [5, 0], sizes = [1, 32], strides = [1, 1]} : vector<16x32xf32> to vector<1x32xf32>
    %418 = vector.broadcast %417 : vector<1x32xf32> to vector<8x32xf32>
    %419 = arith.subf %369, %418 : vector<8x32xf32>
    %420 = arith.mulf %419, %419 : vector<8x32xf32>
    %cst_121 = arith.constant dense<0.000000e+00> : vector<8xf32>
    %421 = vector.multi_reduction <add>, %420, %cst_121 [1] : vector<8x32xf32> to vector<8xf32>
    %422 = vector.shape_cast %421 : vector<8xf32> to vector<8x1xf32>
    %423 = arith.cmpf olt, %422, %414 : vector<8x1xf32>
    %424 = arith.select %423, %422, %414 : vector<8x1xi1>, vector<8x1xf32>
    %cst_122 = arith.constant 5.000000e+00 : f32
    %425 = vector.broadcast %cst_122 : f32 to vector<8x1xf32>
    %426 = arith.select %423, %425, %416 : vector<8x1xi1>, vector<8x1xf32>
    %427 = vector.extract_strided_slice %23 {offsets = [6, 0], sizes = [1, 32], strides = [1, 1]} : vector<16x32xf32> to vector<1x32xf32>
    %428 = vector.broadcast %427 : vector<1x32xf32> to vector<8x32xf32>
    %429 = arith.subf %369, %428 : vector<8x32xf32>
    %430 = arith.mulf %429, %429 : vector<8x32xf32>
    %cst_123 = arith.constant dense<0.000000e+00> : vector<8xf32>
    %431 = vector.multi_reduction <add>, %430, %cst_123 [1] : vector<8x32xf32> to vector<8xf32>
    %432 = vector.shape_cast %431 : vector<8xf32> to vector<8x1xf32>
    %433 = arith.cmpf olt, %432, %424 : vector<8x1xf32>
    %434 = arith.select %433, %432, %424 : vector<8x1xi1>, vector<8x1xf32>
    %cst_124 = arith.constant 6.000000e+00 : f32
    %435 = vector.broadcast %cst_124 : f32 to vector<8x1xf32>
    %436 = arith.select %433, %435, %426 : vector<8x1xi1>, vector<8x1xf32>
    %437 = vector.extract_strided_slice %23 {offsets = [7, 0], sizes = [1, 32], strides = [1, 1]} : vector<16x32xf32> to vector<1x32xf32>
    %438 = vector.broadcast %437 : vector<1x32xf32> to vector<8x32xf32>
    %439 = arith.subf %369, %438 : vector<8x32xf32>
    %440 = arith.mulf %439, %439 : vector<8x32xf32>
    %cst_125 = arith.constant dense<0.000000e+00> : vector<8xf32>
    %441 = vector.multi_reduction <add>, %440, %cst_125 [1] : vector<8x32xf32> to vector<8xf32>
    %442 = vector.shape_cast %441 : vector<8xf32> to vector<8x1xf32>
    %443 = arith.cmpf olt, %442, %434 : vector<8x1xf32>
    %444 = arith.select %443, %442, %434 : vector<8x1xi1>, vector<8x1xf32>
    %cst_126 = arith.constant 7.000000e+00 : f32
    %445 = vector.broadcast %cst_126 : f32 to vector<8x1xf32>
    %446 = arith.select %443, %445, %436 : vector<8x1xi1>, vector<8x1xf32>
    %447 = vector.extract_strided_slice %23 {offsets = [8, 0], sizes = [1, 32], strides = [1, 1]} : vector<16x32xf32> to vector<1x32xf32>
    %448 = vector.broadcast %447 : vector<1x32xf32> to vector<8x32xf32>
    %449 = arith.subf %369, %448 : vector<8x32xf32>
    %450 = arith.mulf %449, %449 : vector<8x32xf32>
    %cst_127 = arith.constant dense<0.000000e+00> : vector<8xf32>
    %451 = vector.multi_reduction <add>, %450, %cst_127 [1] : vector<8x32xf32> to vector<8xf32>
    %452 = vector.shape_cast %451 : vector<8xf32> to vector<8x1xf32>
    %453 = arith.cmpf olt, %452, %444 : vector<8x1xf32>
    %454 = arith.select %453, %452, %444 : vector<8x1xi1>, vector<8x1xf32>
    %cst_128 = arith.constant 8.000000e+00 : f32
    %455 = vector.broadcast %cst_128 : f32 to vector<8x1xf32>
    %456 = arith.select %453, %455, %446 : vector<8x1xi1>, vector<8x1xf32>
    %457 = vector.extract_strided_slice %23 {offsets = [9, 0], sizes = [1, 32], strides = [1, 1]} : vector<16x32xf32> to vector<1x32xf32>
    %458 = vector.broadcast %457 : vector<1x32xf32> to vector<8x32xf32>
    %459 = arith.subf %369, %458 : vector<8x32xf32>
    %460 = arith.mulf %459, %459 : vector<8x32xf32>
    %cst_129 = arith.constant dense<0.000000e+00> : vector<8xf32>
    %461 = vector.multi_reduction <add>, %460, %cst_129 [1] : vector<8x32xf32> to vector<8xf32>
    %462 = vector.shape_cast %461 : vector<8xf32> to vector<8x1xf32>
    %463 = arith.cmpf olt, %462, %454 : vector<8x1xf32>
    %464 = arith.select %463, %462, %454 : vector<8x1xi1>, vector<8x1xf32>
    %cst_130 = arith.constant 9.000000e+00 : f32
    %465 = vector.broadcast %cst_130 : f32 to vector<8x1xf32>
    %466 = arith.select %463, %465, %456 : vector<8x1xi1>, vector<8x1xf32>
    %467 = vector.extract_strided_slice %23 {offsets = [10, 0], sizes = [1, 32], strides = [1, 1]} : vector<16x32xf32> to vector<1x32xf32>
    %468 = vector.broadcast %467 : vector<1x32xf32> to vector<8x32xf32>
    %469 = arith.subf %369, %468 : vector<8x32xf32>
    %470 = arith.mulf %469, %469 : vector<8x32xf32>
    %cst_131 = arith.constant dense<0.000000e+00> : vector<8xf32>
    %471 = vector.multi_reduction <add>, %470, %cst_131 [1] : vector<8x32xf32> to vector<8xf32>
    %472 = vector.shape_cast %471 : vector<8xf32> to vector<8x1xf32>
    %473 = arith.cmpf olt, %472, %464 : vector<8x1xf32>
    %474 = arith.select %473, %472, %464 : vector<8x1xi1>, vector<8x1xf32>
    %cst_132 = arith.constant 1.000000e+01 : f32
    %475 = vector.broadcast %cst_132 : f32 to vector<8x1xf32>
    %476 = arith.select %473, %475, %466 : vector<8x1xi1>, vector<8x1xf32>
    %477 = vector.extract_strided_slice %23 {offsets = [11, 0], sizes = [1, 32], strides = [1, 1]} : vector<16x32xf32> to vector<1x32xf32>
    %478 = vector.broadcast %477 : vector<1x32xf32> to vector<8x32xf32>
    %479 = arith.subf %369, %478 : vector<8x32xf32>
    %480 = arith.mulf %479, %479 : vector<8x32xf32>
    %cst_133 = arith.constant dense<0.000000e+00> : vector<8xf32>
    %481 = vector.multi_reduction <add>, %480, %cst_133 [1] : vector<8x32xf32> to vector<8xf32>
    %482 = vector.shape_cast %481 : vector<8xf32> to vector<8x1xf32>
    %483 = arith.cmpf olt, %482, %474 : vector<8x1xf32>
    %484 = arith.select %483, %482, %474 : vector<8x1xi1>, vector<8x1xf32>
    %cst_134 = arith.constant 1.100000e+01 : f32
    %485 = vector.broadcast %cst_134 : f32 to vector<8x1xf32>
    %486 = arith.select %483, %485, %476 : vector<8x1xi1>, vector<8x1xf32>
    %487 = vector.extract_strided_slice %23 {offsets = [12, 0], sizes = [1, 32], strides = [1, 1]} : vector<16x32xf32> to vector<1x32xf32>
    %488 = vector.broadcast %487 : vector<1x32xf32> to vector<8x32xf32>
    %489 = arith.subf %369, %488 : vector<8x32xf32>
    %490 = arith.mulf %489, %489 : vector<8x32xf32>
    %cst_135 = arith.constant dense<0.000000e+00> : vector<8xf32>
    %491 = vector.multi_reduction <add>, %490, %cst_135 [1] : vector<8x32xf32> to vector<8xf32>
    %492 = vector.shape_cast %491 : vector<8xf32> to vector<8x1xf32>
    %493 = arith.cmpf olt, %492, %484 : vector<8x1xf32>
    %494 = arith.select %493, %492, %484 : vector<8x1xi1>, vector<8x1xf32>
    %cst_136 = arith.constant 1.200000e+01 : f32
    %495 = vector.broadcast %cst_136 : f32 to vector<8x1xf32>
    %496 = arith.select %493, %495, %486 : vector<8x1xi1>, vector<8x1xf32>
    %497 = vector.extract_strided_slice %23 {offsets = [13, 0], sizes = [1, 32], strides = [1, 1]} : vector<16x32xf32> to vector<1x32xf32>
    %498 = vector.broadcast %497 : vector<1x32xf32> to vector<8x32xf32>
    %499 = arith.subf %369, %498 : vector<8x32xf32>
    %500 = arith.mulf %499, %499 : vector<8x32xf32>
    %cst_137 = arith.constant dense<0.000000e+00> : vector<8xf32>
    %501 = vector.multi_reduction <add>, %500, %cst_137 [1] : vector<8x32xf32> to vector<8xf32>
    %502 = vector.shape_cast %501 : vector<8xf32> to vector<8x1xf32>
    %503 = arith.cmpf olt, %502, %494 : vector<8x1xf32>
    %504 = arith.select %503, %502, %494 : vector<8x1xi1>, vector<8x1xf32>
    %cst_138 = arith.constant 1.300000e+01 : f32
    %505 = vector.broadcast %cst_138 : f32 to vector<8x1xf32>
    %506 = arith.select %503, %505, %496 : vector<8x1xi1>, vector<8x1xf32>
    %507 = vector.extract_strided_slice %23 {offsets = [14, 0], sizes = [1, 32], strides = [1, 1]} : vector<16x32xf32> to vector<1x32xf32>
    %508 = vector.broadcast %507 : vector<1x32xf32> to vector<8x32xf32>
    %509 = arith.subf %369, %508 : vector<8x32xf32>
    %510 = arith.mulf %509, %509 : vector<8x32xf32>
    %cst_139 = arith.constant dense<0.000000e+00> : vector<8xf32>
    %511 = vector.multi_reduction <add>, %510, %cst_139 [1] : vector<8x32xf32> to vector<8xf32>
    %512 = vector.shape_cast %511 : vector<8xf32> to vector<8x1xf32>
    %513 = arith.cmpf olt, %512, %504 : vector<8x1xf32>
    %514 = arith.select %513, %512, %504 : vector<8x1xi1>, vector<8x1xf32>
    %cst_140 = arith.constant 1.400000e+01 : f32
    %515 = vector.broadcast %cst_140 : f32 to vector<8x1xf32>
    %516 = arith.select %513, %515, %506 : vector<8x1xi1>, vector<8x1xf32>
    %517 = vector.extract_strided_slice %23 {offsets = [15, 0], sizes = [1, 32], strides = [1, 1]} : vector<16x32xf32> to vector<1x32xf32>
    %518 = vector.broadcast %517 : vector<1x32xf32> to vector<8x32xf32>
    %519 = arith.subf %369, %518 : vector<8x32xf32>
    %520 = arith.mulf %519, %519 : vector<8x32xf32>
    %cst_141 = arith.constant dense<0.000000e+00> : vector<8xf32>
    %521 = vector.multi_reduction <add>, %520, %cst_141 [1] : vector<8x32xf32> to vector<8xf32>
    %522 = vector.shape_cast %521 : vector<8xf32> to vector<8x1xf32>
    %523 = arith.cmpf olt, %522, %514 : vector<8x1xf32>
    %524 = arith.select %523, %522, %514 : vector<8x1xi1>, vector<8x1xf32>
    %cst_142 = arith.constant 1.500000e+01 : f32
    %525 = vector.broadcast %cst_142 : f32 to vector<8x1xf32>
    %526 = arith.select %523, %525, %516 : vector<8x1xi1>, vector<8x1xf32>
    %527 = arith.fptosi %526 : vector<8x1xf32> to vector<8x1xi32>
    %cst_143 = arith.constant 3.125000e-02 : f32
    %528 = vector.broadcast %cst_143 : f32 to vector<8x1xf32>
    %529 = arith.mulf %524, %528 : vector<8x1xf32>
    %530 = tpu.iota {dimensions = array<i32: 1>} : vector<8x128xi32>
    %c8_i32 = arith.constant 8 : i32
    %531 = vector.broadcast %c8_i32 : i32 to vector<8x1xi32>
    %532 = arith.muli %527, %531 : vector<8x1xi32>
    %533 = vector.broadcast %532 : vector<8x1xi32> to vector<8x128xi32>
    %534 = arith.cmpi sge, %530, %533 : vector<8x128xi32>
    %c8_i32_144 = arith.constant 8 : i32
    %535 = vector.broadcast %c8_i32_144 : i32 to vector<8x1xi32>
    %536 = arith.addi %532, %535 : vector<8x1xi32>
    %537 = vector.broadcast %536 : vector<8x1xi32> to vector<8x128xi32>
    %538 = arith.cmpi slt, %530, %537 : vector<8x128xi32>
    %539 = arith.andi %534, %538 : vector<8x128xi1>
    %540 = arith.extui %539 : vector<8x128xi1> to vector<8x128xi32>
    %541 = arith.sitofp %540 : vector<8x128xi32> to vector<8x128xf32>
    %cst_145 = arith.constant dense<0.000000e+00> : vector<8xf32>
    %542 = vector.multi_reduction <add>, %63, %cst_145 [1] : vector<8x32xf32> to vector<8xf32>
    %543 = vector.shape_cast %542 : vector<8xf32> to vector<8x1xf32>
    %cst_146 = arith.constant 3.200000e+01 : f32
    %544 = vector.broadcast %cst_146 : f32 to vector<8x1xf32>
    %545 = arith.divf %543, %544 : vector<8x1xf32>
    %546 = vector.broadcast %545 : vector<8x1xf32> to vector<8x32xf32>
    %547 = arith.subf %63, %546 : vector<8x32xf32>
    %548 = arith.mulf %547, %547 : vector<8x32xf32>
    %cst_147 = arith.constant dense<0.000000e+00> : vector<8xf32>
    %549 = vector.multi_reduction <add>, %548, %cst_147 [1] : vector<8x32xf32> to vector<8xf32>
    %550 = vector.shape_cast %549 : vector<8xf32> to vector<8x1xf32>
    %cst_148 = arith.constant 3.200000e+01 : f32
    %551 = vector.broadcast %cst_148 : f32 to vector<8x1xf32>
    %552 = arith.divf %550, %551 : vector<8x1xf32>
    %553 = vector.broadcast %545 : vector<8x1xf32> to vector<8x32xf32>
    %554 = arith.subf %63, %553 : vector<8x32xf32>
    %cst_149 = arith.constant 9.99999974E-6 : f32
    %555 = vector.broadcast %cst_149 : f32 to vector<8x1xf32>
    %556 = arith.addf %552, %555 : vector<8x1xf32>
    %557 = math.rsqrt %556 : vector<8x1xf32>
    %558 = vector.broadcast %557 : vector<8x1xf32> to vector<8x32xf32>
    %559 = arith.mulf %554, %558 : vector<8x32xf32>
    %560 = arith.mulf %559, %4 : vector<8x32xf32>
    %561 = arith.addf %560, %7 : vector<8x32xf32>
    %562 = arith.truncf %561 : vector<8x32xf32> to vector<8x32xbf16>
    %cst_150 = arith.constant dense<0.000000e+00> : vector<8x32xf32>
    %563 = tpu.matmul %562, %25, %cst_150 {dimension_numbers = #tpu.dot_dimension_numbers<[1], [0], [0], [1], [0, 0, 1, 1], [], []>} : vector<8x32xbf16>, vector<32x32xbf16>, vector<8x32xf32> -> vector<8x32xf32>
    %564 = arith.truncf %563 : vector<8x32xf32> to vector<8x32xbf16>
    %cst_151 = arith.constant dense<0.000000e+00> : vector<8x64xf32>
    %565 = tpu.matmul %564, %59, %cst_151 {dimension_numbers = #tpu.dot_dimension_numbers<[1], [0], [0], [1], [0, 0, 1, 1], [], []>} : vector<8x32xbf16>, vector<32x64xbf16>, vector<8x64xf32> -> vector<8x64xf32>
    %cst_152 = arith.constant 0.176776692 : f32
    %566 = vector.broadcast %cst_152 : f32 to vector<8x64xf32>
    %567 = arith.mulf %565, %566 : vector<8x64xf32>
    %cst_153 = arith.constant dense<0xFF800000> : vector<64xf32>
    %568 = vector.multi_reduction <maximumf>, %567, %cst_153 [0] : vector<8x64xf32> to vector<64xf32>
    %569 = vector.shape_cast %568 : vector<64xf32> to vector<1x64xf32>
    %570 = vector.broadcast %569 : vector<1x64xf32> to vector<8x64xf32>
    %571 = arith.subf %567, %570 : vector<8x64xf32>
    %572 = math.exp %571 : vector<8x64xf32>
    %cst_154 = arith.constant dense<0.000000e+00> : vector<64xf32>
    %573 = vector.multi_reduction <add>, %572, %cst_154 [0] : vector<8x64xf32> to vector<64xf32>
    %574 = vector.shape_cast %573 : vector<64xf32> to vector<1x64xf32>
    %575 = vector.broadcast %574 : vector<1x64xf32> to vector<8x64xf32>
    %576 = arith.divf %572, %575 : vector<8x64xf32>
    %cst_155 = arith.constant 9.99999993E-9 : f32
    %577 = vector.broadcast %cst_155 : f32 to vector<8x64xf32>
    %578 = arith.addf %576, %577 : vector<8x64xf32>
    %cst_156 = arith.constant dense<0.000000e+00> : vector<8xf32>
    %579 = vector.multi_reduction <add>, %578, %cst_156 [1] : vector<8x64xf32> to vector<8xf32>
    %580 = vector.shape_cast %579 : vector<8xf32> to vector<8x1xf32>
    %581 = vector.broadcast %580 : vector<8x1xf32> to vector<8x64xf32>
    %582 = arith.divf %578, %581 : vector<8x64xf32>
    %583 = arith.truncf %582 : vector<8x64xf32> to vector<8x64xbf16>
    %cst_157 = arith.constant dense<0.000000e+00> : vector<8x32xf32>
    %584 = tpu.matmul %583, %61, %cst_157 {dimension_numbers = #tpu.dot_dimension_numbers<[1], [0], [0], [1], [0, 0, 1, 1], [], []>} : vector<8x64xbf16>, vector<64x32xbf16>, vector<8x32xf32> -> vector<8x32xf32>
    %585 = tpu.concatenate %584, %63 in 1 : vector<8x32xf32>, vector<8x32xf32> -> vector<8x64xf32>
    %586 = arith.truncf %585 : vector<8x64xf32> to vector<8x64xbf16>
    %cst_158 = arith.constant dense<0.000000e+00> : vector<8x128xf32>
    %587 = tpu.matmul %586, %26, %cst_158 {dimension_numbers = #tpu.dot_dimension_numbers<[1], [0], [0], [1], [0, 0, 1, 1], [], []>} : vector<8x64xbf16>, vector<64x128xbf16>, vector<8x128xf32> -> vector<8x128xf32>
    %588 = arith.addf %587, %19 : vector<8x128xf32>
    %589 = vector.extract_strided_slice %588 {offsets = [0, 0], sizes = [8, 32], strides = [1, 1]} : vector<8x128xf32> to vector<8x32xf32>
    %590 = arith.negf %589 : vector<8x32xf32>
    %591 = math.exp %590 : vector<8x32xf32>
    %cst_159 = arith.constant 1.000000e+00 : f32
    %592 = vector.broadcast %cst_159 : f32 to vector<8x32xf32>
    %593 = arith.addf %592, %591 : vector<8x32xf32>
    %594 = arith.divf %592, %593 : vector<8x32xf32>
    %595 = vector.extract_strided_slice %588 {offsets = [0, 32], sizes = [8, 32], strides = [1, 1]} : vector<8x128xf32> to vector<8x32xf32>
    %596 = arith.negf %595 : vector<8x32xf32>
    %597 = math.exp %596 : vector<8x32xf32>
    %cst_160 = arith.constant 1.000000e+00 : f32
    %598 = vector.broadcast %cst_160 : f32 to vector<8x32xf32>
    %599 = arith.addf %598, %597 : vector<8x32xf32>
    %600 = arith.divf %598, %599 : vector<8x32xf32>
    %601 = vector.extract_strided_slice %588 {offsets = [0, 64], sizes = [8, 32], strides = [1, 1]} : vector<8x128xf32> to vector<8x32xf32>
    %cst_161 = arith.constant 1.000000e+00 : f32
    %602 = vector.broadcast %cst_161 : f32 to vector<8x32xf32>
    %603 = arith.subf %602, %594 : vector<8x32xf32>
    %604 = vector.extract_strided_slice %588 {offsets = [0, 96], sizes = [8, 32], strides = [1, 1]} : vector<8x128xf32> to vector<8x32xf32>
    %605 = arith.mulf %603, %604 : vector<8x32xf32>
    %606 = arith.subf %601, %605 : vector<8x32xf32>
    %607 = math.tanh %606 : vector<8x32xf32>
    %cst_162 = arith.constant 1.000000e+00 : f32
    %608 = vector.broadcast %cst_162 : f32 to vector<8x32xf32>
    %609 = arith.subf %608, %600 : vector<8x32xf32>
    %610 = arith.mulf %609, %607 : vector<8x32xf32>
    %611 = arith.mulf %600, %63 : vector<8x32xf32>
    %612 = arith.addf %610, %611 : vector<8x32xf32>
    %cst_163 = arith.constant dense<0.000000e+00> : vector<8xf32>
    %613 = vector.multi_reduction <add>, %612, %cst_163 [1] : vector<8x32xf32> to vector<8xf32>
    %614 = vector.shape_cast %613 : vector<8xf32> to vector<8x1xf32>
    %cst_164 = arith.constant 3.200000e+01 : f32
    %615 = vector.broadcast %cst_164 : f32 to vector<8x1xf32>
    %616 = arith.divf %614, %615 : vector<8x1xf32>
    %617 = vector.broadcast %616 : vector<8x1xf32> to vector<8x32xf32>
    %618 = arith.subf %612, %617 : vector<8x32xf32>
    %619 = arith.mulf %618, %618 : vector<8x32xf32>
    %cst_165 = arith.constant dense<0.000000e+00> : vector<8xf32>
    %620 = vector.multi_reduction <add>, %619, %cst_165 [1] : vector<8x32xf32> to vector<8xf32>
    %621 = vector.shape_cast %620 : vector<8xf32> to vector<8x1xf32>
    %cst_166 = arith.constant 3.200000e+01 : f32
    %622 = vector.broadcast %cst_166 : f32 to vector<8x1xf32>
    %623 = arith.divf %621, %622 : vector<8x1xf32>
    %624 = vector.broadcast %616 : vector<8x1xf32> to vector<8x32xf32>
    %625 = arith.subf %612, %624 : vector<8x32xf32>
    %cst_167 = arith.constant 9.99999974E-6 : f32
    %626 = vector.broadcast %cst_167 : f32 to vector<8x1xf32>
    %627 = arith.addf %623, %626 : vector<8x1xf32>
    %628 = math.rsqrt %627 : vector<8x1xf32>
    %629 = vector.broadcast %628 : vector<8x1xf32> to vector<8x32xf32>
    %630 = arith.mulf %625, %629 : vector<8x32xf32>
    %631 = arith.mulf %630, %10 : vector<8x32xf32>
    %632 = arith.addf %631, %13 : vector<8x32xf32>
    %633 = arith.truncf %632 : vector<8x32xf32> to vector<8x32xbf16>
    %cst_168 = arith.constant dense<0.000000e+00> : vector<8x256xf32>
    %634 = tpu.matmul %633, %27, %cst_168 {dimension_numbers = #tpu.dot_dimension_numbers<[1], [0], [0], [1], [0, 0, 1, 1], [], []>} : vector<8x32xbf16>, vector<32x256xbf16>, vector<8x256xf32> -> vector<8x256xf32>
    %635 = vector.extract_strided_slice %634 {offsets = [0, 128], sizes = [8, 128], strides = [1, 1]} : vector<8x256xf32> to vector<8x128xf32>
    %636 = arith.mulf %635, %541 : vector<8x128xf32>
    %637 = arith.truncf %636 : vector<8x128xf32> to vector<8x128xbf16>
    %638 = vector.extract_strided_slice %634 {offsets = [0, 0], sizes = [8, 128], strides = [1, 1]} : vector<8x256xf32> to vector<8x128xf32>
    %639 = arith.addf %638, %22 : vector<8x128xf32>
    %cst_169 = arith.constant dense<0.000000e+00> : vector<8x128xf32>
    %640 = tpu.matmul %637, %28, %cst_169 {dimension_numbers = #tpu.dot_dimension_numbers<[1], [0], [0], [1], [0, 0, 1, 1], [], []>} : vector<8x128xbf16>, vector<128x128xbf16>, vector<8x128xf32> -> vector<8x128xf32>
    %641 = arith.addf %639, %640 : vector<8x128xf32>
    %cst_170 = arith.constant 0.000000e+00 : f32
    %642 = vector.broadcast %cst_170 : f32 to vector<8x128xf32>
    %643 = arith.maximumf %641, %642 : vector<8x128xf32>
    %644 = arith.truncf %643 : vector<8x128xf32> to vector<8x128xbf16>
    %cst_171 = arith.constant dense<0.000000e+00> : vector<8x160xf32>
    %645 = tpu.matmul %644, %29, %cst_171 {dimension_numbers = #tpu.dot_dimension_numbers<[1], [0], [0], [1], [0, 0, 1, 1], [], []>} : vector<8x128xbf16>, vector<128x160xbf16>, vector<8x160xf32> -> vector<8x160xf32>
    %646 = vector.extract_strided_slice %645 {offsets = [0, 32], sizes = [8, 128], strides = [1, 1]} : vector<8x160xf32> to vector<8x128xf32>
    %647 = arith.mulf %646, %541 : vector<8x128xf32>
    %648 = arith.truncf %647 : vector<8x128xf32> to vector<8x128xbf16>
    %649 = vector.extract_strided_slice %645 {offsets = [0, 0], sizes = [8, 32], strides = [1, 1]} : vector<8x160xf32> to vector<8x32xf32>
    %650 = arith.addf %649, %16 : vector<8x32xf32>
    %cst_172 = arith.constant dense<0.000000e+00> : vector<8x32xf32>
    %651 = tpu.matmul %648, %30, %cst_172 {dimension_numbers = #tpu.dot_dimension_numbers<[1], [0], [0], [1], [0, 0, 1, 1], [], []>} : vector<8x128xbf16>, vector<128x32xbf16>, vector<8x32xf32> -> vector<8x32xf32>
    %652 = arith.addf %650, %651 : vector<8x32xf32>
    %653 = arith.addf %652, %612 : vector<8x32xf32>
    %cst_173 = arith.constant dense<0.000000e+00> : vector<8xf32>
    %654 = vector.multi_reduction <add>, %653, %cst_173 [1] : vector<8x32xf32> to vector<8xf32>
    %655 = vector.shape_cast %654 : vector<8xf32> to vector<8x1xf32>
    %cst_174 = arith.constant 3.200000e+01 : f32
    %656 = vector.broadcast %cst_174 : f32 to vector<8x1xf32>
    %657 = arith.divf %655, %656 : vector<8x1xf32>
    %658 = vector.broadcast %657 : vector<8x1xf32> to vector<8x32xf32>
    %659 = arith.subf %653, %658 : vector<8x32xf32>
    %660 = arith.mulf %659, %659 : vector<8x32xf32>
    %cst_175 = arith.constant dense<0.000000e+00> : vector<8xf32>
    %661 = vector.multi_reduction <add>, %660, %cst_175 [1] : vector<8x32xf32> to vector<8xf32>
    %662 = vector.shape_cast %661 : vector<8xf32> to vector<8x1xf32>
    %cst_176 = arith.constant 3.200000e+01 : f32
    %663 = vector.broadcast %cst_176 : f32 to vector<8x1xf32>
    %664 = arith.divf %662, %663 : vector<8x1xf32>
    %665 = vector.broadcast %657 : vector<8x1xf32> to vector<8x32xf32>
    %666 = arith.subf %653, %665 : vector<8x32xf32>
    %cst_177 = arith.constant 9.99999974E-6 : f32
    %667 = vector.broadcast %cst_177 : f32 to vector<8x1xf32>
    %668 = arith.addf %664, %667 : vector<8x1xf32>
    %669 = math.rsqrt %668 : vector<8x1xf32>
    %670 = vector.broadcast %669 : vector<8x1xf32> to vector<8x32xf32>
    %671 = arith.mulf %666, %670 : vector<8x32xf32>
    %672 = arith.mulf %671, %4 : vector<8x32xf32>
    %673 = arith.addf %672, %7 : vector<8x32xf32>
    %674 = arith.truncf %673 : vector<8x32xf32> to vector<8x32xbf16>
    %cst_178 = arith.constant dense<0.000000e+00> : vector<8x32xf32>
    %675 = tpu.matmul %674, %25, %cst_178 {dimension_numbers = #tpu.dot_dimension_numbers<[1], [0], [0], [1], [0, 0, 1, 1], [], []>} : vector<8x32xbf16>, vector<32x32xbf16>, vector<8x32xf32> -> vector<8x32xf32>
    %676 = arith.truncf %675 : vector<8x32xf32> to vector<8x32xbf16>
    %cst_179 = arith.constant dense<0.000000e+00> : vector<8x64xf32>
    %677 = tpu.matmul %676, %59, %cst_179 {dimension_numbers = #tpu.dot_dimension_numbers<[1], [0], [0], [1], [0, 0, 1, 1], [], []>} : vector<8x32xbf16>, vector<32x64xbf16>, vector<8x64xf32> -> vector<8x64xf32>
    %cst_180 = arith.constant 0.176776692 : f32
    %678 = vector.broadcast %cst_180 : f32 to vector<8x64xf32>
    %679 = arith.mulf %677, %678 : vector<8x64xf32>
    %cst_181 = arith.constant dense<0xFF800000> : vector<64xf32>
    %680 = vector.multi_reduction <maximumf>, %679, %cst_181 [0] : vector<8x64xf32> to vector<64xf32>
    %681 = vector.shape_cast %680 : vector<64xf32> to vector<1x64xf32>
    %682 = vector.broadcast %681 : vector<1x64xf32> to vector<8x64xf32>
    %683 = arith.subf %679, %682 : vector<8x64xf32>
    %684 = math.exp %683 : vector<8x64xf32>
    %cst_182 = arith.constant dense<0.000000e+00> : vector<64xf32>
    %685 = vector.multi_reduction <add>, %684, %cst_182 [0] : vector<8x64xf32> to vector<64xf32>
    %686 = vector.shape_cast %685 : vector<64xf32> to vector<1x64xf32>
    %687 = vector.broadcast %686 : vector<1x64xf32> to vector<8x64xf32>
    %688 = arith.divf %684, %687 : vector<8x64xf32>
    %cst_183 = arith.constant 9.99999993E-9 : f32
    %689 = vector.broadcast %cst_183 : f32 to vector<8x64xf32>
    %690 = arith.addf %688, %689 : vector<8x64xf32>
    %cst_184 = arith.constant dense<0.000000e+00> : vector<8xf32>
    %691 = vector.multi_reduction <add>, %690, %cst_184 [1] : vector<8x64xf32> to vector<8xf32>
    %692 = vector.shape_cast %691 : vector<8xf32> to vector<8x1xf32>
    %693 = vector.broadcast %692 : vector<8x1xf32> to vector<8x64xf32>
    %694 = arith.divf %690, %693 : vector<8x64xf32>
    %695 = arith.truncf %694 : vector<8x64xf32> to vector<8x64xbf16>
    %cst_185 = arith.constant dense<0.000000e+00> : vector<8x32xf32>
    %696 = tpu.matmul %695, %61, %cst_185 {dimension_numbers = #tpu.dot_dimension_numbers<[1], [0], [0], [1], [0, 0, 1, 1], [], []>} : vector<8x64xbf16>, vector<64x32xbf16>, vector<8x32xf32> -> vector<8x32xf32>
    %697 = tpu.concatenate %696, %653 in 1 : vector<8x32xf32>, vector<8x32xf32> -> vector<8x64xf32>
    %698 = arith.truncf %697 : vector<8x64xf32> to vector<8x64xbf16>
    %cst_186 = arith.constant dense<0.000000e+00> : vector<8x128xf32>
    %699 = tpu.matmul %698, %26, %cst_186 {dimension_numbers = #tpu.dot_dimension_numbers<[1], [0], [0], [1], [0, 0, 1, 1], [], []>} : vector<8x64xbf16>, vector<64x128xbf16>, vector<8x128xf32> -> vector<8x128xf32>
    %700 = arith.addf %699, %19 : vector<8x128xf32>
    %701 = vector.extract_strided_slice %700 {offsets = [0, 0], sizes = [8, 32], strides = [1, 1]} : vector<8x128xf32> to vector<8x32xf32>
    %702 = arith.negf %701 : vector<8x32xf32>
    %703 = math.exp %702 : vector<8x32xf32>
    %cst_187 = arith.constant 1.000000e+00 : f32
    %704 = vector.broadcast %cst_187 : f32 to vector<8x32xf32>
    %705 = arith.addf %704, %703 : vector<8x32xf32>
    %706 = arith.divf %704, %705 : vector<8x32xf32>
    %707 = vector.extract_strided_slice %700 {offsets = [0, 32], sizes = [8, 32], strides = [1, 1]} : vector<8x128xf32> to vector<8x32xf32>
    %708 = arith.negf %707 : vector<8x32xf32>
    %709 = math.exp %708 : vector<8x32xf32>
    %cst_188 = arith.constant 1.000000e+00 : f32
    %710 = vector.broadcast %cst_188 : f32 to vector<8x32xf32>
    %711 = arith.addf %710, %709 : vector<8x32xf32>
    %712 = arith.divf %710, %711 : vector<8x32xf32>
    %713 = vector.extract_strided_slice %700 {offsets = [0, 64], sizes = [8, 32], strides = [1, 1]} : vector<8x128xf32> to vector<8x32xf32>
    %cst_189 = arith.constant 1.000000e+00 : f32
    %714 = vector.broadcast %cst_189 : f32 to vector<8x32xf32>
    %715 = arith.subf %714, %706 : vector<8x32xf32>
    %716 = vector.extract_strided_slice %700 {offsets = [0, 96], sizes = [8, 32], strides = [1, 1]} : vector<8x128xf32> to vector<8x32xf32>
    %717 = arith.mulf %715, %716 : vector<8x32xf32>
    %718 = arith.subf %713, %717 : vector<8x32xf32>
    %719 = math.tanh %718 : vector<8x32xf32>
    %cst_190 = arith.constant 1.000000e+00 : f32
    %720 = vector.broadcast %cst_190 : f32 to vector<8x32xf32>
    %721 = arith.subf %720, %712 : vector<8x32xf32>
    %722 = arith.mulf %721, %719 : vector<8x32xf32>
    %723 = arith.mulf %712, %653 : vector<8x32xf32>
    %724 = arith.addf %722, %723 : vector<8x32xf32>
    %cst_191 = arith.constant dense<0.000000e+00> : vector<8xf32>
    %725 = vector.multi_reduction <add>, %724, %cst_191 [1] : vector<8x32xf32> to vector<8xf32>
    %726 = vector.shape_cast %725 : vector<8xf32> to vector<8x1xf32>
    %cst_192 = arith.constant 3.200000e+01 : f32
    %727 = vector.broadcast %cst_192 : f32 to vector<8x1xf32>
    %728 = arith.divf %726, %727 : vector<8x1xf32>
    %729 = vector.broadcast %728 : vector<8x1xf32> to vector<8x32xf32>
    %730 = arith.subf %724, %729 : vector<8x32xf32>
    %731 = arith.mulf %730, %730 : vector<8x32xf32>
    %cst_193 = arith.constant dense<0.000000e+00> : vector<8xf32>
    %732 = vector.multi_reduction <add>, %731, %cst_193 [1] : vector<8x32xf32> to vector<8xf32>
    %733 = vector.shape_cast %732 : vector<8xf32> to vector<8x1xf32>
    %cst_194 = arith.constant 3.200000e+01 : f32
    %734 = vector.broadcast %cst_194 : f32 to vector<8x1xf32>
    %735 = arith.divf %733, %734 : vector<8x1xf32>
    %736 = vector.broadcast %728 : vector<8x1xf32> to vector<8x32xf32>
    %737 = arith.subf %724, %736 : vector<8x32xf32>
    %cst_195 = arith.constant 9.99999974E-6 : f32
    %738 = vector.broadcast %cst_195 : f32 to vector<8x1xf32>
    %739 = arith.addf %735, %738 : vector<8x1xf32>
    %740 = math.rsqrt %739 : vector<8x1xf32>
    %741 = vector.broadcast %740 : vector<8x1xf32> to vector<8x32xf32>
    %742 = arith.mulf %737, %741 : vector<8x32xf32>
    %743 = arith.mulf %742, %10 : vector<8x32xf32>
    %744 = arith.addf %743, %13 : vector<8x32xf32>
    %745 = arith.truncf %744 : vector<8x32xf32> to vector<8x32xbf16>
    %cst_196 = arith.constant dense<0.000000e+00> : vector<8x256xf32>
    %746 = tpu.matmul %745, %27, %cst_196 {dimension_numbers = #tpu.dot_dimension_numbers<[1], [0], [0], [1], [0, 0, 1, 1], [], []>} : vector<8x32xbf16>, vector<32x256xbf16>, vector<8x256xf32> -> vector<8x256xf32>
    %747 = vector.extract_strided_slice %746 {offsets = [0, 128], sizes = [8, 128], strides = [1, 1]} : vector<8x256xf32> to vector<8x128xf32>
    %748 = arith.mulf %747, %541 : vector<8x128xf32>
    %749 = arith.truncf %748 : vector<8x128xf32> to vector<8x128xbf16>
    %750 = vector.extract_strided_slice %746 {offsets = [0, 0], sizes = [8, 128], strides = [1, 1]} : vector<8x256xf32> to vector<8x128xf32>
    %751 = arith.addf %750, %22 : vector<8x128xf32>
    %cst_197 = arith.constant dense<0.000000e+00> : vector<8x128xf32>
    %752 = tpu.matmul %749, %28, %cst_197 {dimension_numbers = #tpu.dot_dimension_numbers<[1], [0], [0], [1], [0, 0, 1, 1], [], []>} : vector<8x128xbf16>, vector<128x128xbf16>, vector<8x128xf32> -> vector<8x128xf32>
    %753 = arith.addf %751, %752 : vector<8x128xf32>
    %cst_198 = arith.constant 0.000000e+00 : f32
    %754 = vector.broadcast %cst_198 : f32 to vector<8x128xf32>
    %755 = arith.maximumf %753, %754 : vector<8x128xf32>
    %756 = arith.truncf %755 : vector<8x128xf32> to vector<8x128xbf16>
    %cst_199 = arith.constant dense<0.000000e+00> : vector<8x160xf32>
    %757 = tpu.matmul %756, %29, %cst_199 {dimension_numbers = #tpu.dot_dimension_numbers<[1], [0], [0], [1], [0, 0, 1, 1], [], []>} : vector<8x128xbf16>, vector<128x160xbf16>, vector<8x160xf32> -> vector<8x160xf32>
    %758 = vector.extract_strided_slice %757 {offsets = [0, 32], sizes = [8, 128], strides = [1, 1]} : vector<8x160xf32> to vector<8x128xf32>
    %759 = arith.mulf %758, %541 : vector<8x128xf32>
    %760 = arith.truncf %759 : vector<8x128xf32> to vector<8x128xbf16>
    %761 = vector.extract_strided_slice %757 {offsets = [0, 0], sizes = [8, 32], strides = [1, 1]} : vector<8x160xf32> to vector<8x32xf32>
    %762 = arith.addf %761, %16 : vector<8x32xf32>
    %cst_200 = arith.constant dense<0.000000e+00> : vector<8x32xf32>
    %763 = tpu.matmul %760, %30, %cst_200 {dimension_numbers = #tpu.dot_dimension_numbers<[1], [0], [0], [1], [0, 0, 1, 1], [], []>} : vector<8x128xbf16>, vector<128x32xbf16>, vector<8x32xf32> -> vector<8x32xf32>
    %764 = arith.addf %762, %763 : vector<8x32xf32>
    %765 = arith.addf %764, %724 : vector<8x32xf32>
    %cst_201 = arith.constant dense<0.000000e+00> : vector<8xf32>
    %766 = vector.multi_reduction <add>, %765, %cst_201 [1] : vector<8x32xf32> to vector<8xf32>
    %767 = vector.shape_cast %766 : vector<8xf32> to vector<8x1xf32>
    %cst_202 = arith.constant 3.200000e+01 : f32
    %768 = vector.broadcast %cst_202 : f32 to vector<8x1xf32>
    %769 = arith.divf %767, %768 : vector<8x1xf32>
    %770 = vector.broadcast %769 : vector<8x1xf32> to vector<8x32xf32>
    %771 = arith.subf %765, %770 : vector<8x32xf32>
    %772 = arith.mulf %771, %771 : vector<8x32xf32>
    %cst_203 = arith.constant dense<0.000000e+00> : vector<8xf32>
    %773 = vector.multi_reduction <add>, %772, %cst_203 [1] : vector<8x32xf32> to vector<8xf32>
    %774 = vector.shape_cast %773 : vector<8xf32> to vector<8x1xf32>
    %cst_204 = arith.constant 3.200000e+01 : f32
    %775 = vector.broadcast %cst_204 : f32 to vector<8x1xf32>
    %776 = arith.divf %774, %775 : vector<8x1xf32>
    %777 = vector.broadcast %769 : vector<8x1xf32> to vector<8x32xf32>
    %778 = arith.subf %765, %777 : vector<8x32xf32>
    %cst_205 = arith.constant 9.99999974E-6 : f32
    %779 = vector.broadcast %cst_205 : f32 to vector<8x1xf32>
    %780 = arith.addf %776, %779 : vector<8x1xf32>
    %781 = math.rsqrt %780 : vector<8x1xf32>
    %782 = vector.broadcast %781 : vector<8x1xf32> to vector<8x32xf32>
    %783 = arith.mulf %778, %782 : vector<8x32xf32>
    %784 = arith.mulf %783, %4 : vector<8x32xf32>
    %785 = arith.addf %784, %7 : vector<8x32xf32>
    %786 = arith.truncf %785 : vector<8x32xf32> to vector<8x32xbf16>
    %cst_206 = arith.constant dense<0.000000e+00> : vector<8x32xf32>
    %787 = tpu.matmul %786, %25, %cst_206 {dimension_numbers = #tpu.dot_dimension_numbers<[1], [0], [0], [1], [0, 0, 1, 1], [], []>} : vector<8x32xbf16>, vector<32x32xbf16>, vector<8x32xf32> -> vector<8x32xf32>
    %788 = arith.truncf %787 : vector<8x32xf32> to vector<8x32xbf16>
    %cst_207 = arith.constant dense<0.000000e+00> : vector<8x64xf32>
    %789 = tpu.matmul %788, %59, %cst_207 {dimension_numbers = #tpu.dot_dimension_numbers<[1], [0], [0], [1], [0, 0, 1, 1], [], []>} : vector<8x32xbf16>, vector<32x64xbf16>, vector<8x64xf32> -> vector<8x64xf32>
    %cst_208 = arith.constant 0.176776692 : f32
    %790 = vector.broadcast %cst_208 : f32 to vector<8x64xf32>
    %791 = arith.mulf %789, %790 : vector<8x64xf32>
    %cst_209 = arith.constant dense<0xFF800000> : vector<64xf32>
    %792 = vector.multi_reduction <maximumf>, %791, %cst_209 [0] : vector<8x64xf32> to vector<64xf32>
    %793 = vector.shape_cast %792 : vector<64xf32> to vector<1x64xf32>
    %794 = vector.broadcast %793 : vector<1x64xf32> to vector<8x64xf32>
    %795 = arith.subf %791, %794 : vector<8x64xf32>
    %796 = math.exp %795 : vector<8x64xf32>
    %cst_210 = arith.constant dense<0.000000e+00> : vector<64xf32>
    %797 = vector.multi_reduction <add>, %796, %cst_210 [0] : vector<8x64xf32> to vector<64xf32>
    %798 = vector.shape_cast %797 : vector<64xf32> to vector<1x64xf32>
    %799 = vector.broadcast %798 : vector<1x64xf32> to vector<8x64xf32>
    %800 = arith.divf %796, %799 : vector<8x64xf32>
    %cst_211 = arith.constant 9.99999993E-9 : f32
    %801 = vector.broadcast %cst_211 : f32 to vector<8x64xf32>
    %802 = arith.addf %800, %801 : vector<8x64xf32>
    %cst_212 = arith.constant dense<0.000000e+00> : vector<8xf32>
    %803 = vector.multi_reduction <add>, %802, %cst_212 [1] : vector<8x64xf32> to vector<8xf32>
    %804 = vector.shape_cast %803 : vector<8xf32> to vector<8x1xf32>
    %805 = vector.broadcast %804 : vector<8x1xf32> to vector<8x64xf32>
    %806 = arith.divf %802, %805 : vector<8x64xf32>
    %807 = arith.truncf %806 : vector<8x64xf32> to vector<8x64xbf16>
    %cst_213 = arith.constant dense<0.000000e+00> : vector<8x32xf32>
    %808 = tpu.matmul %807, %61, %cst_213 {dimension_numbers = #tpu.dot_dimension_numbers<[1], [0], [0], [1], [0, 0, 1, 1], [], []>} : vector<8x64xbf16>, vector<64x32xbf16>, vector<8x32xf32> -> vector<8x32xf32>
    %809 = tpu.concatenate %808, %765 in 1 : vector<8x32xf32>, vector<8x32xf32> -> vector<8x64xf32>
    %810 = arith.truncf %809 : vector<8x64xf32> to vector<8x64xbf16>
    %cst_214 = arith.constant dense<0.000000e+00> : vector<8x128xf32>
    %811 = tpu.matmul %810, %26, %cst_214 {dimension_numbers = #tpu.dot_dimension_numbers<[1], [0], [0], [1], [0, 0, 1, 1], [], []>} : vector<8x64xbf16>, vector<64x128xbf16>, vector<8x128xf32> -> vector<8x128xf32>
    %812 = arith.addf %811, %19 : vector<8x128xf32>
    %813 = vector.extract_strided_slice %812 {offsets = [0, 0], sizes = [8, 32], strides = [1, 1]} : vector<8x128xf32> to vector<8x32xf32>
    %814 = arith.negf %813 : vector<8x32xf32>
    %815 = math.exp %814 : vector<8x32xf32>
    %cst_215 = arith.constant 1.000000e+00 : f32
    %816 = vector.broadcast %cst_215 : f32 to vector<8x32xf32>
    %817 = arith.addf %816, %815 : vector<8x32xf32>
    %818 = arith.divf %816, %817 : vector<8x32xf32>
    %819 = vector.extract_strided_slice %812 {offsets = [0, 32], sizes = [8, 32], strides = [1, 1]} : vector<8x128xf32> to vector<8x32xf32>
    %820 = arith.negf %819 : vector<8x32xf32>
    %821 = math.exp %820 : vector<8x32xf32>
    %cst_216 = arith.constant 1.000000e+00 : f32
    %822 = vector.broadcast %cst_216 : f32 to vector<8x32xf32>
    %823 = arith.addf %822, %821 : vector<8x32xf32>
    %824 = arith.divf %822, %823 : vector<8x32xf32>
    %825 = vector.extract_strided_slice %812 {offsets = [0, 64], sizes = [8, 32], strides = [1, 1]} : vector<8x128xf32> to vector<8x32xf32>
    %cst_217 = arith.constant 1.000000e+00 : f32
    %826 = vector.broadcast %cst_217 : f32 to vector<8x32xf32>
    %827 = arith.subf %826, %818 : vector<8x32xf32>
    %828 = vector.extract_strided_slice %812 {offsets = [0, 96], sizes = [8, 32], strides = [1, 1]} : vector<8x128xf32> to vector<8x32xf32>
    %829 = arith.mulf %827, %828 : vector<8x32xf32>
    %830 = arith.subf %825, %829 : vector<8x32xf32>
    %831 = math.tanh %830 : vector<8x32xf32>
    %cst_218 = arith.constant 1.000000e+00 : f32
    %832 = vector.broadcast %cst_218 : f32 to vector<8x32xf32>
    %833 = arith.subf %832, %824 : vector<8x32xf32>
    %834 = arith.mulf %833, %831 : vector<8x32xf32>
    %835 = arith.mulf %824, %765 : vector<8x32xf32>
    %836 = arith.addf %834, %835 : vector<8x32xf32>
    %cst_219 = arith.constant dense<0.000000e+00> : vector<8xf32>
    %837 = vector.multi_reduction <add>, %836, %cst_219 [1] : vector<8x32xf32> to vector<8xf32>
    %838 = vector.shape_cast %837 : vector<8xf32> to vector<8x1xf32>
    %cst_220 = arith.constant 3.200000e+01 : f32
    %839 = vector.broadcast %cst_220 : f32 to vector<8x1xf32>
    %840 = arith.divf %838, %839 : vector<8x1xf32>
    %841 = vector.broadcast %840 : vector<8x1xf32> to vector<8x32xf32>
    %842 = arith.subf %836, %841 : vector<8x32xf32>
    %843 = arith.mulf %842, %842 : vector<8x32xf32>
    %cst_221 = arith.constant dense<0.000000e+00> : vector<8xf32>
    %844 = vector.multi_reduction <add>, %843, %cst_221 [1] : vector<8x32xf32> to vector<8xf32>
    %845 = vector.shape_cast %844 : vector<8xf32> to vector<8x1xf32>
    %cst_222 = arith.constant 3.200000e+01 : f32
    %846 = vector.broadcast %cst_222 : f32 to vector<8x1xf32>
    %847 = arith.divf %845, %846 : vector<8x1xf32>
    %848 = vector.broadcast %840 : vector<8x1xf32> to vector<8x32xf32>
    %849 = arith.subf %836, %848 : vector<8x32xf32>
    %cst_223 = arith.constant 9.99999974E-6 : f32
    %850 = vector.broadcast %cst_223 : f32 to vector<8x1xf32>
    %851 = arith.addf %847, %850 : vector<8x1xf32>
    %852 = math.rsqrt %851 : vector<8x1xf32>
    %853 = vector.broadcast %852 : vector<8x1xf32> to vector<8x32xf32>
    %854 = arith.mulf %849, %853 : vector<8x32xf32>
    %855 = arith.mulf %854, %10 : vector<8x32xf32>
    %856 = arith.addf %855, %13 : vector<8x32xf32>
    %857 = arith.truncf %856 : vector<8x32xf32> to vector<8x32xbf16>
    %cst_224 = arith.constant dense<0.000000e+00> : vector<8x256xf32>
    %858 = tpu.matmul %857, %27, %cst_224 {dimension_numbers = #tpu.dot_dimension_numbers<[1], [0], [0], [1], [0, 0, 1, 1], [], []>} : vector<8x32xbf16>, vector<32x256xbf16>, vector<8x256xf32> -> vector<8x256xf32>
    %859 = vector.extract_strided_slice %858 {offsets = [0, 128], sizes = [8, 128], strides = [1, 1]} : vector<8x256xf32> to vector<8x128xf32>
    %860 = arith.mulf %859, %541 : vector<8x128xf32>
    %861 = arith.truncf %860 : vector<8x128xf32> to vector<8x128xbf16>
    %862 = vector.extract_strided_slice %858 {offsets = [0, 0], sizes = [8, 128], strides = [1, 1]} : vector<8x256xf32> to vector<8x128xf32>
    %863 = arith.addf %862, %22 : vector<8x128xf32>
    %cst_225 = arith.constant dense<0.000000e+00> : vector<8x128xf32>
    %864 = tpu.matmul %861, %28, %cst_225 {dimension_numbers = #tpu.dot_dimension_numbers<[1], [0], [0], [1], [0, 0, 1, 1], [], []>} : vector<8x128xbf16>, vector<128x128xbf16>, vector<8x128xf32> -> vector<8x128xf32>
    %865 = arith.addf %863, %864 : vector<8x128xf32>
    %cst_226 = arith.constant 0.000000e+00 : f32
    %866 = vector.broadcast %cst_226 : f32 to vector<8x128xf32>
    %867 = arith.maximumf %865, %866 : vector<8x128xf32>
    %868 = arith.truncf %867 : vector<8x128xf32> to vector<8x128xbf16>
    %cst_227 = arith.constant dense<0.000000e+00> : vector<8x160xf32>
    %869 = tpu.matmul %868, %29, %cst_227 {dimension_numbers = #tpu.dot_dimension_numbers<[1], [0], [0], [1], [0, 0, 1, 1], [], []>} : vector<8x128xbf16>, vector<128x160xbf16>, vector<8x160xf32> -> vector<8x160xf32>
    %870 = vector.extract_strided_slice %869 {offsets = [0, 32], sizes = [8, 128], strides = [1, 1]} : vector<8x160xf32> to vector<8x128xf32>
    %871 = arith.mulf %870, %541 : vector<8x128xf32>
    %872 = arith.truncf %871 : vector<8x128xf32> to vector<8x128xbf16>
    %873 = vector.extract_strided_slice %869 {offsets = [0, 0], sizes = [8, 32], strides = [1, 1]} : vector<8x160xf32> to vector<8x32xf32>
    %874 = arith.addf %873, %16 : vector<8x32xf32>
    %cst_228 = arith.constant dense<0.000000e+00> : vector<8x32xf32>
    %875 = tpu.matmul %872, %30, %cst_228 {dimension_numbers = #tpu.dot_dimension_numbers<[1], [0], [0], [1], [0, 0, 1, 1], [], []>} : vector<8x128xbf16>, vector<128x32xbf16>, vector<8x32xf32> -> vector<8x32xf32>
    %876 = arith.addf %874, %875 : vector<8x32xf32>
    %877 = arith.addf %876, %836 : vector<8x32xf32>
    %878 = vector.shape_cast %526 : vector<8x1xf32> to vector<8x1xf32>
    %879 = vector.broadcast %878 : vector<8x1xf32> to vector<8x16xf32>
    %880 = vector.shape_cast %529 : vector<8x1xf32> to vector<8x1xf32>
    %881 = vector.broadcast %880 : vector<8x1xf32> to vector<8x16xf32>
    %882 = tpu.concatenate %877, %800, %879, %881 in 1 : vector<8x32xf32>, vector<8x64xf32>, vector<8x16xf32>, vector<8x16xf32> -> vector<8x128xf32>
    %cst_229 = arith.constant 0.000000e+00 : f32
    %883 = vector.broadcast %cst_229 : f32 to vector<8x32xf32>
    %884 = tpu.concatenate %369, %302, %883 in 1 : vector<8x32xf32>, vector<8x64xf32>, vector<8x32xf32> -> vector<8x128xf32>
    %885 = tpu.concatenate %882, %884 in 0 : vector<8x128xf32>, vector<8x128xf32> -> vector<16x128xf32>
    %c0_230 = arith.constant 0 : index
    %c0_231 = arith.constant 0 : index
    %c0_232 = arith.constant 0 : index
    %886 = vector.load %arg5[%c0_230, %c0_231, %c0_232] : memref<1x16x128xf32, #tpu.memory_space<vmem>>, vector<1x16x128xf32>
    %887 = vector.shape_cast %886 : vector<1x16x128xf32> to vector<16x128xf32>
    %888 = vector.shape_cast %885 : vector<16x128xf32> to vector<1x16x128xf32>
    tpu.vector_store %arg5[%c0_230, %c0_231, %c0_232], %888 {strides = array<i32>} : memref<1x16x128xf32, #tpu.memory_space<vmem>>, vector<1x16x128xf32>,
    return
  }
  func.func @transform_0(%arg0: i32) -> (i32, i32, i32) {
    %c0_i32 = arith.constant 0 : i32
    %c0_i32_0 = arith.constant 0 : i32
    %c0_i32_1 = arith.constant 0 : i32
    return %arg0, %c0_i32, %c0_i32_0 : i32, i32, i32
  }
  func.func @transform_1(%arg0: i32) -> (i32, i32, i32) {
    %c0_i32 = arith.constant 0 : i32
    %c0_i32_0 = arith.constant 0 : i32
    %c0_i32_1 = arith.constant 0 : i32
    return %arg0, %c0_i32, %c0_i32_0 : i32, i32, i32
  }
  func.func @transform_2(%arg0: i32) -> (i32, i32) {
    %c0_i32 = arith.constant 0 : i32
    %c0_i32_0 = arith.constant 0 : i32
    %c0_i32_1 = arith.constant 0 : i32
    return %c0_i32, %c0_i32_0 : i32, i32
  }
  func.func @transform_3(%arg0: i32) -> (i32, i32) {
    %c0_i32 = arith.constant 0 : i32
    %c0_i32_0 = arith.constant 0 : i32
    %c0_i32_1 = arith.constant 0 : i32
    return %c0_i32, %c0_i32_0 : i32, i32
  }
  func.func @transform_4(%arg0: i32) -> (i32, i32, i32) {
    %c0_i32 = arith.constant 0 : i32
    %c0_i32_0 = arith.constant 0 : i32
    %c0_i32_1 = arith.constant 0 : i32
    return %arg0, %c0_i32, %c0_i32_0 : i32, i32, i32
  }
}

</mosaic_0001>

<llo_original>
// kernel: grouping_forward.1
$region0: #{grouping_forward.1}
  #allocation0 [shape = 'u32[]', space=smem, size = 0x4, offset = 0x4, fixed_abs, tag = 'smem constant byte address 0x4 - core index']
  #allocation1 [shape = 'u32[144,128]{1,0:T(1,128)}', space=vmem, size = 0x12000, scoped, tag = 'internal scratch']
  %s0 = inlined_call_operand.vmem [shape: f32[2,64,32], index: 0, kind: input, shape index: {}]
  %s1 = inlined_call_operand.vmem [shape: f32[2,8,32], index: 1, kind: input, shape index: {}]
  %s2 = inlined_call_operand.hbm [shape: bf16[544,256], index: 2, kind: input, shape index: {}]
  %s3 = inlined_call_operand.vmem [shape: f32[24,128], index: 3, kind: input, shape index: {}]
  %s4 = inlined_call_operand.vmem [shape: f32[2,16,128], index: 4, kind: output, shape index: {}]
  %s5 = sld [smem:[#allocation0]]
  $region53: #{grouping_forward.1} parent=0
    _
  %s7 = ssub.s32 1, %s5
  %s8 = scalar_select 0, %s7, %s5
  $region1: #{grouping_forward.1} parent=0
    #allocation2 [shape = 'u8[278528]{0}', space=vmem, size = 0x44000, scoped, tag = 'input window, operand 2, single buffered']
    #allocation3 [shape = 's32[2]{0}', space=sflag, size = 0x8, scoped, tag = 'scoped memory for grouping_forward.1']
    %9 = vsyncpa [#allocation3], 0
    loop: start=0, step=1, limit=4
    $region2: #{grouping_forward.1} parent=1 // loop_pre_header
      _
    $region3: #{grouping_forward.1} parent=1 // loop_header
      %s11 = sphi 0, %s15
      %p12 = scmp.ge.s32.totalorder %s11, 4
      %s21 = sphi 0, %s23
      %s24 = sphi 0, %s21
      %s25 = sphi 0, %s24
      %s41 = sphi 0, %s25
      %s47 = sphi 0, %s49
      %s50 = sphi 0, %s47
      %s51 = sphi 0, %s50
      %s67 = sphi 0, %s51
      %s71 = sphi 0, %s71
      %s73 = sphi 0, %s71
      %s74 = sphi 0, %s73
      %s88 = sphi 0, %s74
      %s92 = sphi 0, %s92
      %s94 = sphi 0, %s92
      %s95 = sphi 0, %s94
      %s109 = sphi 0, %s95
      %s115 = sphi 0, %s117
      %s118 = sphi 0, %s115
      %s119 = sphi 0, %s118
      %s135 = sphi 0, %s119
    $region4: #{grouping_forward.1} parent=1 // loop_header_branch
      %14 = sbr.rel (%p12) target = $region8
    $region5: #{grouping_forward.1} parent=1 // loop_body
      %s16 = ssub.s32 %s11, 1
      %s17 = ssub.s32 %s11, 2
      %s18 = sadd.s32 %s11, 1
      %s19 = ssub.s32 %s11, %s18
      %p20 = scmp.eq.s32.totalorder %s19, 0
      %s22 = sadd.s32 %s21, 1
      %s23 = scalar_select %p20, %s21, %s22
      %p26 = pneg %p20
      %p27 = scmp.eq.s32.totalorder %s11, 1
      %p28 = por %p26, %p27
      %p29 = scmp.ne.s32.totalorder %s21, %s24
      %p30 = scmp.eq.s32.totalorder %s11, 0
      %p31 = por %p29, %p30
      %p32 = scmp.ne.s32.totalorder %s21, %s24
      %p33 = scmp.eq.s32.totalorder %s16, 1
      %p34 = por %p32, %p33
      %p35 = scmp.ne.s32.totalorder %s24, %s25
      %p36 = scmp.eq.s32.totalorder %s16, 0
      %p37 = por %p35, %p36
      %p38 = scmp.ne.s32.totalorder %s24, %s25
      %p39 = scmp.eq.s32.totalorder %s17, 1
      %p40 = por %p38, %p39
      %p42 = scmp.ne.s32.totalorder %s25, %s41
      %p43 = scmp.eq.s32.totalorder %s17, 0
      %p44 = por %p42, %p43
      %s45 = ssub.s32 %s11, %s18
      %p46 = scmp.eq.s32.totalorder %s45, 0
      %s48 = sadd.s32 %s47, 1
      %s49 = scalar_select %p46, %s47, %s48
      %p52 = pneg %p46
      %p53 = scmp.eq.s32.totalorder %s11, 1
      %p54 = por %p52, %p53
      %p55 = scmp.ne.s32.totalorder %s47, %s50
      %p56 = scmp.eq.s32.totalorder %s11, 0
      %p57 = por %p55, %p56
      %p58 = scmp.ne.s32.totalorder %s47, %s50
      %p59 = scmp.eq.s32.totalorder %s16, 1
      %p60 = por %p58, %p59
      %p61 = scmp.ne.s32.totalorder %s50, %s51
      %p62 = scmp.eq.s32.totalorder %s16, 0
      %p63 = por %p61, %p62
      %p64 = scmp.ne.s32.totalorder %s50, %s51
      %p65 = scmp.eq.s32.totalorder %s17, 1
      %p66 = por %p64, %p65
      %p68 = scmp.ne.s32.totalorder %s51, %s67
      %p69 = scmp.eq.s32.totalorder %s17, 0
      %p70 = por %p68, %p69
      %s72 = sadd.s32 %s71, 1
      %p75 = scmp.eq.s32.totalorder %s11, 1
      %p76 = scmp.ne.s32.totalorder %s71, %s73
      %p77 = scmp.eq.s32.totalorder %s11, 0
      %p78 = por %p76, %p77
      %p79 = scmp.ne.s32.totalorder %s71, %s73
      %p80 = scmp.eq.s32.totalorder %s16, 1
      %p81 = por %p79, %p80
      %p82 = scmp.ne.s32.totalorder %s73, %s74
      %p83 = scmp.eq.s32.totalorder %s16, 0
      %p84 = por %p82, %p83
      %p85 = scmp.ne.s32.totalorder %s73, %s74
      %p86 = scmp.eq.s32.totalorder %s17, 1
      %p87 = por %p85, %p86
      %p89 = scmp.ne.s32.totalorder %s74, %s88
      %p90 = scmp.eq.s32.totalorder %s17, 0
      %p91 = por %p89, %p90
      %s93 = sadd.s32 %s92, 1
      %p96 = scmp.eq.s32.totalorder %s11, 1
      %p97 = scmp.ne.s32.totalorder %s92, %s94
      %p98 = scmp.eq.s32.totalorder %s11, 0
      %p99 = por %p97, %p98
      %p100 = scmp.ne.s32.totalorder %s92, %s94
      %p101 = scmp.eq.s32.totalorder %s16, 1
      %p102 = por %p100, %p101
      %p103 = scmp.ne.s32.totalorder %s94, %s95
      %p104 = scmp.eq.s32.totalorder %s16, 0
      %p105 = por %p103, %p104
      %p106 = scmp.ne.s32.totalorder %s94, %s95
      %p107 = scmp.eq.s32.totalorder %s17, 1
      %p108 = por %p106, %p107
      %p110 = scmp.ne.s32.totalorder %s95, %s109
      %p111 = scmp.eq.s32.totalorder %s17, 0
      %p112 = por %p110, %p111
      %s113 = ssub.s32 %s11, %s18
      %p114 = scmp.eq.s32.totalorder %s113, 0
      %s116 = sadd.s32 %s115, 1
      %s117 = scalar_select %p114, %s115, %s116
      %p120 = pneg %p114
      %p121 = scmp.eq.s32.totalorder %s11, 1
      %p122 = por %p120, %p121
      %p123 = scmp.ne.s32.totalorder %s115, %s118
      %p124 = scmp.eq.s32.totalorder %s11, 0
      %p125 = por %p123, %p124
      %p126 = scmp.ne.s32.totalorder %s115, %s118
      %p127 = scmp.eq.s32.totalorder %s16, 1
      %p128 = por %p126, %p127
      %p129 = scmp.ne.s32.totalorder %s118, %s119
      %p130 = scmp.eq.s32.totalorder %s16, 0
      %p131 = por %p129, %p130
      %p132 = scmp.ne.s32.totalorder %s118, %s119
      %p133 = scmp.eq.s32.totalorder %s17, 1
      %p134 = por %p132, %p133
      %p136 = scmp.ne.s32.totalorder %s119, %s135
      %p137 = scmp.eq.s32.totalorder %s17, 0
      %p138 = por %p136, %p137
      %p139 = scmp.le.s32.totalorder 1, %s11
      %p140 = scmp.lt.s32.totalorder %s11, 3
      %p141 = pnand %p139, %p140
      %p142 = pneg %p141
      // Predicated region
      $region9: #{grouping_forward.1} parent=5 // pred_check
        _
      $region10: #{grouping_forward.1} parent=5 // pred_check_branch
        %144 = sbr.rel (%p141) target = $region12
      $region11: #{grouping_forward.1} parent=5 // pred_region
        %s145 = ssub.s32 %s11, 1
        // Predicated region
        $region13: #{grouping_forward.1} parent=11 // pred_check
          %p146 = pneg %p84
        $region14: #{grouping_forward.1} parent=11 // pred_check_branch
          %148 = sbr.rel (%p146) target = $region16
        $region15: #{grouping_forward.1} parent=11 // pred_region
          %s150 = ssub.s32 8704, 8704
          %151 = vsyncadd [#allocation3], %s150
          %s152 = sshll.u32 [#allocation2], 4
          %s153 = int_to_ptr.vmem [resolvable:$true] %s152
          %158 = dma.hbm_to_vmem [thread:$0]  %s2, 8704, %s153, [#allocation3], 128, 128, 8
        $region16: #{grouping_forward.1} parent=11 // pred_fallthru
          _
        // Predicated region
        $region17: #{grouping_forward.1} parent=11 // pred_check
          %p159 = pneg %p105
        $region18: #{grouping_forward.1} parent=11 // pred_check_branch
          %161 = sbr.rel (%p159) target = $region20
        $region19: #{grouping_forward.1} parent=11 // pred_region
          _
        $region20: #{grouping_forward.1} parent=11 // pred_fallthru
          _
      $region12: #{grouping_forward.1} parent=5 // pred_fallthru
        _
      %p162 = scmp.lt.s32.totalorder %s11, 2
      // Predicated region
      $region21: #{grouping_forward.1} parent=5 // pred_check
        %p163 = pneg %p162
      $region22: #{grouping_forward.1} parent=5 // pred_check_branch
        %165 = sbr.rel (%p163) target = $region24
      $region23: #{grouping_forward.1} parent=5 // pred_region
        // Predicated region
        $region25: #{grouping_forward.1} parent=23 // pred_check
          %p166 = pneg %p31
        $region26: #{grouping_forward.1} parent=23 // pred_check_branch
          %168 = sbr.rel (%p166) target = $region28
        $region27: #{grouping_forward.1} parent=23 // pred_region
          %p169 = scmp.lt.s32.totalorder %s11, 1
          %s170 = scalar_select %p169, %s11, 1
          %s171 = smul.addr %s170, 8
          %s172 = smul.addr %s171, 8
          %s173 = scalar_lea.vmem %s0, %s172
        $region28: #{grouping_forward.1} parent=23 // pred_fallthru
          _
        // Predicated region
        $region29: #{grouping_forward.1} parent=23 // pred_check
          %p174 = pneg %p57
        $region30: #{grouping_forward.1} parent=23 // pred_check_branch
          %176 = sbr.rel (%p174) target = $region32
        $region31: #{grouping_forward.1} parent=23 // pred_region
          %p177 = scmp.lt.s32.totalorder %s11, 1
          %s178 = scalar_select %p177, %s11, 1
          %s179 = smul.addr %s178, 8
          %s180 = scalar_lea.vmem %s1, %s179
        $region32: #{grouping_forward.1} parent=23 // pred_fallthru
          _
      $region24: #{grouping_forward.1} parent=5 // pred_fallthru
        _
      %p181 = scmp.le.s32.totalorder 1, %s11
      %p182 = scmp.lt.s32.totalorder %s11, 3
      %p183 = pnand %p181, %p182
      %p184 = pneg %p183
      // Predicated region
      $region33: #{grouping_forward.1} parent=5 // pred_check
        _
      $region34: #{grouping_forward.1} parent=5 // pred_check_branch
        %186 = sbr.rel (%p183) target = $region36
      $region35: #{grouping_forward.1} parent=5 // pred_region
        %s187 = ssub.s32 %s11, 1
        // Predicated region
        $region37: #{grouping_forward.1} parent=35 // pred_check
          %p188 = pneg %p84
        $region38: #{grouping_forward.1} parent=35 // pred_check_branch
          %190 = sbr.rel (%p188) target = $region40
        $region39: #{grouping_forward.1} parent=35 // pred_region
          %191 = dma.done [#allocation3], 8704
        $region40: #{grouping_forward.1} parent=35 // pred_fallthru
          _
        %p192 = scmp.lt.s32.totalorder %s16, 1
        %s193 = scalar_select %p192, %s16, 1
        %s194 = smul.addr %s193, 8
        %s195 = smul.addr %s194, 8
        %s196 = scalar_lea.vmem %s0, %s195
        %p197 = pneg %p37
        %p198 = pneg %p34
        %p199 = scmp.lt.s32.totalorder %s16, 1
        %s200 = scalar_select %p199, %s16, 1
        %s201 = smul.addr %s200, 8
        %s202 = scalar_lea.vmem %s1, %s201
        %p203 = pneg %p63
        %p204 = pneg %p60
        %p205 = pneg %p84
        %p206 = pneg %p81
        %p207 = pneg %p105
        %p208 = pneg %p102
        %p209 = pneg %p131
        %p210 = pneg %p128
        %p211 = scmp.lt.s32.totalorder %s16, 1
        %s212 = scalar_select %p211, %s16, 1
        %s213 = smul.addr %s212, 2
        %s214 = smul.addr %s213, 8
        %s215 = scalar_lea.vmem %s4, %s214
        %p216 = scmp.lt.s32.totalorder %s16, 1
        %s217 = scalar_select %p216, %s16, 1
        %s218 = smul.addr %s217, 8
        %s219 = smul.addr %s218, 8
        %s220 = scalar_lea.vmem %s0, %s219
        %p221 = scmp.lt.s32.totalorder %s16, 1
        %s222 = scalar_select %p221, %s16, 1
        %s223 = smul.addr %s222, 8
        %s224 = scalar_lea.vmem %s1, %s223
        %p225 = scmp.lt.s32.totalorder %s16, 1
        %s226 = scalar_select %p225, %s16, 1
        %s227 = smul.addr %s226, 2
        %s228 = smul.addr %s227, 8
        %s229 = scalar_lea.vmem %s4, %s228
        %v231 = vld [vmem:[%s3] sm:$0x1]
        %v232 = vlaneseq
        %v233 = vshrl.u32 %v232, 7
        %v234 = vsub.s32 0, %v233
        %v235 = vrot.slane %v231, %v234
        %v236 = vld [vmem:[%s3 + $0x1] sm:$0x1]
        %v237 = vlaneseq
        %v238 = vshrl.u32 %v237, 7
        %v239 = vsub.s32 0, %v238
        %v240 = vrot.slane %v236, %v239
        %v241 = vld [vmem:[%s3 + $0x2] sm:$0x1]
        %v242 = vlaneseq
        %v243 = vshrl.u32 %v242, 7
        %v244 = vsub.s32 0, %v243
        %v245 = vrot.slane %v241, %v244
        %v246 = vld [vmem:[%s3 + $0x3] sm:$0x1]
        %v247 = vlaneseq
        %v248 = vshrl.u32 %v247, 7
        %v249 = vsub.s32 0, %v248
        %v250 = vrot.slane %v246, %v249
        %v251 = vld [vmem:[%s3 + $0x8] sm:$0xff]
        %v252 = vld [vmem:[%s3 + $0x10] sm:$0xff]
        %v253 = vld [vmem:[#allocation2] sm:$0xf]
        %v254 = vld [vmem:[#allocation2 + $0x8] sm:$0xf]
        %v255 = vld [vmem:[#allocation2 + $0x10] sm:$0xf]
        %v256 = vld [vmem:[#allocation2 + $0x18] sm:$0xf]
        %v257 = vld [vmem:[#allocation2 + $0x20] sm:$0xf]
        %v258 = vld [vmem:[#allocation2 + $0x28] sm:$0xf]
        %v259 = vld [vmem:[#allocation2 + $0x30] sm:$0xf]
        %v260 = vld [vmem:[#allocation2 + $0x38] sm:$0xf]
        %v261 = vld [vmem:[#allocation2 + $0x40] sm:$0xf]
        %v262 = vld [vmem:[#allocation2 + $0x48] sm:$0xf]
        %v263 = vld [vmem:[#allocation2 + $0x50] sm:$0xf]
        %v264 = vld [vmem:[#allocation2 + $0x58] sm:$0xf]
        %v265 = vld [vmem:[#allocation2 + $0x60] sm:$0xf]
        %v266 = vld [vmem:[#allocation2 + $0x68] sm:$0xf]
        %v267 = vld [vmem:[#allocation2 + $0x70] sm:$0xf]
        %v268 = vld [vmem:[#allocation2 + $0x78] sm:$0xf]
        %v269 = vld [vmem:[#allocation2 + $0x80] sm:$0xff]
        %v270 = vld [vmem:[#allocation2 + $0x88] sm:$0xff]
        %v271 = vld [vmem:[#allocation2 + $0x90] sm:$0xff]
        %v272 = vld [vmem:[#allocation2 + $0x98] sm:$0xff]
        %v273 = vld [vmem:[#allocation2 + $0xa0] sm:$0xf]
        %v274 = vld [vmem:[#allocation2 + $0xa8] sm:$0xf]
        %v275 = vld [vmem:[#allocation2 + $0xb0] sm:$0xf]
        %v276 = vld [vmem:[#allocation2 + $0xb8] sm:$0xf]
        %v277 = vld [vmem:[#allocation2 + $0xc0] sm:$0xf]
        %v278 = vld [vmem:[#allocation2 + $0xc8] sm:$0xf]
        %v279 = vld [vmem:[#allocation2 + $0xd0] sm:$0xf]
        %v280 = vld [vmem:[#allocation2 + $0xd8] sm:$0xf]
        %v281 = vld [vmem:[#allocation2 + $0xe0] sm:$0xf]
        %v282 = vld [vmem:[#allocation2 + $0xe8] sm:$0xf]
        %v283 = vld [vmem:[#allocation2 + $0xf0] sm:$0xf]
        %v284 = vld [vmem:[#allocation2 + $0xf8] sm:$0xf]
        %v285 = vld [vmem:[#allocation2 + $0x100] sm:$0xf]
        %v286 = vld [vmem:[#allocation2 + $0x108] sm:$0xf]
        %v287 = vld [vmem:[#allocation2 + $0x110] sm:$0xf]
        %v288 = vld [vmem:[#allocation2 + $0x118] sm:$0xf]
        %v289 = vld [vmem:[#allocation2 + $0x120] sm:$0xff]
        %v290 = vld [vmem:[#allocation2 + $0x128] sm:$0xff]
        %v291 = vld [vmem:[#allocation2 + $0x130] sm:$0xff]
        %v292 = vld [vmem:[#allocation2 + $0x138] sm:$0xff]
        %v293 = vld [vmem:[#allocation2 + $0x140] sm:$0xff]
        %v294 = vld [vmem:[#allocation2 + $0x148] sm:$0xff]
        %v295 = vld [vmem:[#allocation2 + $0x150] sm:$0xff]
        %v296 = vld [vmem:[#allocation2 + $0x158] sm:$0xff]
        %v297 = vld [vmem:[#allocation2 + $0x160] sm:$0xff]
        %v298 = vld [vmem:[#allocation2 + $0x168] sm:$0xff]
        %v299 = vld [vmem:[#allocation2 + $0x170] sm:$0xff]
        %v300 = vld [vmem:[#allocation2 + $0x178] sm:$0xff]
        %v301 = vld [vmem:[#allocation2 + $0x180] sm:$0xff]
        %v302 = vld [vmem:[#allocation2 + $0x188] sm:$0xff]
        %v303 = vld [vmem:[#allocation2 + $0x190] sm:$0xff]
        %v304 = vld [vmem:[#allocation2 + $0x198] sm:$0xff]
        %v305 = vld [vmem:[#allocation2 + $0x1a0] sm:$0xf]
        %v306 = vld [vmem:[#allocation2 + $0x1a8] sm:$0xf]
        %v307 = vld [vmem:[#allocation2 + $0x1b0] sm:$0xf]
        %v308 = vld [vmem:[#allocation2 + $0x1b8] sm:$0xf]
        %v309 = vld [vmem:[#allocation2 + $0x1c0] sm:$0xf]
        %v310 = vld [vmem:[#allocation2 + $0x1c8] sm:$0xf]
        %v311 = vld [vmem:[#allocation2 + $0x1d0] sm:$0xf]
        %v312 = vld [vmem:[#allocation2 + $0x1d8] sm:$0xf]
        %v313 = vld [vmem:[#allocation2 + $0x1e0] sm:$0xf]
        %v314 = vld [vmem:[#allocation2 + $0x1e8] sm:$0xf]
        %v315 = vld [vmem:[#allocation2 + $0x1f0] sm:$0xf]
        %v316 = vld [vmem:[#allocation2 + $0x1f8] sm:$0xf]
        %v317 = vld [vmem:[#allocation2 + $0x200] sm:$0xf]
        %v318 = vld [vmem:[#allocation2 + $0x208] sm:$0xf]
        %v319 = vld [vmem:[#allocation2 + $0x210] sm:$0xf]
        %v320 = vld [vmem:[#allocation2 + $0x218] sm:$0xf]
        %v321 = vld [vmem:[%s220] sm:$0xff]
        %v322 = vld [vmem:[%s220 + $0x8] sm:$0xff]
        %v323 = vld [vmem:[%s220 + $0x10] sm:$0xff]
        %v324 = vld [vmem:[%s220 + $0x18] sm:$0xff]
        %v325 = vld [vmem:[%s220 + $0x20] sm:$0xff]
        %v326 = vld [vmem:[%s220 + $0x28] sm:$0xff]
        %v327 = vld [vmem:[%s220 + $0x30] sm:$0xff]
        %v328 = vld [vmem:[%s220 + $0x38] sm:$0xff]
        %vm329 = vcmask 261120
        %v330 = vsel %vm329, %v321, 0.0
        %331 = vadd.xlane.f32.xlu0 %v330
        %v332 = vpop.xlane.xlu0 %331
        %v333 = vsel %vm329, %v322, 0.0
        %334 = vadd.xlane.f32.xlu0 %v333
        %v335 = vpop.xlane.xlu0 %334
        %v336 = vsel %vm329, %v323, 0.0
        %337 = vadd.xlane.f32.xlu0 %v336
        %v338 = vpop.xlane.xlu0 %337
        %v339 = vsel %vm329, %v324, 0.0
        %340 = vadd.xlane.f32.xlu0 %v339
        %v341 = vpop.xlane.xlu0 %340
        %v342 = vsel %vm329, %v325, 0.0
        %343 = vadd.xlane.f32.xlu0 %v342
        %v344 = vpop.xlane.xlu0 %343
        %v345 = vsel %vm329, %v326, 0.0
        %346 = vadd.xlane.f32.xlu0 %v345
        %v347 = vpop.xlane.xlu0 %346
        %v348 = vsel %vm329, %v327, 0.0
        %349 = vadd.xlane.f32.xlu0 %v348
        %v350 = vpop.xlane.xlu0 %349
        %v351 = vsel %vm329, %v328, 0.0
        %352 = vadd.xlane.f32.xlu0 %v351
        %v353 = vpop.xlane.xlu0 %352
        %v354 = vrcp.pop 32.0
        %v355 = vmul.f32 %v332, %v354
        %v356 = vmul.f32 %v335, %v354
        %v357 = vmul.f32 %v338, %v354
        %v358 = vmul.f32 %v341, %v354
        %v359 = vmul.f32 %v344, %v354
        %v360 = vmul.f32 %v347, %v354
        %v361 = vmul.f32 %v350, %v354
        %v362 = vmul.f32 %v353, %v354
        %v363 = vsub.f32 %v321, %v355
        %v364 = vsub.f32 %v322, %v356
        %v365 = vsub.f32 %v323, %v357
        %v366 = vsub.f32 %v324, %v358
        %v367 = vsub.f32 %v325, %v359
        %v368 = vsub.f32 %v326, %v360
        %v369 = vsub.f32 %v327, %v361
        %v370 = vsub.f32 %v328, %v362
        %v371 = vmul.f32 %v363, %v363
        %v372 = vmul.f32 %v364, %v364
        %v373 = vmul.f32 %v365, %v365
        %v374 = vmul.f32 %v366, %v366
        %v375 = vmul.f32 %v367, %v367
        %v376 = vmul.f32 %v368, %v368
        %v377 = vmul.f32 %v369, %v369
        %v378 = vmul.f32 %v370, %v370
        %v379 = vsel %vm329, %v371, 0.0
        %380 = vadd.xlane.f32.xlu0 %v379
        %v381 = vpop.xlane.xlu0 %380
        %v382 = vsel %vm329, %v372, 0.0
        %383 = vadd.xlane.f32.xlu0 %v382
        %v384 = vpop.xlane.xlu0 %383
        %v385 = vsel %vm329, %v373, 0.0
        %386 = vadd.xlane.f32.xlu0 %v385
        %v387 = vpop.xlane.xlu0 %386
        %v388 = vsel %vm329, %v374, 0.0
        %389 = vadd.xlane.f32.xlu0 %v388
        %v390 = vpop.xlane.xlu0 %389
        %v391 = vsel %vm329, %v375, 0.0
        %392 = vadd.xlane.f32.xlu0 %v391
        %v393 = vpop.xlane.xlu0 %392
        %v394 = vsel %vm329, %v376, 0.0
        %395 = vadd.xlane.f32.xlu0 %v394
        %v396 = vpop.xlane.xlu0 %395
        %v397 = vsel %vm329, %v377, 0.0
        %398 = vadd.xlane.f32.xlu0 %v397
        %v399 = vpop.xlane.xlu0 %398
        %v400 = vsel %vm329, %v378, 0.0
        %401 = vadd.xlane.f32.xlu0 %v400
        %v402 = vpop.xlane.xlu0 %401
        %v403 = vmul.f32 %v381, %v354
        %v404 = vmul.f32 %v384, %v354
        %v405 = vmul.f32 %v387, %v354
        %v406 = vmul.f32 %v390, %v354
        %v407 = vmul.f32 %v393, %v354
        %v408 = vmul.f32 %v396, %v354
        %v409 = vmul.f32 %v399, %v354
        %v410 = vmul.f32 %v402, %v354
        %v411 = vadd.f32 %v403, 1e-05
        %v412 = vadd.f32 %v404, 1e-05
        %v413 = vadd.f32 %v405, 1e-05
        %v414 = vadd.f32 %v406, 1e-05
        %v415 = vadd.f32 %v407, 1e-05
        %v416 = vadd.f32 %v408, 1e-05
        %v417 = vadd.f32 %v409, 1e-05
        %v418 = vadd.f32 %v410, 1e-05
        %v419 = vrsqrt.pop %v411
        %v420 = vrsqrt.pop %v412
        %v421 = vrsqrt.pop %v413
        %v422 = vrsqrt.pop %v414
        %v423 = vrsqrt.pop %v415
        %v424 = vrsqrt.pop %v416
        %v425 = vrsqrt.pop %v417
        %v426 = vrsqrt.pop %v418
        %v427 = vmul.f32 %v363, %v419
        %v428 = vmul.f32 %v364, %v420
        %v429 = vmul.f32 %v365, %v421
        %v430 = vmul.f32 %v366, %v422
        %v431 = vmul.f32 %v367, %v423
        %v432 = vmul.f32 %v368, %v424
        %v433 = vmul.f32 %v369, %v425
        %v434 = vmul.f32 %v370, %v426
        %v435 = vmul.f32 %v427, %v235
        %v436 = vmul.f32 %v428, %v235
        %v437 = vmul.f32 %v429, %v235
        %v438 = vmul.f32 %v430, %v235
        %v439 = vmul.f32 %v431, %v235
        %v440 = vmul.f32 %v432, %v235
        %v441 = vmul.f32 %v433, %v235
        %v442 = vmul.f32 %v434, %v235
        %444 = vrot.lane.b32.xlu0 %v235, 96
        %v445 = vpop.permute.xlu0 %444
        %v447 = vadd.f32 %v435, %v445
        %v448 = vadd.f32 %v436, %v445
        %v449 = vadd.f32 %v437, %v445
        %v450 = vadd.f32 %v438, %v445
        %v451 = vadd.f32 %v439, %v445
        %v452 = vadd.f32 %v440, %v445
        %v453 = vadd.f32 %v441, %v445
        %v454 = vadd.f32 %v442, %v445
        %v455 = vpack.c.bf16 %v448, %v447
        %v456 = vpack.c.bf16 %v450, %v449
        %v457 = vpack.c.bf16 %v452, %v451
        %v458 = vpack.c.bf16 %v454, %v453
        %v463 = vunpack.c.l.b16 %v253
        %v464 = vunpack.c.l.b16 %v254
        %v465 = vunpack.c.l.b16 %v255
        %v466 = vunpack.c.l.b16 %v256
        %v467 = vpack.c.b16 %v464, %v463
        %v468 = vpack.c.b16 %v466, %v465
        %v472 = vsel %vm329, %v455, 0
        %v475 = vsel %vm329, %v456, 0
        %v478 = vsel %vm329, %v457, 0
        %v481 = vsel %vm329, %v458, 0
        %483 = vmatprep.subr.bf16.mxu0 0
        %484 = vmatpush1.bf16.msra.mxu0 %v467
        %485 = vmatprep.subr.bf16.mxu0 0
        %486 = vmatpush1.bf16.msra.mxu0 %v468
        %487 = vmatprep.subr.bf16.mxu0 0
        %488 = vmatpush1.bf16.msra.mxu0 0
        %489 = vmatprep.subr.bf16.mxu0 0
        %490 = vmatpush1.bf16.msra.mxu0 0
        %491 = vmatprep.subr.bf16.mxu0 0
        %492 = vmatpush1.bf16.msra.mxu0 0
        %493 = vmatprep.subr.bf16.mxu0 0
        %494 = vmatpush1.bf16.msra.mxu0 0
        %495 = vmatprep.subr.bf16.mxu0 0
        %496 = vmatpush1.bf16.msra.mxu0 0
        %497 = vmatprep.subr.bf16.mxu0 0
        %498 = vmatpush1.bf16.msra.mxu0 0
        %499 = vmatprep.subr.bf16.mxu0 0
        %500 = vmatpush1.bf16.msra.mxu0 0
        %501 = vmatprep.subr.bf16.mxu0 0
        %502 = vmatpush1.bf16.msra.mxu0 0
        %503 = vmatprep.subr.bf16.mxu0 0
        %504 = vmatpush1.bf16.msra.mxu0 0
        %505 = vmatprep.subr.bf16.mxu0 0
        %506 = vmatpush1.bf16.msra.mxu0 0
        %507 = vmatprep.subr.bf16.mxu0 0
        %508 = vmatpush1.bf16.msra.mxu0 0
        %509 = vmatprep.subr.bf16.mxu0 0
        %510 = vmatpush1.bf16.msra.mxu0 0
        %511 = vmatprep.subr.bf16.mxu0 0
        %512 = vmatpush1.bf16.msra.mxu0 0
        %513 = vmatprep.subr.bf16.mxu0 0
        %514 = vmatpush1.bf16.msra.mxu0 0
        %515 = vmatprep.mubr.bf16.mxu0 0
        %516 = vmatmul.mubr.bf16.gmra.mrb[0].mxu0 %v472
        %v517 = vpop.f32.mrb[0].mxu0
        %v518 = vadd.f32 0.0, %v517
        %v519 = vpop.f32.mrb[0].mxu0
        %v520 = vpop.f32.mrb[0].mxu0
        %v521 = vadd.f32 0.0, %v520
        %v522 = vpop.f32.mrb[0].mxu0
        %523 = vmatprep.mubr.bf16.mxu0 0
        %524 = vmatmul.mubr.bf16.gmra.mrb[0].mxu0 %v475
        %v525 = vpop.f32.mrb[0].mxu0
        %v526 = vadd.f32 0.0, %v525
        %v527 = vpop.f32.mrb[0].mxu0
        %v528 = vpop.f32.mrb[0].mxu0
        %v529 = vadd.f32 0.0, %v528
        %v530 = vpop.f32.mrb[0].mxu0
        %531 = vmatprep.mubr.bf16.mxu0 0
        %532 = vmatmul.mubr.bf16.gmra.mrb[0].mxu0 %v478
        %v533 = vpop.f32.mrb[0].mxu0
        %v534 = vadd.f32 0.0, %v533
        %v535 = vpop.f32.mrb[0].mxu0
        %v536 = vpop.f32.mrb[0].mxu0
        %v537 = vadd.f32 0.0, %v536
        %v538 = vpop.f32.mrb[0].mxu0
        %539 = vmatprep.mubr.bf16.mxu0 0
        %540 = vmatmul.mubr.bf16.gmra.mrb[0].mxu0 %v481
        %v541 = vpop.f32.mrb[0].mxu0
        %v542 = vadd.f32 0.0, %v541
        %v543 = vpop.f32.mrb[0].mxu0
        %v544 = vpop.f32.mrb[0].mxu0
        %v545 = vadd.f32 0.0, %v544
        %v546 = vpop.f32.mrb[0].mxu0
        %547 = vdwg.mxu0
        %548 = vxpose.xlu0.b32.start [1/16] %v518, 128
        %549 = vxpose.xlu0.b32.cont [2/16] %v521, 128
        %550 = vxpose.xlu0.b32.cont [3/16] %v526, 128
        %551 = vxpose.xlu0.b32.cont [4/16] %v529, 128
        %552 = vxpose.xlu0.b32.cont [5/16] %v534, 128
        %553 = vxpose.xlu0.b32.cont [6/16] %v537, 128
        %554 = vxpose.xlu0.b32.cont [7/16] %v542, 128
        %555 = vxpose.xlu0.b32.cont [8/16] %v545, 128
        %556 = vxpose.xlu0.b32.cont [9/16] 0.0, 128
        %557 = vxpose.xlu0.b32.cont [10/16] 0.0, 128
        %558 = vxpose.xlu0.b32.cont [11/16] 0.0, 128
        %559 = vxpose.xlu0.b32.cont [12/16] 0.0, 128
        %560 = vxpose.xlu0.b32.cont [13/16] 0.0, 128
        %561 = vxpose.xlu0.b32.cont [14/16] 0.0, 128
        %562 = vxpose.xlu0.b32.cont [15/16] 0.0, 128
        %563 = vxpose.xlu0.b32.end [16/16] 0.0, 128
        %v564 = vpop.trf.xlu0
        %v565 = vpop.trf.xlu0
        %v566 = vpop.trf.xlu0
        %v567 = vpop.trf.xlu0
        %v568 = vpop.trf.xlu0
        %v569 = vpop.trf.xlu0
        %v570 = vpop.trf.xlu0
        %v571 = vpop.trf.xlu0
        %v572 = vpop.trf.xlu0
        %v573 = vpop.trf.xlu0
        %v574 = vpop.trf.xlu0
        %v575 = vpop.trf.xlu0
        %v576 = vpop.trf.xlu0
        %v577 = vpop.trf.xlu0
        %v578 = vpop.trf.xlu0
        %v579 = vpop.trf.xlu0
        %v580 = vpack.c.bf16 %v565, %v564
        %v581 = vpack.c.bf16 %v567, %v566
        %v582 = vpack.c.bf16 %v521, %v518
        %v583 = vpack.c.bf16 %v529, %v526
        %v584 = vpack.c.bf16 %v537, %v534
        %v585 = vpack.c.bf16 %v545, %v542
        %v586 = vld [vmem:[%s224] sm:$0xff]
        %v587 = vsel %vm329, %v586, 0.0
        %588 = vadd.xlane.f32.xlu0 %v587
        %v589 = vpop.xlane.xlu0 %588
        %v590 = vmul.f32 %v589, %v354
        %v591 = vsub.f32 %v586, %v590
        %v592 = vmul.f32 %v591, %v591
        %v593 = vsel %vm329, %v592, 0.0
        %594 = vadd.xlane.f32.xlu0 %v593
        %v595 = vpop.xlane.xlu0 %594
        %v596 = vmul.f32 %v595, %v354
        %v597 = vadd.f32 %v596, 1e-05
        %v598 = vrsqrt.pop %v597
        %v599 = vmul.f32 %v591, %v598
        %600 = vrot.lane.b32.xlu0 %v235, 64
        %v601 = vpop.permute.xlu0 %600
        %v603 = vmul.f32 %v599, %v601
        %604 = vrot.lane.b32.xlu0 %v235, 32
        %v605 = vpop.permute.xlu0 %604
        %v607 = vadd.f32 %v603, %v605
        %v608 = vpack.c.bf16 %v607, %v607
        %v613 = vunpack.c.l.b16 %v257
        %v614 = vunpack.c.l.b16 %v258
        %v615 = vunpack.c.l.b16 %v259
        %v616 = vunpack.c.l.b16 %v260
        %v617 = vpack.c.b16 %v614, %v613
        %v618 = vpack.c.b16 %v616, %v615
        %v622 = vsel %vm329, %v608, 0
        %624 = vmatprep.subr.bf16.mxu0 0
        %625 = vmatpush1.bf16.msra.mxu0 %v617
        %626 = vmatprep.subr.bf16.mxu0 0
        %627 = vmatpush1.bf16.msra.mxu0 %v618
        %628 = vmatprep.subr.bf16.mxu0 0
        %629 = vmatpush1.bf16.msra.mxu0 0
        %630 = vmatprep.subr.bf16.mxu0 0
        %631 = vmatpush1.bf16.msra.mxu0 0
        %632 = vmatprep.subr.bf16.mxu0 0
        %633 = vmatpush1.bf16.msra.mxu0 0
        %634 = vmatprep.subr.bf16.mxu0 0
        %635 = vmatpush1.bf16.msra.mxu0 0
        %636 = vmatprep.subr.bf16.mxu0 0
        %637 = vmatpush1.bf16.msra.mxu0 0
        %638 = vmatprep.subr.bf16.mxu0 0
        %639 = vmatpush1.bf16.msra.mxu0 0
        %640 = vmatprep.subr.bf16.mxu0 0
        %641 = vmatpush1.bf16.msra.mxu0 0
        %642 = vmatprep.subr.bf16.mxu0 0
        %643 = vmatpush1.bf16.msra.mxu0 0
        %644 = vmatprep.subr.bf16.mxu0 0
        %645 = vmatpush1.bf16.msra.mxu0 0
        %646 = vmatprep.subr.bf16.mxu0 0
        %647 = vmatpush1.bf16.msra.mxu0 0
        %648 = vmatprep.subr.bf16.mxu0 0
        %649 = vmatpush1.bf16.msra.mxu0 0
        %650 = vmatprep.subr.bf16.mxu0 0
        %651 = vmatpush1.bf16.msra.mxu0 0
        %652 = vmatprep.subr.bf16.mxu0 0
        %653 = vmatpush1.bf16.msra.mxu0 0
        %654 = vmatprep.subr.bf16.mxu0 0
        %655 = vmatpush1.bf16.msra.mxu0 0
        %656 = vmatprep.mubr.bf16.mxu0 0
        %657 = vmatmul.mubr.bf16.gmra.mrb[0].mxu0 %v622
        %v658 = vpop.f32.mrb[0].mxu0
        %v659 = vadd.f32 0.0, %v658
        %v660 = vpop.f32.mrb[0].mxu0
        %v661 = vpop.f32.mrb[0].mxu0
        %v662 = vpop.f32.mrb[0].mxu0
        %663 = vdwg.mxu0
        %v664 = vpack.c.bf16 %v659, %v659
        %v666 = vsel %vm329, %v664, 0
        %668 = vmatprep.subr.bf16.mxu0 0
        %669 = vmatpush1.bf16.msra.mxu0 %v580
        %670 = vmatprep.subr.bf16.mxu0 0
        %671 = vmatpush1.bf16.msra.mxu0 %v581
        %672 = vmatprep.subr.bf16.mxu0 0
        %673 = vmatpush1.bf16.msra.mxu0 0
        %674 = vmatprep.subr.bf16.mxu0 0
        %675 = vmatpush1.bf16.msra.mxu0 0
        %676 = vmatprep.subr.bf16.mxu0 0
        %677 = vmatpush1.bf16.msra.mxu0 0
        %678 = vmatprep.subr.bf16.mxu0 0
        %679 = vmatpush1.bf16.msra.mxu0 0
        %680 = vmatprep.subr.bf16.mxu0 0
        %681 = vmatpush1.bf16.msra.mxu0 0
        %682 = vmatprep.subr.bf16.mxu0 0
        %683 = vmatpush1.bf16.msra.mxu0 0
        %684 = vmatprep.subr.bf16.mxu0 0
        %685 = vmatpush1.bf16.msra.mxu0 0
        %686 = vmatprep.subr.bf16.mxu0 0
        %687 = vmatpush1.bf16.msra.mxu0 0
        %688 = vmatprep.subr.bf16.mxu0 0
        %689 = vmatpush1.bf16.msra.mxu0 0
        %690 = vmatprep.subr.bf16.mxu0 0
        %691 = vmatpush1.bf16.msra.mxu0 0
        %692 = vmatprep.subr.bf16.mxu0 0
        %693 = vmatpush1.bf16.msra.mxu0 0
        %694 = vmatprep.subr.bf16.mxu0 0
        %695 = vmatpush1.bf16.msra.mxu0 0
        %696 = vmatprep.subr.bf16.mxu0 0
        %697 = vmatpush1.bf16.msra.mxu0 0
        %698 = vmatprep.subr.bf16.mxu0 0
        %699 = vmatpush1.bf16.msra.mxu0 0
        %700 = vmatprep.mubr.bf16.mxu0 0
        %701 = vmatmul.mubr.bf16.gmra.mrb[0].mxu0 %v666
        %v702 = vpop.f32.mrb[0].mxu0
        %v703 = vadd.f32 0.0, %v702
        %v704 = vpop.f32.mrb[0].mxu0
        %v705 = vpop.f32.mrb[0].mxu0
        %v706 = vpop.f32.mrb[0].mxu0
        %707 = vdwg.mxu0
        %v708 = vmul.f32 %v703, 0.17677669
        %vm709 = vcmask 523264
        %v710 = vsel %vm709, %v708, -inf
        %v711 = vrot.slane %v710, 4
        %v712 = vmax.f32 %v710, %v711
        %v713 = vrot.slane %v712, 2
        %v714 = vmax.f32 %v712, %v713
        %v715 = vrot.slane %v714, 1
        %v716 = vmax.f32 %v714, %v715
        %v717 = vsub.f32 %v708, %v716
        %v718 = vmul.f32 %v717, 1.442695
        %v719 = vpow.pop %v718
        %v720 = vsel %vm709, %v719, 0.0
        %v721 = vrot.slane %v720, 4
        %v722 = vadd.f32 %v720, %v721
        %v723 = vrot.slane %v722, 2
        %v724 = vadd.f32 %v722, %v723
        %v725 = vrot.slane %v724, 1
        %v726 = vadd.f32 %v724, %v725
        %v727 = vrcp.pop %v726
        %v728 = vmul.f32 %v719, %v727
        %v729 = vadd.f32 %v728, 1e-08
        %v730 = vsel %vm709, %v729, 0.0
        %731 = vadd.xlane.f32.xlu0 %v730
        %v732 = vpop.xlane.xlu0 %731
        %v733 = vrcp.pop %v732
        %v734 = vmul.f32 %v729, %v733
        %v735 = vpack.c.bf16 %v734, %v734
        %740 = vrot.lane.b32.xlu0 %v582, 96
        %v741 = vpop.permute.xlu0 %740
        %742 = vrot.lane.b32.xlu0 %v583, 96
        %v743 = vpop.permute.xlu0 %742
        %744 = vrot.lane.b32.xlu0 %v584, 96
        %v745 = vpop.permute.xlu0 %744
        %746 = vrot.lane.b32.xlu0 %v585, 96
        %v747 = vpop.permute.xlu0 %746
        %v753 = vsel %vm709, %v735, 0
        %755 = vmatprep.subr.bf16.mxu0 0
        %756 = vmatpush1.bf16.msra.mxu0 %v741
        %757 = vmatprep.subr.bf16.mxu0 0
        %758 = vmatpush1.bf16.msra.mxu0 %v743
        %759 = vmatprep.subr.bf16.mxu0 0
        %760 = vmatpush1.bf16.msra.mxu0 %v745
        %761 = vmatprep.subr.bf16.mxu0 0
        %762 = vmatpush1.bf16.msra.mxu0 %v747
        %763 = vmatprep.subr.bf16.mxu0 0
        %764 = vmatpush1.bf16.msra.mxu0 0
        %765 = vmatprep.subr.bf16.mxu0 0
        %766 = vmatpush1.bf16.msra.mxu0 0
        %767 = vmatprep.subr.bf16.mxu0 0
        %768 = vmatpush1.bf16.msra.mxu0 0
        %769 = vmatprep.subr.bf16.mxu0 0
        %770 = vmatpush1.bf16.msra.mxu0 0
        %771 = vmatprep.subr.bf16.mxu0 0
        %772 = vmatpush1.bf16.msra.mxu0 0
        %773 = vmatprep.subr.bf16.mxu0 0
        %774 = vmatpush1.bf16.msra.mxu0 0
        %775 = vmatprep.subr.bf16.mxu0 0
        %776 = vmatpush1.bf16.msra.mxu0 0
        %777 = vmatprep.subr.bf16.mxu0 0
        %778 = vmatpush1.bf16.msra.mxu0 0
        %779 = vmatprep.subr.bf16.mxu0 0
        %780 = vmatpush1.bf16.msra.mxu0 0
        %781 = vmatprep.subr.bf16.mxu0 0
        %782 = vmatpush1.bf16.msra.mxu0 0
        %783 = vmatprep.subr.bf16.mxu0 0
        %784 = vmatpush1.bf16.msra.mxu0 0
        %785 = vmatprep.subr.bf16.mxu0 0
        %786 = vmatpush1.bf16.msra.mxu0 0
        %787 = vmatprep.mubr.bf16.mxu0 0
        %788 = vmatmul.mubr.bf16.gmra.mrb[0].mxu0 %v753
        %v789 = vpop.f32.mrb[0].mxu0
        %v790 = vadd.f32 0.0, %v789
        %v791 = vpop.f32.mrb[0].mxu0
        %v792 = vpop.f32.mrb[0].mxu0
        %v793 = vpop.f32.mrb[0].mxu0
        %794 = vdwg.mxu0
        %796 = vrot.lane.b32.xlu0 %v586, 32
        %v797 = vpop.permute.xlu0 %796
        %v799 = vsel %vm329, %v790, %v797
        %v800 = vpack.c.bf16 %v799, %v799
        %v809 = vunpack.c.l.b16 %v261
        %v810 = vunpack.c.l.b16 %v262
        %v811 = vunpack.c.l.b16 %v263
        %v812 = vunpack.c.l.b16 %v264
        %v813 = vunpack.c.l.b16 %v265
        %v814 = vunpack.c.l.b16 %v266
        %v815 = vunpack.c.l.b16 %v267
        %v816 = vunpack.c.l.b16 %v268
        %v817 = vpack.c.b16 %v810, %v809
        %v818 = vpack.c.b16 %v812, %v811
        %v819 = vpack.c.b16 %v814, %v813
        %v820 = vpack.c.b16 %v816, %v815
        %v826 = vsel %vm709, %v800, 0
        %828 = vmatprep.subr.bf16.mxu0 0
        %829 = vmatpush1.bf16.msra.mxu0 %v817
        %830 = vmatprep.subr.bf16.mxu0 0
        %831 = vmatpush1.bf16.msra.mxu0 %v818
        %832 = vmatprep.subr.bf16.mxu0 0
        %833 = vmatpush1.bf16.msra.mxu0 %v819
        %834 = vmatprep.subr.bf16.mxu0 0
        %835 = vmatpush1.bf16.msra.mxu0 %v820
        %836 = vmatprep.subr.bf16.mxu0 0
        %837 = vmatpush1.bf16.msra.mxu0 0
        %838 = vmatprep.subr.bf16.mxu0 0
        %839 = vmatpush1.bf16.msra.mxu0 0
        %840 = vmatprep.subr.bf16.mxu0 0
        %841 = vmatpush1.bf16.msra.mxu0 0
        %842 = vmatprep.subr.bf16.mxu0 0
        %843 = vmatpush1.bf16.msra.mxu0 0
        %844 = vmatprep.subr.bf16.mxu0 0
        %845 = vmatpush1.bf16.msra.mxu0 0
        %846 = vmatprep.subr.bf16.mxu0 0
        %847 = vmatpush1.bf16.msra.mxu0 0
        %848 = vmatprep.subr.bf16.mxu0 0
        %849 = vmatpush1.bf16.msra.mxu0 0
        %850 = vmatprep.subr.bf16.mxu0 0
        %851 = vmatpush1.bf16.msra.mxu0 0
        %852 = vmatprep.subr.bf16.mxu0 0
        %853 = vmatpush1.bf16.msra.mxu0 0
        %854 = vmatprep.subr.bf16.mxu0 0
        %855 = vmatpush1.bf16.msra.mxu0 0
        %856 = vmatprep.subr.bf16.mxu0 0
        %857 = vmatpush1.bf16.msra.mxu0 0
        %858 = vmatprep.subr.bf16.mxu0 0
        %859 = vmatpush1.bf16.msra.mxu0 0
        %860 = vmatprep.mubr.bf16.mxu0 0
        %861 = vmatmul.mubr.bf16.gmra.mrb[0].mxu0 %v826
        %v862 = vpop.f32.mrb[0].mxu0
        %v863 = vadd.f32 %v245, %v862
        %v864 = vpop.f32.mrb[0].mxu0
        %v865 = vpop.f32.mrb[0].mxu0
        %v866 = vpop.f32.mrb[0].mxu0
        %867 = vdwg.mxu0
        %v868 = vxor.u32 %v863, 2147483648
        %v869 = vmul.f32 %v868, 1.442695
        %v870 = vpow.pop %v869
        %v871 = vadd.f32 %v870, 1.0
        %v872 = vrcp.pop %v871
        %v873 = vmul.f32 1.0, %v872
        %v874 = vsub.f32 1.0, %v873
        %876 = vrot.lane.b32.xlu0 %v863, 32
        %v877 = vpop.permute.xlu0 %876
        %v879 = vmul.f32 %v874, %v877
        %881 = vrot.lane.b32.xlu0 %v879, 64
        %v882 = vpop.permute.xlu0 %881
        %v884 = vsub.f32 %v863, %v882
        %v885 = vtanh.pop %v884
        %887 = vrot.lane.b32.xlu0 %v885, 96
        %v888 = vpop.permute.xlu0 %887
        %v890 = vmul.f32 %v874, %v888
        %v891 = vmul.f32 %v873, %v797
        %v892 = vadd.f32 %v890, %v891
        %894 = vrot.lane.b32.xlu0 %v892, 96
        %v895 = vpop.permute.xlu0 %894
        %v897 = vsel %vm329, %v895, 0.0
        %898 = vadd.xlane.f32.xlu0 %v897
        %v899 = vpop.xlane.xlu0 %898
        %v900 = vmul.f32 %v899, %v354
        %v901 = vsub.f32 %v892, %v900
        %v902 = vmul.f32 %v901, %v901
        %904 = vrot.lane.b32.xlu0 %v902, 96
        %v905 = vpop.permute.xlu0 %904
        %v907 = vsel %vm329, %v905, 0.0
        %908 = vadd.xlane.f32.xlu0 %v907
        %v909 = vpop.xlane.xlu0 %908
        %v910 = vmul.f32 %v909, %v354
        %v911 = vadd.f32 %v910, 1e-05
        %v912 = vrsqrt.pop %v911
        %v913 = vmul.f32 %v901, %v912
        %915 = vrot.lane.b32.xlu0 %v240, 32
        %v916 = vpop.permute.xlu0 %915
        %v918 = vmul.f32 %v913, %v916
        %v919 = vadd.f32 %v918, %v240
        %v920 = vpack.c.bf16 %v919, %v919
        %922 = vrot.lane.b32.xlu0 %v920, 96
        %v923 = vpop.permute.xlu0 %922
        %v928 = vunpack.c.l.b16 %v269
        %v929 = vunpack.c.l.b16 %v270
        %v930 = vunpack.c.l.b16 %v271
        %v931 = vunpack.c.l.b16 %v272
        %v932 = vpack.c.b16 %v929, %v928
        %v933 = vpack.c.b16 %v931, %v930
        %v937 = vsel %vm329, %v923, 0
        %939 = vmatprep.subr.bf16.mxu0 0
        %940 = vmatpush1.bf16.msra.mxu0 %v932
        %941 = vmatprep.subr.bf16.mxu0 0
        %942 = vmatpush1.bf16.msra.mxu0 %v933
        %943 = vmatprep.subr.bf16.mxu0 0
        %944 = vmatpush1.bf16.msra.mxu0 0
        %945 = vmatprep.subr.bf16.mxu0 0
        %946 = vmatpush1.bf16.msra.mxu0 0
        %947 = vmatprep.subr.bf16.mxu0 0
        %948 = vmatpush1.bf16.msra.mxu0 0
        %949 = vmatprep.subr.bf16.mxu0 0
        %950 = vmatpush1.bf16.msra.mxu0 0
        %951 = vmatprep.subr.bf16.mxu0 0
        %952 = vmatpush1.bf16.msra.mxu0 0
        %953 = vmatprep.subr.bf16.mxu0 0
        %954 = vmatpush1.bf16.msra.mxu0 0
        %955 = vmatprep.subr.bf16.mxu0 0
        %956 = vmatpush1.bf16.msra.mxu0 0
        %957 = vmatprep.subr.bf16.mxu0 0
        %958 = vmatpush1.bf16.msra.mxu0 0
        %959 = vmatprep.subr.bf16.mxu0 0
        %960 = vmatpush1.bf16.msra.mxu0 0
        %961 = vmatprep.subr.bf16.mxu0 0
        %962 = vmatpush1.bf16.msra.mxu0 0
        %963 = vmatprep.subr.bf16.mxu0 0
        %964 = vmatpush1.bf16.msra.mxu0 0
        %965 = vmatprep.subr.bf16.mxu0 0
        %966 = vmatpush1.bf16.msra.mxu0 0
        %967 = vmatprep.subr.bf16.mxu0 0
        %968 = vmatpush1.bf16.msra.mxu0 0
        %969 = vmatprep.subr.bf16.mxu0 0
        %970 = vmatpush1.bf16.msra.mxu0 0
        %971 = vmatprep.mubr.bf16.mxu0 0
        %972 = vmatmul.mubr.bf16.gmra.mrb[0].mxu0 %v937
        %v973 = vpop.f32.mrb[0].mxu0
        %v974 = vadd.f32 %v250, %v973
        %v975 = vpop.f32.mrb[0].mxu0
        %v976 = vpop.f32.mrb[0].mxu0
        %v977 = vpop.f32.mrb[0].mxu0
        %978 = vdwg.mxu0
        %v979 = vmax.f32 %v974, 0.0
        %v980 = vpack.c.bf16 %v979, %v979
        %v997 = vunpack.c.l.b16 %v289
        %v998 = vunpack.c.l.b16 %v290
        %v999 = vunpack.c.l.b16 %v291
        %v1000 = vunpack.c.l.b16 %v292
        %v1001 = vunpack.c.l.b16 %v293
        %v1002 = vunpack.c.l.b16 %v294
        %v1003 = vunpack.c.l.b16 %v295
        %v1004 = vunpack.c.l.b16 %v296
        %v1005 = vunpack.c.l.b16 %v297
        %v1006 = vunpack.c.l.b16 %v298
        %v1007 = vunpack.c.l.b16 %v299
        %v1008 = vunpack.c.l.b16 %v300
        %v1009 = vunpack.c.l.b16 %v301
        %v1010 = vunpack.c.l.b16 %v302
        %v1011 = vunpack.c.l.b16 %v303
        %v1012 = vunpack.c.l.b16 %v304
        %v1013 = vpack.c.b16 %v998, %v997
        %v1014 = vpack.c.b16 %v1000, %v999
        %v1015 = vpack.c.b16 %v1002, %v1001
        %v1016 = vpack.c.b16 %v1004, %v1003
        %v1017 = vpack.c.b16 %v1006, %v1005
        %v1018 = vpack.c.b16 %v1008, %v1007
        %v1019 = vpack.c.b16 %v1010, %v1009
        %v1020 = vpack.c.b16 %v1012, %v1011
        %1029 = vrot.lane.b32.xlu0 %v240, 64
        %v1030 = vpop.permute.xlu0 %1029
        %1032 = vmatprep.subr.bf16.mxu0 0
        %1033 = vmatpush1.bf16.msra.mxu0 %v1013
        %1034 = vmatprep.subr.bf16.mxu0 0
        %1035 = vmatpush1.bf16.msra.mxu0 %v1014
        %1036 = vmatprep.subr.bf16.mxu0 0
        %1037 = vmatpush1.bf16.msra.mxu0 %v1015
        %1038 = vmatprep.subr.bf16.mxu0 0
        %1039 = vmatpush1.bf16.msra.mxu0 %v1016
        %1040 = vmatprep.subr.bf16.mxu0 0
        %1041 = vmatpush1.bf16.msra.mxu0 %v1017
        %1042 = vmatprep.subr.bf16.mxu0 0
        %1043 = vmatpush1.bf16.msra.mxu0 %v1018
        %1044 = vmatprep.subr.bf16.mxu0 0
        %1045 = vmatpush1.bf16.msra.mxu0 %v1019
        %1046 = vmatprep.subr.bf16.mxu0 0
        %1047 = vmatpush1.bf16.msra.mxu0 %v1020
        %1048 = vmatprep.subr.bf16.mxu0 0
        %1049 = vmatpush1.bf16.msra.mxu0 0
        %1050 = vmatprep.subr.bf16.mxu0 0
        %1051 = vmatpush1.bf16.msra.mxu0 0
        %1052 = vmatprep.subr.bf16.mxu0 0
        %1053 = vmatpush1.bf16.msra.mxu0 0
        %1054 = vmatprep.subr.bf16.mxu0 0
        %1055 = vmatpush1.bf16.msra.mxu0 0
        %1056 = vmatprep.subr.bf16.mxu0 0
        %1057 = vmatpush1.bf16.msra.mxu0 0
        %1058 = vmatprep.subr.bf16.mxu0 0
        %1059 = vmatpush1.bf16.msra.mxu0 0
        %1060 = vmatprep.subr.bf16.mxu0 0
        %1061 = vmatpush1.bf16.msra.mxu0 0
        %1062 = vmatprep.subr.bf16.mxu0 0
        %1063 = vmatpush1.bf16.msra.mxu0 0
        %1064 = vmatprep.mubr.bf16.mxu0 0
        %1065 = vmatmul.mubr.bf16.gmra.mrb[0].mxu0 %v980
        %v1066 = vpop.f32.mrb[0].mxu0
        %v1067 = vadd.f32 %v1030, %v1066
        %v1068 = vpop.f32.mrb[0].mxu0
        %v1069 = vpop.f32.mrb[0].mxu0
        %v1070 = vpop.f32.mrb[0].mxu0
        %1071 = vdwg.mxu0
        %v1072 = vadd.f32 %v1067, %v895
        %v1073 = vsel %vm329, %v1072, 0.0
        %1074 = vadd.xlane.f32.xlu0 %v1073
        %v1075 = vpop.xlane.xlu0 %1074
        %v1076 = vmul.f32 %v1075, %v354
        %v1077 = vsub.f32 %v1072, %v1076
        %v1078 = vmul.f32 %v1077, %v1077
        %v1079 = vsel %vm329, %v1078, 0.0
        %1080 = vadd.xlane.f32.xlu0 %v1079
        %v1081 = vpop.xlane.xlu0 %1080
        %v1082 = vmul.f32 %v1081, %v354
        %v1083 = vadd.f32 %v1082, 1e-05
        %v1084 = vrsqrt.pop %v1083
        %v1085 = vmul.f32 %v1077, %v1084
        %v1086 = vmul.f32 %v1085, %v601
        %v1087 = vadd.f32 %v1086, %v605
        %v1088 = vpack.c.bf16 %v1087, %v1087
        %v1090 = vsel %vm329, %v1088, 0
        %1092 = vmatprep.subr.bf16.mxu0 0
        %1093 = vmatpush1.bf16.msra.mxu0 %v617
        %1094 = vmatprep.subr.bf16.mxu0 0
        %1095 = vmatpush1.bf16.msra.mxu0 %v618
        %1096 = vmatprep.subr.bf16.mxu0 0
        %1097 = vmatpush1.bf16.msra.mxu0 0
        %1098 = vmatprep.subr.bf16.mxu0 0
        %1099 = vmatpush1.bf16.msra.mxu0 0
        %1100 = vmatprep.subr.bf16.mxu0 0
        %1101 = vmatpush1.bf16.msra.mxu0 0
        %1102 = vmatprep.subr.bf16.mxu0 0
        %1103 = vmatpush1.bf16.msra.mxu0 0
        %1104 = vmatprep.subr.bf16.mxu0 0
        %1105 = vmatpush1.bf16.msra.mxu0 0
        %1106 = vmatprep.subr.bf16.mxu0 0
        %1107 = vmatpush1.bf16.msra.mxu0 0
        %1108 = vmatprep.subr.bf16.mxu0 0
        %1109 = vmatpush1.bf16.msra.mxu0 0
        %1110 = vmatprep.subr.bf16.mxu0 0
        %1111 = vmatpush1.bf16.msra.mxu0 0
        %1112 = vmatprep.subr.bf16.mxu0 0
        %1113 = vmatpush1.bf16.msra.mxu0 0
        %1114 = vmatprep.subr.bf16.mxu0 0
        %1115 = vmatpush1.bf16.msra.mxu0 0
        %1116 = vmatprep.subr.bf16.mxu0 0
        %1117 = vmatpush1.bf16.msra.mxu0 0
        %1118 = vmatprep.subr.bf16.mxu0 0
        %1119 = vmatpush1.bf16.msra.mxu0 0
        %1120 = vmatprep.subr.bf16.mxu0 0
        %1121 = vmatpush1.bf16.msra.mxu0 0
        %1122 = vmatprep.subr.bf16.mxu0 0
        %1123 = vmatpush1.bf16.msra.mxu0 0
        %1124 = vmatprep.mubr.bf16.mxu0 0
        %1125 = vmatmul.mubr.bf16.gmra.mrb[0].mxu0 %v1090
        %v1126 = vpop.f32.mrb[0].mxu0
        %v1127 = vadd.f32 0.0, %v1126
        %v1128 = vpop.f32.mrb[0].mxu0
        %v1129 = vpop.f32.mrb[0].mxu0
        %v1130 = vpop.f32.mrb[0].mxu0
        %1131 = vdwg.mxu0
        %v1132 = vpack.c.bf16 %v1127, %v1127
        %v1134 = vsel %vm329, %v1132, 0
        %1136 = vmatprep.subr.bf16.mxu0 0
        %1137 = vmatpush1.bf16.msra.mxu0 %v580
        %1138 = vmatprep.subr.bf16.mxu0 0
        %1139 = vmatpush1.bf16.msra.mxu0 %v581
        %1140 = vmatprep.subr.bf16.mxu0 0
        %1141 = vmatpush1.bf16.msra.mxu0 0
        %1142 = vmatprep.subr.bf16.mxu0 0
        %1143 = vmatpush1.bf16.msra.mxu0 0
        %1144 = vmatprep.subr.bf16.mxu0 0
        %1145 = vmatpush1.bf16.msra.mxu0 0
        %1146 = vmatprep.subr.bf16.mxu0 0
        %1147 = vmatpush1.bf16.msra.mxu0 0
        %1148 = vmatprep.subr.bf16.mxu0 0
        %1149 = vmatpush1.bf16.msra.mxu0 0
        %1150 = vmatprep.subr.bf16.mxu0 0
        %1151 = vmatpush1.bf16.msra.mxu0 0
        %1152 = vmatprep.subr.bf16.mxu0 0
        %1153 = vmatpush1.bf16.msra.mxu0 0
        %1154 = vmatprep.subr.bf16.mxu0 0
        %1155 = vmatpush1.bf16.msra.mxu0 0
        %1156 = vmatprep.subr.bf16.mxu0 0
        %1157 = vmatpush1.bf16.msra.mxu0 0
        %1158 = vmatprep.subr.bf16.mxu0 0
        %1159 = vmatpush1.bf16.msra.mxu0 0
        %1160 = vmatprep.subr.bf16.mxu0 0
        %1161 = vmatpush1.bf16.msra.mxu0 0
        %1162 = vmatprep.subr.bf16.mxu0 0
        %1163 = vmatpush1.bf16.msra.mxu0 0
        %1164 = vmatprep.subr.bf16.mxu0 0
        %1165 = vmatpush1.bf16.msra.mxu0 0
        %1166 = vmatprep.subr.bf16.mxu0 0
        %1167 = vmatpush1.bf16.msra.mxu0 0
        %1168 = vmatprep.mubr.bf16.mxu0 0
        %1169 = vmatmul.mubr.bf16.gmra.mrb[0].mxu0 %v1134
        %v1170 = vpop.f32.mrb[0].mxu0
        %v1171 = vadd.f32 0.0, %v1170
        %v1172 = vpop.f32.mrb[0].mxu0
        %v1173 = vpop.f32.mrb[0].mxu0
        %v1174 = vpop.f32.mrb[0].mxu0
        %1175 = vdwg.mxu0
        %v1176 = vmul.f32 %v1171, 0.17677669
        %v1177 = vsel %vm709, %v1176, -inf
        %v1178 = vrot.slane %v1177, 4
        %v1179 = vmax.f32 %v1177, %v1178
        %v1180 = vrot.slane %v1179, 2
        %v1181 = vmax.f32 %v1179, %v1180
        %v1182 = vrot.slane %v1181, 1
        %v1183 = vmax.f32 %v1181, %v1182
        %v1184 = vsub.f32 %v1176, %v1183
        %v1185 = vmul.f32 %v1184, 1.442695
        %v1186 = vpow.pop %v1185
        %v1187 = vsel %vm709, %v1186, 0.0
        %v1188 = vrot.slane %v1187, 4
        %v1189 = vadd.f32 %v1187, %v1188
        %v1190 = vrot.slane %v1189, 2
        %v1191 = vadd.f32 %v1189, %v1190
        %v1192 = vrot.slane %v1191, 1
        %v1193 = vadd.f32 %v1191, %v1192
        %v1194 = vrcp.pop %v1193
        %v1195 = vmul.f32 %v1186, %v1194
        %v1196 = vadd.f32 %v1195, 1e-08
        %v1197 = vsel %vm709, %v1196, 0.0
        %1198 = vadd.xlane.f32.xlu0 %v1197
        %v1199 = vpop.xlane.xlu0 %1198
        %v1200 = vrcp.pop %v1199
        %v1201 = vmul.f32 %v1196, %v1200
        %v1202 = vpack.c.bf16 %v1201, %v1201
        %v1204 = vsel %vm709, %v1202, 0
        %1206 = vmatprep.subr.bf16.mxu0 0
        %1207 = vmatpush1.bf16.msra.mxu0 %v741
        %1208 = vmatprep.subr.bf16.mxu0 0
        %1209 = vmatpush1.bf16.msra.mxu0 %v743
        %1210 = vmatprep.subr.bf16.mxu0 0
        %1211 = vmatpush1.bf16.msra.mxu0 %v745
        %1212 = vmatprep.subr.bf16.mxu0 0
        %1213 = vmatpush1.bf16.msra.mxu0 %v747
        %1214 = vmatprep.subr.bf16.mxu0 0
        %1215 = vmatpush1.bf16.msra.mxu0 0
        %1216 = vmatprep.subr.bf16.mxu0 0
        %1217 = vmatpush1.bf16.msra.mxu0 0
        %1218 = vmatprep.subr.bf16.mxu0 0
        %1219 = vmatpush1.bf16.msra.mxu0 0
        %1220 = vmatprep.subr.bf16.mxu0 0
        %1221 = vmatpush1.bf16.msra.mxu0 0
        %1222 = vmatprep.subr.bf16.mxu0 0
        %1223 = vmatpush1.bf16.msra.mxu0 0
        %1224 = vmatprep.subr.bf16.mxu0 0
        %1225 = vmatpush1.bf16.msra.mxu0 0
        %1226 = vmatprep.subr.bf16.mxu0 0
        %1227 = vmatpush1.bf16.msra.mxu0 0
        %1228 = vmatprep.subr.bf16.mxu0 0
        %1229 = vmatpush1.bf16.msra.mxu0 0
        %1230 = vmatprep.subr.bf16.mxu0 0
        %1231 = vmatpush1.bf16.msra.mxu0 0
        %1232 = vmatprep.subr.bf16.mxu0 0
        %1233 = vmatpush1.bf16.msra.mxu0 0
        %1234 = vmatprep.subr.bf16.mxu0 0
        %1235 = vmatpush1.bf16.msra.mxu0 0
        %1236 = vmatprep.subr.bf16.mxu0 0
        %1237 = vmatpush1.bf16.msra.mxu0 0
        %1238 = vmatprep.mubr.bf16.mxu0 0
        %1239 = vmatmul.mubr.bf16.gmra.mrb[0].mxu0 %v1204
        %v1240 = vpop.f32.mrb[0].mxu0
        %v1241 = vadd.f32 0.0, %v1240
        %v1242 = vpop.f32.mrb[0].mxu0
        %v1243 = vpop.f32.mrb[0].mxu0
        %v1244 = vpop.f32.mrb[0].mxu0
        %1245 = vdwg.mxu0
        %1247 = vrot.lane.b32.xlu0 %v1072, 32
        %v1248 = vpop.permute.xlu0 %1247
        %v1250 = vsel %vm329, %v1241, %v1248
        %v1251 = vpack.c.bf16 %v1250, %v1250
        %v1253 = vsel %vm709, %v1251, 0
        %1255 = vmatprep.subr.bf16.mxu0 0
        %1256 = vmatpush1.bf16.msra.mxu0 %v817
        %1257 = vmatprep.subr.bf16.mxu0 0
        %1258 = vmatpush1.bf16.msra.mxu0 %v818
        %1259 = vmatprep.subr.bf16.mxu0 0
        %1260 = vmatpush1.bf16.msra.mxu0 %v819
        %1261 = vmatprep.subr.bf16.mxu0 0
        %1262 = vmatpush1.bf16.msra.mxu0 %v820
        %1263 = vmatprep.subr.bf16.mxu0 0
        %1264 = vmatpush1.bf16.msra.mxu0 0
        %1265 = vmatprep.subr.bf16.mxu0 0
        %1266 = vmatpush1.bf16.msra.mxu0 0
        %1267 = vmatprep.subr.bf16.mxu0 0
        %1268 = vmatpush1.bf16.msra.mxu0 0
        %1269 = vmatprep.subr.bf16.mxu0 0
        %1270 = vmatpush1.bf16.msra.mxu0 0
        %1271 = vmatprep.subr.bf16.mxu0 0
        %1272 = vmatpush1.bf16.msra.mxu0 0
        %1273 = vmatprep.subr.bf16.mxu0 0
        %1274 = vmatpush1.bf16.msra.mxu0 0
        %1275 = vmatprep.subr.bf16.mxu0 0
        %1276 = vmatpush1.bf16.msra.mxu0 0
        %1277 = vmatprep.subr.bf16.mxu0 0
        %1278 = vmatpush1.bf16.msra.mxu0 0
        %1279 = vmatprep.subr.bf16.mxu0 0
        %1280 = vmatpush1.bf16.msra.mxu0 0
        %1281 = vmatprep.subr.bf16.mxu0 0
        %1282 = vmatpush1.bf16.msra.mxu0 0
        %1283 = vmatprep.subr.bf16.mxu0 0
        %1284 = vmatpush1.bf16.msra.mxu0 0
        %1285 = vmatprep.subr.bf16.mxu0 0
        %1286 = vmatpush1.bf16.msra.mxu0 0
        %1287 = vmatprep.mubr.bf16.mxu0 0
        %1288 = vmatmul.mubr.bf16.gmra.mrb[0].mxu0 %v1253
        %v1289 = vpop.f32.mrb[0].mxu0
        %v1290 = vadd.f32 %v245, %v1289
        %v1291 = vpop.f32.mrb[0].mxu0
        %v1292 = vpop.f32.mrb[0].mxu0
        %v1293 = vpop.f32.mrb[0].mxu0
        %1294 = vdwg.mxu0
        %v1295 = vxor.u32 %v1290, 2147483648
        %v1296 = vmul.f32 %v1295, 1.442695
        %v1297 = vpow.pop %v1296
        %v1298 = vadd.f32 %v1297, 1.0
        %v1299 = vrcp.pop %v1298
        %v1300 = vmul.f32 1.0, %v1299
        %v1301 = vsub.f32 1.0, %v1300
        %1303 = vrot.lane.b32.xlu0 %v1290, 32
        %v1304 = vpop.permute.xlu0 %1303
        %v1306 = vmul.f32 %v1301, %v1304
        %1308 = vrot.lane.b32.xlu0 %v1306, 64
        %v1309 = vpop.permute.xlu0 %1308
        %v1311 = vsub.f32 %v1290, %v1309
        %v1312 = vtanh.pop %v1311
        %1314 = vrot.lane.b32.xlu0 %v1312, 96
        %v1315 = vpop.permute.xlu0 %1314
        %v1317 = vmul.f32 %v1301, %v1315
        %v1318 = vmul.f32 %v1300, %v1248
        %v1319 = vadd.f32 %v1317, %v1318
        %1321 = vrot.lane.b32.xlu0 %v1319, 96
        %v1322 = vpop.permute.xlu0 %1321
        %v1324 = vsel %vm329, %v1322, 0.0
        %1325 = vadd.xlane.f32.xlu0 %v1324
        %v1326 = vpop.xlane.xlu0 %1325
        %v1327 = vmul.f32 %v1326, %v354
        %v1328 = vsub.f32 %v1319, %v1327
        %v1329 = vmul.f32 %v1328, %v1328
        %1331 = vrot.lane.b32.xlu0 %v1329, 96
        %v1332 = vpop.permute.xlu0 %1331
        %v1334 = vsel %vm329, %v1332, 0.0
        %1335 = vadd.xlane.f32.xlu0 %v1334
        %v1336 = vpop.xlane.xlu0 %1335
        %v1337 = vmul.f32 %v1336, %v354
        %v1338 = vadd.f32 %v1337, 1e-05
        %v1339 = vrsqrt.pop %v1338
        %v1340 = vmul.f32 %v1328, %v1339
        %v1341 = vmul.f32 %v1340, %v916
        %v1342 = vadd.f32 %v1341, %v240
        %v1343 = vpack.c.bf16 %v1342, %v1342
        %1345 = vrot.lane.b32.xlu0 %v1343, 96
        %v1346 = vpop.permute.xlu0 %1345
        %v1348 = vsel %vm329, %v1346, 0
        %1350 = vmatprep.subr.bf16.mxu0 0
        %1351 = vmatpush1.bf16.msra.mxu0 %v932
        %1352 = vmatprep.subr.bf16.mxu0 0
        %1353 = vmatpush1.bf16.msra.mxu0 %v933
        %1354 = vmatprep.subr.bf16.mxu0 0
        %1355 = vmatpush1.bf16.msra.mxu0 0
        %1356 = vmatprep.subr.bf16.mxu0 0
        %1357 = vmatpush1.bf16.msra.mxu0 0
        %1358 = vmatprep.subr.bf16.mxu0 0
        %1359 = vmatpush1.bf16.msra.mxu0 0
        %1360 = vmatprep.subr.bf16.mxu0 0
        %1361 = vmatpush1.bf16.msra.mxu0 0
        %1362 = vmatprep.subr.bf16.mxu0 0
        %1363 = vmatpush1.bf16.msra.mxu0 0
        %1364 = vmatprep.subr.bf16.mxu0 0
        %1365 = vmatpush1.bf16.msra.mxu0 0
        %1366 = vmatprep.subr.bf16.mxu0 0
        %1367 = vmatpush1.bf16.msra.mxu0 0
        %1368 = vmatprep.subr.bf16.mxu0 0
        %1369 = vmatpush1.bf16.msra.mxu0 0
        %1370 = vmatprep.subr.bf16.mxu0 0
        %1371 = vmatpush1.bf16.msra.mxu0 0
        %1372 = vmatprep.subr.bf16.mxu0 0
        %1373 = vmatpush1.bf16.msra.mxu0 0
        %1374 = vmatprep.subr.bf16.mxu0 0
        %1375 = vmatpush1.bf16.msra.mxu0 0
        %1376 = vmatprep.subr.bf16.mxu0 0
        %1377 = vmatpush1.bf16.msra.mxu0 0
        %1378 = vmatprep.subr.bf16.mxu0 0
        %1379 = vmatpush1.bf16.msra.mxu0 0
        %1380 = vmatprep.subr.bf16.mxu0 0
        %1381 = vmatpush1.bf16.msra.mxu0 0
        %1382 = vmatprep.mubr.bf16.mxu0 0
        %1383 = vmatmul.mubr.bf16.gmra.mrb[0].mxu0 %v1348
        %v1384 = vpop.f32.mrb[0].mxu0
        %v1385 = vadd.f32 %v250, %v1384
        %v1386 = vpop.f32.mrb[0].mxu0
        %v1387 = vpop.f32.mrb[0].mxu0
        %v1388 = vpop.f32.mrb[0].mxu0
        %1389 = vdwg.mxu0
        %v1390 = vmax.f32 %v1385, 0.0
        %v1391 = vpack.c.bf16 %v1390, %v1390
        %1392 = vmatprep.subr.bf16.mxu0 0
        %1393 = vmatpush1.bf16.msra.mxu0 %v1013
        %1394 = vmatprep.subr.bf16.mxu0 0
        %1395 = vmatpush1.bf16.msra.mxu0 %v1014
        %1396 = vmatprep.subr.bf16.mxu0 0
        %1397 = vmatpush1.bf16.msra.mxu0 %v1015
        %1398 = vmatprep.subr.bf16.mxu0 0
        %1399 = vmatpush1.bf16.msra.mxu0 %v1016
        %1400 = vmatprep.subr.bf16.mxu0 0
        %1401 = vmatpush1.bf16.msra.mxu0 %v1017
        %1402 = vmatprep.subr.bf16.mxu0 0
        %1403 = vmatpush1.bf16.msra.mxu0 %v1018
        %1404 = vmatprep.subr.bf16.mxu0 0
        %1405 = vmatpush1.bf16.msra.mxu0 %v1019
        %1406 = vmatprep.subr.bf16.mxu0 0
        %1407 = vmatpush1.bf16.msra.mxu0 %v1020
        %1408 = vmatprep.subr.bf16.mxu0 0
        %1409 = vmatpush1.bf16.msra.mxu0 0
        %1410 = vmatprep.subr.bf16.mxu0 0
        %1411 = vmatpush1.bf16.msra.mxu0 0
        %1412 = vmatprep.subr.bf16.mxu0 0
        %1413 = vmatpush1.bf16.msra.mxu0 0
        %1414 = vmatprep.subr.bf16.mxu0 0
        %1415 = vmatpush1.bf16.msra.mxu0 0
        %1416 = vmatprep.subr.bf16.mxu0 0
        %1417 = vmatpush1.bf16.msra.mxu0 0
        %1418 = vmatprep.subr.bf16.mxu0 0
        %1419 = vmatpush1.bf16.msra.mxu0 0
        %1420 = vmatprep.subr.bf16.mxu0 0
        %1421 = vmatpush1.bf16.msra.mxu0 0
        %1422 = vmatprep.subr.bf16.mxu0 0
        %1423 = vmatpush1.bf16.msra.mxu0 0
        %1424 = vmatprep.mubr.bf16.mxu0 0
        %1425 = vmatmul.mubr.bf16.gmra.mrb[0].mxu0 %v1391
        %v1426 = vpop.f32.mrb[0].mxu0
        %v1427 = vadd.f32 %v1030, %v1426
        %v1428 = vpop.f32.mrb[0].mxu0
        %v1429 = vpop.f32.mrb[0].mxu0
        %v1430 = vpop.f32.mrb[0].mxu0
        %1431 = vdwg.mxu0
        %v1432 = vadd.f32 %v1427, %v1322
        %v1433 = vsel %vm329, %v1432, 0.0
        %1434 = vadd.xlane.f32.xlu0 %v1433
        %v1435 = vpop.xlane.xlu0 %1434
        %v1436 = vmul.f32 %v1435, %v354
        %v1437 = vsub.f32 %v1432, %v1436
        %v1438 = vmul.f32 %v1437, %v1437
        %v1439 = vsel %vm329, %v1438, 0.0
        %1440 = vadd.xlane.f32.xlu0 %v1439
        %v1441 = vpop.xlane.xlu0 %1440
        %v1442 = vmul.f32 %v1441, %v354
        %v1443 = vadd.f32 %v1442, 1e-05
        %v1444 = vrsqrt.pop %v1443
        %v1445 = vmul.f32 %v1437, %v1444
        %v1446 = vmul.f32 %v1445, %v601
        %v1447 = vadd.f32 %v1446, %v605
        %v1448 = vpack.c.bf16 %v1447, %v1447
        %v1450 = vsel %vm329, %v1448, 0
        %1452 = vmatprep.subr.bf16.mxu0 0
        %1453 = vmatpush1.bf16.msra.mxu0 %v617
        %1454 = vmatprep.subr.bf16.mxu0 0
        %1455 = vmatpush1.bf16.msra.mxu0 %v618
        %1456 = vmatprep.subr.bf16.mxu0 0
        %1457 = vmatpush1.bf16.msra.mxu0 0
        %1458 = vmatprep.subr.bf16.mxu0 0
        %1459 = vmatpush1.bf16.msra.mxu0 0
        %1460 = vmatprep.subr.bf16.mxu0 0
        %1461 = vmatpush1.bf16.msra.mxu0 0
        %1462 = vmatprep.subr.bf16.mxu0 0
        %1463 = vmatpush1.bf16.msra.mxu0 0
        %1464 = vmatprep.subr.bf16.mxu0 0
        %1465 = vmatpush1.bf16.msra.mxu0 0
        %1466 = vmatprep.subr.bf16.mxu0 0
        %1467 = vmatpush1.bf16.msra.mxu0 0
        %1468 = vmatprep.subr.bf16.mxu0 0
        %1469 = vmatpush1.bf16.msra.mxu0 0
        %1470 = vmatprep.subr.bf16.mxu0 0
        %1471 = vmatpush1.bf16.msra.mxu0 0
        %1472 = vmatprep.subr.bf16.mxu0 0
        %1473 = vmatpush1.bf16.msra.mxu0 0
        %1474 = vmatprep.subr.bf16.mxu0 0
        %1475 = vmatpush1.bf16.msra.mxu0 0
        %1476 = vmatprep.subr.bf16.mxu0 0
        %1477 = vmatpush1.bf16.msra.mxu0 0
        %1478 = vmatprep.subr.bf16.mxu0 0
        %1479 = vmatpush1.bf16.msra.mxu0 0
        %1480 = vmatprep.subr.bf16.mxu0 0
        %1481 = vmatpush1.bf16.msra.mxu0 0
        %1482 = vmatprep.subr.bf16.mxu0 0
        %1483 = vmatpush1.bf16.msra.mxu0 0
        %1484 = vmatprep.mubr.bf16.mxu0 0
        %1485 = vmatmul.mubr.bf16.gmra.mrb[0].mxu0 %v1450
        %v1486 = vpop.f32.mrb[0].mxu0
        %v1487 = vadd.f32 0.0, %v1486
        %v1488 = vpop.f32.mrb[0].mxu0
        %v1489 = vpop.f32.mrb[0].mxu0
        %v1490 = vpop.f32.mrb[0].mxu0
        %1491 = vdwg.mxu0
        %v1492 = vpack.c.bf16 %v1487, %v1487
        %v1494 = vsel %vm329, %v1492, 0
        %1496 = vmatprep.subr.bf16.mxu0 0
        %1497 = vmatpush1.bf16.msra.mxu0 %v580
        %1498 = vmatprep.subr.bf16.mxu0 0
        %1499 = vmatpush1.bf16.msra.mxu0 %v581
        %1500 = vmatprep.subr.bf16.mxu0 0
        %1501 = vmatpush1.bf16.msra.mxu0 0
        %1502 = vmatprep.subr.bf16.mxu0 0
        %1503 = vmatpush1.bf16.msra.mxu0 0
        %1504 = vmatprep.subr.bf16.mxu0 0
        %1505 = vmatpush1.bf16.msra.mxu0 0
        %1506 = vmatprep.subr.bf16.mxu0 0
        %1507 = vmatpush1.bf16.msra.mxu0 0
        %1508 = vmatprep.subr.bf16.mxu0 0
        %1509 = vmatpush1.bf16.msra.mxu0 0
        %1510 = vmatprep.subr.bf16.mxu0 0
        %1511 = vmatpush1.bf16.msra.mxu0 0
        %1512 = vmatprep.subr.bf16.mxu0 0
        %1513 = vmatpush1.bf16.msra.mxu0 0
        %1514 = vmatprep.subr.bf16.mxu0 0
        %1515 = vmatpush1.bf16.msra.mxu0 0
        %1516 = vmatprep.subr.bf16.mxu0 0
        %1517 = vmatpush1.bf16.msra.mxu0 0
        %1518 = vmatprep.subr.bf16.mxu0 0
        %1519 = vmatpush1.bf16.msra.mxu0 0
        %1520 = vmatprep.subr.bf16.mxu0 0
        %1521 = vmatpush1.bf16.msra.mxu0 0
        %1522 = vmatprep.subr.bf16.mxu0 0
        %1523 = vmatpush1.bf16.msra.mxu0 0
        %1524 = vmatprep.subr.bf16.mxu0 0
        %1525 = vmatpush1.bf16.msra.mxu0 0
        %1526 = vmatprep.subr.bf16.mxu0 0
        %1527 = vmatpush1.bf16.msra.mxu0 0
        %1528 = vmatprep.mubr.bf16.mxu0 0
        %1529 = vmatmul.mubr.bf16.gmra.mrb[0].mxu0 %v1494
        %v1530 = vpop.f32.mrb[0].mxu0
        %v1531 = vadd.f32 0.0, %v1530
        %v1532 = vpop.f32.mrb[0].mxu0
        %v1533 = vpop.f32.mrb[0].mxu0
        %v1534 = vpop.f32.mrb[0].mxu0
        %1535 = vdwg.mxu0
        %v1536 = vmul.f32 %v1531, 0.17677669
        %v1537 = vsel %vm709, %v1536, -inf
        %v1538 = vrot.slane %v1537, 4
        %v1539 = vmax.f32 %v1537, %v1538
        %v1540 = vrot.slane %v1539, 2
        %v1541 = vmax.f32 %v1539, %v1540
        %v1542 = vrot.slane %v1541, 1
        %v1543 = vmax.f32 %v1541, %v1542
        %v1544 = vsub.f32 %v1536, %v1543
        %v1545 = vmul.f32 %v1544, 1.442695
        %v1546 = vpow.pop %v1545
        %v1547 = vsel %vm709, %v1546, 0.0
        %v1548 = vrot.slane %v1547, 4
        %v1549 = vadd.f32 %v1547, %v1548
        %v1550 = vrot.slane %v1549, 2
        %v1551 = vadd.f32 %v1549, %v1550
        %v1552 = vrot.slane %v1551, 1
        %v1553 = vadd.f32 %v1551, %v1552
        %v1554 = vrcp.pop %v1553
        %v1555 = vmul.f32 %v1546, %v1554
        %v1556 = vadd.f32 %v1555, 1e-08
        %v1557 = vsel %vm709, %v1556, 0.0
        %1558 = vadd.xlane.f32.xlu0 %v1557
        %v1559 = vpop.xlane.xlu0 %1558
        %v1560 = vrcp.pop %v1559
        %v1561 = vmul.f32 %v1556, %v1560
        %v1562 = vpack.c.bf16 %v1561, %v1561
        %v1564 = vsel %vm709, %v1562, 0
        %1566 = vmatprep.subr.bf16.mxu0 0
        %1567 = vmatpush1.bf16.msra.mxu0 %v741
        %1568 = vmatprep.subr.bf16.mxu0 0
        %1569 = vmatpush1.bf16.msra.mxu0 %v743
        %1570 = vmatprep.subr.bf16.mxu0 0
        %1571 = vmatpush1.bf16.msra.mxu0 %v745
        %1572 = vmatprep.subr.bf16.mxu0 0
        %1573 = vmatpush1.bf16.msra.mxu0 %v747
        %1574 = vmatprep.subr.bf16.mxu0 0
        %1575 = vmatpush1.bf16.msra.mxu0 0
        %1576 = vmatprep.subr.bf16.mxu0 0
        %1577 = vmatpush1.bf16.msra.mxu0 0
        %1578 = vmatprep.subr.bf16.mxu0 0
        %1579 = vmatpush1.bf16.msra.mxu0 0
        %1580 = vmatprep.subr.bf16.mxu0 0
        %1581 = vmatpush1.bf16.msra.mxu0 0
        %1582 = vmatprep.subr.bf16.mxu0 0
        %1583 = vmatpush1.bf16.msra.mxu0 0
        %1584 = vmatprep.subr.bf16.mxu0 0
        %1585 = vmatpush1.bf16.msra.mxu0 0
        %1586 = vmatprep.subr.bf16.mxu0 0
        %1587 = vmatpush1.bf16.msra.mxu0 0
        %1588 = vmatprep.subr.bf16.mxu0 0
        %1589 = vmatpush1.bf16.msra.mxu0 0
        %1590 = vmatprep.subr.bf16.mxu0 0
        %1591 = vmatpush1.bf16.msra.mxu0 0
        %1592 = vmatprep.subr.bf16.mxu0 0
        %1593 = vmatpush1.bf16.msra.mxu0 0
        %1594 = vmatprep.subr.bf16.mxu0 0
        %1595 = vmatpush1.bf16.msra.mxu0 0
        %1596 = vmatprep.subr.bf16.mxu0 0
        %1597 = vmatpush1.bf16.msra.mxu0 0
        %1598 = vmatprep.mubr.bf16.mxu0 0
        %1599 = vmatmul.mubr.bf16.gmra.mrb[0].mxu0 %v1564
        %v1600 = vpop.f32.mrb[0].mxu0
        %v1601 = vadd.f32 0.0, %v1600
        %v1602 = vpop.f32.mrb[0].mxu0
        %v1603 = vpop.f32.mrb[0].mxu0
        %v1604 = vpop.f32.mrb[0].mxu0
        %1605 = vdwg.mxu0
        %1607 = vrot.lane.b32.xlu0 %v1432, 32
        %v1608 = vpop.permute.xlu0 %1607
        %v1610 = vsel %vm329, %v1601, %v1608
        %v1611 = vpack.c.bf16 %v1610, %v1610
        %v1613 = vsel %vm709, %v1611, 0
        %1615 = vmatprep.subr.bf16.mxu0 0
        %1616 = vmatpush1.bf16.msra.mxu0 %v817
        %1617 = vmatprep.subr.bf16.mxu0 0
        %1618 = vmatpush1.bf16.msra.mxu0 %v818
        %1619 = vmatprep.subr.bf16.mxu0 0
        %1620 = vmatpush1.bf16.msra.mxu0 %v819
        %1621 = vmatprep.subr.bf16.mxu0 0
        %1622 = vmatpush1.bf16.msra.mxu0 %v820
        %1623 = vmatprep.subr.bf16.mxu0 0
        %1624 = vmatpush1.bf16.msra.mxu0 0
        %1625 = vmatprep.subr.bf16.mxu0 0
        %1626 = vmatpush1.bf16.msra.mxu0 0
        %1627 = vmatprep.subr.bf16.mxu0 0
        %1628 = vmatpush1.bf16.msra.mxu0 0
        %1629 = vmatprep.subr.bf16.mxu0 0
        %1630 = vmatpush1.bf16.msra.mxu0 0
        %1631 = vmatprep.subr.bf16.mxu0 0
        %1632 = vmatpush1.bf16.msra.mxu0 0
        %1633 = vmatprep.subr.bf16.mxu0 0
        %1634 = vmatpush1.bf16.msra.mxu0 0
        %1635 = vmatprep.subr.bf16.mxu0 0
        %1636 = vmatpush1.bf16.msra.mxu0 0
        %1637 = vmatprep.subr.bf16.mxu0 0
        %1638 = vmatpush1.bf16.msra.mxu0 0
        %1639 = vmatprep.subr.bf16.mxu0 0
        %1640 = vmatpush1.bf16.msra.mxu0 0
        %1641 = vmatprep.subr.bf16.mxu0 0
        %1642 = vmatpush1.bf16.msra.mxu0 0
        %1643 = vmatprep.subr.bf16.mxu0 0
        %1644 = vmatpush1.bf16.msra.mxu0 0
        %1645 = vmatprep.subr.bf16.mxu0 0
        %1646 = vmatpush1.bf16.msra.mxu0 0
        %1647 = vmatprep.mubr.bf16.mxu0 0
        %1648 = vmatmul.mubr.bf16.gmra.mrb[0].mxu0 %v1613
        %v1649 = vpop.f32.mrb[0].mxu0
        %v1650 = vadd.f32 %v245, %v1649
        %v1651 = vpop.f32.mrb[0].mxu0
        %v1652 = vpop.f32.mrb[0].mxu0
        %v1653 = vpop.f32.mrb[0].mxu0
        %1654 = vdwg.mxu0
        %v1655 = vxor.u32 %v1650, 2147483648
        %v1656 = vmul.f32 %v1655, 1.442695
        %v1657 = vpow.pop %v1656
        %v1658 = vadd.f32 %v1657, 1.0
        %v1659 = vrcp.pop %v1658
        %v1660 = vmul.f32 1.0, %v1659
        %v1661 = vsub.f32 1.0, %v1660
        %1663 = vrot.lane.b32.xlu0 %v1650, 32
        %v1664 = vpop.permute.xlu0 %1663
        %v1666 = vmul.f32 %v1661, %v1664
        %1668 = vrot.lane.b32.xlu0 %v1666, 64
        %v1669 = vpop.permute.xlu0 %1668
        %v1671 = vsub.f32 %v1650, %v1669
        %v1672 = vtanh.pop %v1671
        %1674 = vrot.lane.b32.xlu0 %v1672, 96
        %v1675 = vpop.permute.xlu0 %1674
        %v1677 = vmul.f32 %v1661, %v1675
        %v1678 = vmul.f32 %v1660, %v1608
        %v1679 = vadd.f32 %v1677, %v1678
        %1681 = vrot.lane.b32.xlu0 %v1679, 96
        %v1682 = vpop.permute.xlu0 %1681
        %v1684 = vsel %vm329, %v1682, 0.0
        %1685 = vadd.xlane.f32.xlu0 %v1684
        %v1686 = vpop.xlane.xlu0 %1685
        %v1687 = vmul.f32 %v1686, %v354
        %v1688 = vsub.f32 %v1679, %v1687
        %v1689 = vmul.f32 %v1688, %v1688
        %1691 = vrot.lane.b32.xlu0 %v1689, 96
        %v1692 = vpop.permute.xlu0 %1691
        %v1694 = vsel %vm329, %v1692, 0.0
        %1695 = vadd.xlane.f32.xlu0 %v1694
        %v1696 = vpop.xlane.xlu0 %1695
        %v1697 = vmul.f32 %v1696, %v354
        %v1698 = vadd.f32 %v1697, 1e-05
        %v1699 = vrsqrt.pop %v1698
        %v1700 = vmul.f32 %v1688, %v1699
        %v1701 = vmul.f32 %v1700, %v916
        %v1702 = vadd.f32 %v1701, %v240
        %v1703 = vpack.c.bf16 %v1702, %v1702
        %1705 = vrot.lane.b32.xlu0 %v1703, 96
        %v1706 = vpop.permute.xlu0 %1705
        %v1708 = vsel %vm329, %v1706, 0
        %1710 = vmatprep.subr.bf16.mxu0 0
        %1711 = vmatpush1.bf16.msra.mxu0 %v932
        %1712 = vmatprep.subr.bf16.mxu0 0
        %1713 = vmatpush1.bf16.msra.mxu0 %v933
        %1714 = vmatprep.subr.bf16.mxu0 0
        %1715 = vmatpush1.bf16.msra.mxu0 0
        %1716 = vmatprep.subr.bf16.mxu0 0
        %1717 = vmatpush1.bf16.msra.mxu0 0
        %1718 = vmatprep.subr.bf16.mxu0 0
        %1719 = vmatpush1.bf16.msra.mxu0 0
        %1720 = vmatprep.subr.bf16.mxu0 0
        %1721 = vmatpush1.bf16.msra.mxu0 0
        %1722 = vmatprep.subr.bf16.mxu0 0
        %1723 = vmatpush1.bf16.msra.mxu0 0
        %1724 = vmatprep.subr.bf16.mxu0 0
        %1725 = vmatpush1.bf16.msra.mxu0 0
        %1726 = vmatprep.subr.bf16.mxu0 0
        %1727 = vmatpush1.bf16.msra.mxu0 0
        %1728 = vmatprep.subr.bf16.mxu0 0
        %1729 = vmatpush1.bf16.msra.mxu0 0
        %1730 = vmatprep.subr.bf16.mxu0 0
        %1731 = vmatpush1.bf16.msra.mxu0 0
        %1732 = vmatprep.subr.bf16.mxu0 0
        %1733 = vmatpush1.bf16.msra.mxu0 0
        %1734 = vmatprep.subr.bf16.mxu0 0
        %1735 = vmatpush1.bf16.msra.mxu0 0
        %1736 = vmatprep.subr.bf16.mxu0 0
        %1737 = vmatpush1.bf16.msra.mxu0 0
        %1738 = vmatprep.subr.bf16.mxu0 0
        %1739 = vmatpush1.bf16.msra.mxu0 0
        %1740 = vmatprep.subr.bf16.mxu0 0
        %1741 = vmatpush1.bf16.msra.mxu0 0
        %1742 = vmatprep.mubr.bf16.mxu0 0
        %1743 = vmatmul.mubr.bf16.gmra.mrb[0].mxu0 %v1708
        %v1744 = vpop.f32.mrb[0].mxu0
        %v1745 = vadd.f32 %v250, %v1744
        %v1746 = vpop.f32.mrb[0].mxu0
        %v1747 = vpop.f32.mrb[0].mxu0
        %v1748 = vpop.f32.mrb[0].mxu0
        %1749 = vdwg.mxu0
        %v1750 = vmax.f32 %v1745, 0.0
        %v1751 = vpack.c.bf16 %v1750, %v1750
        %1752 = vmatprep.subr.bf16.mxu0 0
        %1753 = vmatpush1.bf16.msra.mxu0 %v1013
        %1754 = vmatprep.subr.bf16.mxu0 0
        %1755 = vmatpush1.bf16.msra.mxu0 %v1014
        %1756 = vmatprep.subr.bf16.mxu0 0
        %1757 = vmatpush1.bf16.msra.mxu0 %v1015
        %1758 = vmatprep.subr.bf16.mxu0 0
        %1759 = vmatpush1.bf16.msra.mxu0 %v1016
        %1760 = vmatprep.subr.bf16.mxu0 0
        %1761 = vmatpush1.bf16.msra.mxu0 %v1017
        %1762 = vmatprep.subr.bf16.mxu0 0
        %1763 = vmatpush1.bf16.msra.mxu0 %v1018
        %1764 = vmatprep.subr.bf16.mxu0 0
        %1765 = vmatpush1.bf16.msra.mxu0 %v1019
        %1766 = vmatprep.subr.bf16.mxu0 0
        %1767 = vmatpush1.bf16.msra.mxu0 %v1020
        %1768 = vmatprep.subr.bf16.mxu0 0
        %1769 = vmatpush1.bf16.msra.mxu0 0
        %1770 = vmatprep.subr.bf16.mxu0 0
        %1771 = vmatpush1.bf16.msra.mxu0 0
        %1772 = vmatprep.subr.bf16.mxu0 0
        %1773 = vmatpush1.bf16.msra.mxu0 0
        %1774 = vmatprep.subr.bf16.mxu0 0
        %1775 = vmatpush1.bf16.msra.mxu0 0
        %1776 = vmatprep.subr.bf16.mxu0 0
        %1777 = vmatpush1.bf16.msra.mxu0 0
        %1778 = vmatprep.subr.bf16.mxu0 0
        %1779 = vmatpush1.bf16.msra.mxu0 0
        %1780 = vmatprep.subr.bf16.mxu0 0
        %1781 = vmatpush1.bf16.msra.mxu0 0
        %1782 = vmatprep.subr.bf16.mxu0 0
        %1783 = vmatpush1.bf16.msra.mxu0 0
        %1784 = vmatprep.mubr.bf16.mxu0 0
        %1785 = vmatmul.mubr.bf16.gmra.mrb[0].mxu0 %v1751
        %v1786 = vpop.f32.mrb[0].mxu0
        %v1787 = vadd.f32 %v1030, %v1786
        %v1788 = vpop.f32.mrb[0].mxu0
        %v1789 = vpop.f32.mrb[0].mxu0
        %v1790 = vpop.f32.mrb[0].mxu0
        %1791 = vdwg.mxu0
        %v1792 = vadd.f32 %v1787, %v1682
        %v1793 = vlaneseq
        %v1794 = vshrl.u32 %v1793, 7
        %v1795 = vsub.s32 0, %v1794
        %v1796 = vrot.slane %v251, %v1795
        %v1797 = vsub.f32 %v1792, %v1796
        %v1798 = vmul.f32 %v1797, %v1797
        %v1799 = vsel %vm329, %v1798, 0.0
        %1800 = vadd.xlane.f32.xlu0 %v1799
        %v1801 = vpop.xlane.xlu0 %1800
        %v1802 = vlaneseq
        %v1803 = vshrl.u32 %v1802, 7
        %v1804 = vsub.s32 1, %v1803
        %v1805 = vrot.slane %v251, %v1804
        %v1806 = vsub.f32 %v1792, %v1805
        %v1807 = vmul.f32 %v1806, %v1806
        %v1808 = vsel %vm329, %v1807, 0.0
        %1809 = vadd.xlane.f32.xlu0 %v1808
        %v1810 = vpop.xlane.xlu0 %1809
        %vm1811 = vcmp.lt.f32.partialorder %v1810, %v1801
        %v1812 = vsel %vm1811, %v1810, %v1801
        %v1813 = vsel %vm1811, 1.0, 0.0
        %v1814 = vlaneseq
        %v1815 = vshrl.u32 %v1814, 7
        %v1816 = vsub.s32 2, %v1815
        %v1817 = vrot.slane %v251, %v1816
        %v1818 = vsub.f32 %v1792, %v1817
        %v1819 = vmul.f32 %v1818, %v1818
        %v1820 = vsel %vm329, %v1819, 0.0
        %1821 = vadd.xlane.f32.xlu0 %v1820
        %v1822 = vpop.xlane.xlu0 %1821
        %vm1823 = vcmp.lt.f32.partialorder %v1822, %v1812
        %v1824 = vsel %vm1823, %v1822, %v1812
        %v1825 = vsel %vm1823, 2.0, %v1813
        %v1826 = vlaneseq
        %v1827 = vshrl.u32 %v1826, 7
        %v1828 = vsub.s32 3, %v1827
        %v1829 = vrot.slane %v251, %v1828
        %v1830 = vsub.f32 %v1792, %v1829
        %v1831 = vmul.f32 %v1830, %v1830
        %v1832 = vsel %vm329, %v1831, 0.0
        %1833 = vadd.xlane.f32.xlu0 %v1832
        %v1834 = vpop.xlane.xlu0 %1833
        %vm1835 = vcmp.lt.f32.partialorder %v1834, %v1824
        %v1836 = vsel %vm1835, %v1834, %v1824
        %v1837 = vsel %vm1835, 3.0, %v1825
        %v1838 = vlaneseq
        %v1839 = vshrl.u32 %v1838, 7
        %v1840 = vsub.s32 4, %v1839
        %v1841 = vrot.slane %v251, %v1840
        %v1842 = vsub.f32 %v1792, %v1841
        %v1843 = vmul.f32 %v1842, %v1842
        %v1844 = vsel %vm329, %v1843, 0.0
        %1845 = vadd.xlane.f32.xlu0 %v1844
        %v1846 = vpop.xlane.xlu0 %1845
        %vm1847 = vcmp.lt.f32.partialorder %v1846, %v1836
        %v1848 = vsel %vm1847, %v1846, %v1836
        %v1849 = vsel %vm1847, 4.0, %v1837
        %v1850 = vlaneseq
        %v1851 = vshrl.u32 %v1850, 7
        %v1852 = vsub.s32 5, %v1851
        %v1853 = vrot.slane %v251, %v1852
        %v1854 = vsub.f32 %v1792, %v1853
        %v1855 = vmul.f32 %v1854, %v1854
        %v1856 = vsel %vm329, %v1855, 0.0
        %1857 = vadd.xlane.f32.xlu0 %v1856
        %v1858 = vpop.xlane.xlu0 %1857
        %vm1859 = vcmp.lt.f32.partialorder %v1858, %v1848
        %v1860 = vsel %vm1859, %v1858, %v1848
        %v1861 = vsel %vm1859, 5.0, %v1849
        %v1862 = vlaneseq
        %v1863 = vshrl.u32 %v1862, 7
        %v1864 = vsub.s32 6, %v1863
        %v1865 = vrot.slane %v251, %v1864
        %v1866 = vsub.f32 %v1792, %v1865
        %v1867 = vmul.f32 %v1866, %v1866
        %v1868 = vsel %vm329, %v1867, 0.0
        %1869 = vadd.xlane.f32.xlu0 %v1868
        %v1870 = vpop.xlane.xlu0 %1869
        %vm1871 = vcmp.lt.f32.partialorder %v1870, %v1860
        %v1872 = vsel %vm1871, %v1870, %v1860
        %v1873 = vsel %vm1871, 6.0, %v1861
        %v1874 = vlaneseq
        %v1875 = vshrl.u32 %v1874, 7
        %v1876 = vsub.s32 7, %v1875
        %v1877 = vrot.slane %v251, %v1876
        %v1878 = vsub.f32 %v1792, %v1877
        %v1879 = vmul.f32 %v1878, %v1878
        %v1880 = vsel %vm329, %v1879, 0.0
        %1881 = vadd.xlane.f32.xlu0 %v1880
        %v1882 = vpop.xlane.xlu0 %1881
        %vm1883 = vcmp.lt.f32.partialorder %v1882, %v1872
        %v1884 = vsel %vm1883, %v1882, %v1872
        %v1885 = vsel %vm1883, 7.0, %v1873
        %v1886 = vlaneseq
        %v1887 = vshrl.u32 %v1886, 7
        %v1888 = vsub.s32 0, %v1887
        %v1889 = vrot.slane %v252, %v1888
        %v1890 = vsub.f32 %v1792, %v1889
        %v1891 = vmul.f32 %v1890, %v1890
        %v1892 = vsel %vm329, %v1891, 0.0
        %1893 = vadd.xlane.f32.xlu0 %v1892
        %v1894 = vpop.xlane.xlu0 %1893
        %vm1895 = vcmp.lt.f32.partialorder %v1894, %v1884
        %v1896 = vsel %vm1895, %v1894, %v1884
        %v1897 = vsel %vm1895, 8.0, %v1885
        %v1898 = vlaneseq
        %v1899 = vshrl.u32 %v1898, 7
        %v1900 = vsub.s32 1, %v1899
        %v1901 = vrot.slane %v252, %v1900
        %v1902 = vsub.f32 %v1792, %v1901
        %v1903 = vmul.f32 %v1902, %v1902
        %v1904 = vsel %vm329, %v1903, 0.0
        %1905 = vadd.xlane.f32.xlu0 %v1904
        %v1906 = vpop.xlane.xlu0 %1905
        %vm1907 = vcmp.lt.f32.partialorder %v1906, %v1896
        %v1908 = vsel %vm1907, %v1906, %v1896
        %v1909 = vsel %vm1907, 9.0, %v1897
        %v1910 = vlaneseq
        %v1911 = vshrl.u32 %v1910, 7
        %v1912 = vsub.s32 2, %v1911
        %v1913 = vrot.slane %v252, %v1912
        %v1914 = vsub.f32 %v1792, %v1913
        %v1915 = vmul.f32 %v1914, %v1914
        %v1916 = vsel %vm329, %v1915, 0.0
        %1917 = vadd.xlane.f32.xlu0 %v1916
        %v1918 = vpop.xlane.xlu0 %1917
        %vm1919 = vcmp.lt.f32.partialorder %v1918, %v1908
        %v1920 = vsel %vm1919, %v1918, %v1908
        %v1921 = vsel %vm1919, 10.0, %v1909
        %v1922 = vlaneseq
        %v1923 = vshrl.u32 %v1922, 7
        %v1924 = vsub.s32 3, %v1923
        %v1925 = vrot.slane %v252, %v1924
        %v1926 = vsub.f32 %v1792, %v1925
        %v1927 = vmul.f32 %v1926, %v1926
        %v1928 = vsel %vm329, %v1927, 0.0
        %1929 = vadd.xlane.f32.xlu0 %v1928
        %v1930 = vpop.xlane.xlu0 %1929
        %vm1931 = vcmp.lt.f32.partialorder %v1930, %v1920
        %v1932 = vsel %vm1931, %v1930, %v1920
        %v1933 = vsel %vm1931, 11.0, %v1921
        %v1934 = vlaneseq
        %v1935 = vshrl.u32 %v1934, 7
        %v1936 = vsub.s32 4, %v1935
        %v1937 = vrot.slane %v252, %v1936
        %v1938 = vsub.f32 %v1792, %v1937
        %v1939 = vmul.f32 %v1938, %v1938
        %v1940 = vsel %vm329, %v1939, 0.0
        %1941 = vadd.xlane.f32.xlu0 %v1940
        %v1942 = vpop.xlane.xlu0 %1941
        %vm1943 = vcmp.lt.f32.partialorder %v1942, %v1932
        %v1944 = vsel %vm1943, %v1942, %v1932
        %v1945 = vsel %vm1943, 12.0, %v1933
        %v1946 = vlaneseq
        %v1947 = vshrl.u32 %v1946, 7
        %v1948 = vsub.s32 5, %v1947
        %v1949 = vrot.slane %v252, %v1948
        %v1950 = vsub.f32 %v1792, %v1949
        %v1951 = vmul.f32 %v1950, %v1950
        %v1952 = vsel %vm329, %v1951, 0.0
        %1953 = vadd.xlane.f32.xlu0 %v1952
        %v1954 = vpop.xlane.xlu0 %1953
        %vm1955 = vcmp.lt.f32.partialorder %v1954, %v1944
        %v1956 = vsel %vm1955, %v1954, %v1944
        %v1957 = vsel %vm1955, 13.0, %v1945
        %v1958 = vlaneseq
        %v1959 = vshrl.u32 %v1958, 7
        %v1960 = vsub.s32 6, %v1959
        %v1961 = vrot.slane %v252, %v1960
        %v1962 = vsub.f32 %v1792, %v1961
        %v1963 = vmul.f32 %v1962, %v1962
        %v1964 = vsel %vm329, %v1963, 0.0
        %1965 = vadd.xlane.f32.xlu0 %v1964
        %v1966 = vpop.xlane.xlu0 %1965
        %vm1967 = vcmp.lt.f32.partialorder %v1966, %v1956
        %v1968 = vsel %vm1967, %v1966, %v1956
        %v1969 = vsel %vm1967, 14.0, %v1957
        %v1970 = vlaneseq
        %v1971 = vshrl.u32 %v1970, 7
        %v1972 = vsub.s32 7, %v1971
        %v1973 = vrot.slane %v252, %v1972
        %v1974 = vsub.f32 %v1792, %v1973
        %v1975 = vmul.f32 %v1974, %v1974
        %v1976 = vsel %vm329, %v1975, 0.0
        %1977 = vadd.xlane.f32.xlu0 %v1976
        %v1978 = vpop.xlane.xlu0 %1977
        %vm1979 = vcmp.lt.f32.partialorder %v1978, %v1968
        %v1980 = vsel %vm1979, %v1978, %v1968
        %v1981 = vsel %vm1979, 15.0, %v1969
        %v1982 = vcvt.f32.s32.to.zero.pseudo %v1981
        %v1983 = vmul.f32 %v1980, 0.03125
        %v1984 = vlaneseq
        %v1985 = vand.u32 %v1984, 127
        %v1986 = vmul.u32 %v1982, 8
        %vm1987 = vcmp.ge.s32.totalorder %v1985, %v1986
        %v1988 = vadd.s32 %v1986, 8
        %vm1989 = vcmp.lt.s32.totalorder %v1985, %v1988
        %vm1990 = vmand %vm1987, %vm1989
        %v1991 = vsel %vm1990, 1, 0
        %v1992 = vcvt.s32.f32 %v1991
        %v1993 = vunpack.c.h.b16 %v269
        %v1994 = vunpack.c.h.b16 %v270
        %v1995 = vunpack.c.h.b16 %v271
        %v1996 = vunpack.c.h.b16 %v272
        %v1997 = vpack.c.b16 %v1994, %v1993
        %v1998 = vpack.c.b16 %v1996, %v1995
        %2001 = vmatprep.subr.bf16.mxu0 %v1997
        %2002 = vmatpush1.bf16.msra.mxu0 %v932
        %2003 = vmatprep.subr.bf16.mxu0 %v1998
        %2004 = vmatpush1.bf16.msra.mxu0 %v933
        %2005 = vmatprep.subr.bf16.mxu0 0
        %2006 = vmatpush1.bf16.msra.mxu0 0
        %2007 = vmatprep.subr.bf16.mxu0 0
        %2008 = vmatpush1.bf16.msra.mxu0 0
        %2009 = vmatprep.subr.bf16.mxu0 0
        %2010 = vmatpush1.bf16.msra.mxu0 0
        %2011 = vmatprep.subr.bf16.mxu0 0
        %2012 = vmatpush1.bf16.msra.mxu0 0
        %2013 = vmatprep.subr.bf16.mxu0 0
        %2014 = vmatpush1.bf16.msra.mxu0 0
        %2015 = vmatprep.subr.bf16.mxu0 0
        %2016 = vmatpush1.bf16.msra.mxu0 0
        %2017 = vmatprep.subr.bf16.mxu0 0
        %2018 = vmatpush1.bf16.msra.mxu0 0
        %2019 = vmatprep.subr.bf16.mxu0 0
        %2020 = vmatpush1.bf16.msra.mxu0 0
        %2021 = vmatprep.subr.bf16.mxu0 0
        %2022 = vmatpush1.bf16.msra.mxu0 0
        %2023 = vmatprep.subr.bf16.mxu0 0
        %2024 = vmatpush1.bf16.msra.mxu0 0
        %2025 = vmatprep.subr.bf16.mxu0 0
        %2026 = vmatpush1.bf16.msra.mxu0 0
        %2027 = vmatprep.subr.bf16.mxu0 0
        %2028 = vmatpush1.bf16.msra.mxu0 0
        %2029 = vmatprep.subr.bf16.mxu0 0
        %2030 = vmatpush1.bf16.msra.mxu0 0
        %2031 = vmatprep.subr.bf16.mxu0 0
        %2032 = vmatpush1.bf16.msra.mxu0 0
        %2033 = vmatprep.mubr.bf16.mxu0 0
        %2034 = vmatmul.mubr.bf16.gmra.mrb[0].mxu0 %v937
        %v2035 = vpop.f32.mrb[0].mxu0
        %v2036 = vadd.f32 0.0, %v2035
        %v2037 = vpop.f32.mrb[0].mxu0
        %v2038 = vadd.f32 0.0, %v2037
        %v2039 = vpop.f32.mrb[0].mxu0
        %v2040 = vpop.f32.mrb[0].mxu0
        %2041 = vdwg.mxu0
        %v2042 = vmul.f32 %v2038, %v1992
        %v2043 = vpack.c.bf16 %v2042, %v2042
        %v2044 = vadd.f32 %v2036, %v250
        %v2061 = vunpack.c.l.b16 %v273
        %v2062 = vunpack.c.l.b16 %v274
        %v2063 = vunpack.c.l.b16 %v275
        %v2064 = vunpack.c.l.b16 %v276
        %v2065 = vunpack.c.l.b16 %v277
        %v2066 = vunpack.c.l.b16 %v278
        %v2067 = vunpack.c.l.b16 %v279
        %v2068 = vunpack.c.l.b16 %v280
        %v2069 = vunpack.c.l.b16 %v281
        %v2070 = vunpack.c.l.b16 %v282
        %v2071 = vunpack.c.l.b16 %v283
        %v2072 = vunpack.c.l.b16 %v284
        %v2073 = vunpack.c.l.b16 %v285
        %v2074 = vunpack.c.l.b16 %v286
        %v2075 = vunpack.c.l.b16 %v287
        %v2076 = vunpack.c.l.b16 %v288
        %v2077 = vpack.c.b16 %v2062, %v2061
        %v2078 = vpack.c.b16 %v2064, %v2063
        %v2079 = vpack.c.b16 %v2066, %v2065
        %v2080 = vpack.c.b16 %v2068, %v2067
        %v2081 = vpack.c.b16 %v2070, %v2069
        %v2082 = vpack.c.b16 %v2072, %v2071
        %v2083 = vpack.c.b16 %v2074, %v2073
        %v2084 = vpack.c.b16 %v2076, %v2075
        %2093 = vmatprep.subr.bf16.mxu0 0
        %2094 = vmatpush1.bf16.msra.mxu0 %v2077
        %2095 = vmatprep.subr.bf16.mxu0 0
        %2096 = vmatpush1.bf16.msra.mxu0 %v2078
        %2097 = vmatprep.subr.bf16.mxu0 0
        %2098 = vmatpush1.bf16.msra.mxu0 %v2079
        %2099 = vmatprep.subr.bf16.mxu0 0
        %2100 = vmatpush1.bf16.msra.mxu0 %v2080
        %2101 = vmatprep.subr.bf16.mxu0 0
        %2102 = vmatpush1.bf16.msra.mxu0 %v2081
        %2103 = vmatprep.subr.bf16.mxu0 0
        %2104 = vmatpush1.bf16.msra.mxu0 %v2082
        %2105 = vmatprep.subr.bf16.mxu0 0
        %2106 = vmatpush1.bf16.msra.mxu0 %v2083
        %2107 = vmatprep.subr.bf16.mxu0 0
        %2108 = vmatpush1.bf16.msra.mxu0 %v2084
        %2109 = vmatprep.subr.bf16.mxu0 0
        %2110 = vmatpush1.bf16.msra.mxu0 0
        %2111 = vmatprep.subr.bf16.mxu0 0
        %2112 = vmatpush1.bf16.msra.mxu0 0
        %2113 = vmatprep.subr.bf16.mxu0 0
        %2114 = vmatpush1.bf16.msra.mxu0 0
        %2115 = vmatprep.subr.bf16.mxu0 0
        %2116 = vmatpush1.bf16.msra.mxu0 0
        %2117 = vmatprep.subr.bf16.mxu0 0
        %2118 = vmatpush1.bf16.msra.mxu0 0
        %2119 = vmatprep.subr.bf16.mxu0 0
        %2120 = vmatpush1.bf16.msra.mxu0 0
        %2121 = vmatprep.subr.bf16.mxu0 0
        %2122 = vmatpush1.bf16.msra.mxu0 0
        %2123 = vmatprep.subr.bf16.mxu0 0
        %2124 = vmatpush1.bf16.msra.mxu0 0
        %2125 = vmatprep.mubr.bf16.mxu0 0
        %2126 = vmatmul.mubr.bf16.gmra.mrb[0].mxu0 %v2043
        %v2127 = vpop.f32.mrb[0].mxu0
        %v2128 = vadd.f32 0.0, %v2127
        %v2129 = vpop.f32.mrb[0].mxu0
        %v2130 = vpop.f32.mrb[0].mxu0
        %v2131 = vpop.f32.mrb[0].mxu0
        %2132 = vdwg.mxu0
        %v2133 = vadd.f32 %v2044, %v2128
        %v2134 = vmax.f32 %v2133, 0.0
        %v2135 = vpack.c.bf16 %v2134, %v2134
        %v2136 = vunpack.c.h.b16 %v289
        %v2137 = vunpack.c.h.b16 %v290
        %v2138 = vunpack.c.h.b16 %v291
        %v2139 = vunpack.c.h.b16 %v292
        %v2140 = vunpack.c.h.b16 %v293
        %v2141 = vunpack.c.h.b16 %v294
        %v2142 = vunpack.c.h.b16 %v295
        %v2143 = vunpack.c.h.b16 %v296
        %v2144 = vunpack.c.h.b16 %v297
        %v2145 = vunpack.c.h.b16 %v298
        %v2146 = vunpack.c.h.b16 %v299
        %v2147 = vunpack.c.h.b16 %v300
        %v2148 = vunpack.c.h.b16 %v301
        %v2149 = vunpack.c.h.b16 %v302
        %v2150 = vunpack.c.h.b16 %v303
        %v2151 = vunpack.c.h.b16 %v304
        %v2152 = vpack.c.b16 %v2137, %v2136
        %v2153 = vpack.c.b16 %v2139, %v2138
        %v2154 = vpack.c.b16 %v2141, %v2140
        %v2155 = vpack.c.b16 %v2143, %v2142
        %v2156 = vpack.c.b16 %v2145, %v2144
        %v2157 = vpack.c.b16 %v2147, %v2146
        %v2158 = vpack.c.b16 %v2149, %v2148
        %v2159 = vpack.c.b16 %v2151, %v2150
        %2168 = vmatprep.subr.bf16.mxu0 %v2152
        %2169 = vmatpush1.bf16.msra.mxu0 %v1013
        %2170 = vmatprep.subr.bf16.mxu0 %v2153
        %2171 = vmatpush1.bf16.msra.mxu0 %v1014
        %2172 = vmatprep.subr.bf16.mxu0 %v2154
        %2173 = vmatpush1.bf16.msra.mxu0 %v1015
        %2174 = vmatprep.subr.bf16.mxu0 %v2155
        %2175 = vmatpush1.bf16.msra.mxu0 %v1016
        %2176 = vmatprep.subr.bf16.mxu0 %v2156
        %2177 = vmatpush1.bf16.msra.mxu0 %v1017
        %2178 = vmatprep.subr.bf16.mxu0 %v2157
        %2179 = vmatpush1.bf16.msra.mxu0 %v1018
        %2180 = vmatprep.subr.bf16.mxu0 %v2158
        %2181 = vmatpush1.bf16.msra.mxu0 %v1019
        %2182 = vmatprep.subr.bf16.mxu0 %v2159
        %2183 = vmatpush1.bf16.msra.mxu0 %v1020
        %2184 = vmatprep.subr.bf16.mxu0 0
        %2185 = vmatpush1.bf16.msra.mxu0 0
        %2186 = vmatprep.subr.bf16.mxu0 0
        %2187 = vmatpush1.bf16.msra.mxu0 0
        %2188 = vmatprep.subr.bf16.mxu0 0
        %2189 = vmatpush1.bf16.msra.mxu0 0
        %2190 = vmatprep.subr.bf16.mxu0 0
        %2191 = vmatpush1.bf16.msra.mxu0 0
        %2192 = vmatprep.subr.bf16.mxu0 0
        %2193 = vmatpush1.bf16.msra.mxu0 0
        %2194 = vmatprep.subr.bf16.mxu0 0
        %2195 = vmatpush1.bf16.msra.mxu0 0
        %2196 = vmatprep.subr.bf16.mxu0 0
        %2197 = vmatpush1.bf16.msra.mxu0 0
        %2198 = vmatprep.subr.bf16.mxu0 0
        %2199 = vmatpush1.bf16.msra.mxu0 0
        %2200 = vmatprep.mubr.bf16.mxu0 0
        %2201 = vmatmul.mubr.bf16.gmra.mrb[0].mxu0 %v2135
        %v2202 = vpop.f32.mrb[0].mxu0
        %v2203 = vadd.f32 0.0, %v2202
        %v2204 = vpop.f32.mrb[0].mxu0
        %v2205 = vadd.f32 0.0, %v2204
        %v2206 = vpop.f32.mrb[0].mxu0
        %v2207 = vpop.f32.mrb[0].mxu0
        %2208 = vdwg.mxu0
        %2210 = vrot.lane.b32.xlu0 %v1992, 32
        %v2211 = vpop.permute.xlu0 %2210
        %v2213 = vmul.f32 %v2203, %v2211
        %v2214 = vmul.f32 %v2205, %v2211
        %v2215 = vpack.c.bf16 %v2213, %v2213
        %v2216 = vpack.c.bf16 %v2214, %v2214
        %v2217 = vadd.f32 %v2203, %v1030
        %2220 = vrot.lane.b32.xlu0 %v2215, 96
        %v2221 = vpop.permute.xlu0 %2220
        %2222 = vrot.lane.b32.xlu0 %v2216, 96
        %v2223 = vpop.permute.xlu0 %2222
        %vm2224 = vcmask 785408
        %v2225 = vsel %vm2224, %v2221, %v2223
        %v2243 = vunpack.c.l.b16 %v305
        %v2244 = vunpack.c.l.b16 %v306
        %v2245 = vunpack.c.l.b16 %v307
        %v2246 = vunpack.c.l.b16 %v308
        %v2247 = vunpack.c.l.b16 %v309
        %v2248 = vunpack.c.l.b16 %v310
        %v2249 = vunpack.c.l.b16 %v311
        %v2250 = vunpack.c.l.b16 %v312
        %v2251 = vunpack.c.l.b16 %v313
        %v2252 = vunpack.c.l.b16 %v314
        %v2253 = vunpack.c.l.b16 %v315
        %v2254 = vunpack.c.l.b16 %v316
        %v2255 = vunpack.c.l.b16 %v317
        %v2256 = vunpack.c.l.b16 %v318
        %v2257 = vunpack.c.l.b16 %v319
        %v2258 = vunpack.c.l.b16 %v320
        %v2259 = vpack.c.b16 %v2244, %v2243
        %v2260 = vpack.c.b16 %v2246, %v2245
        %v2261 = vpack.c.b16 %v2248, %v2247
        %v2262 = vpack.c.b16 %v2250, %v2249
        %v2263 = vpack.c.b16 %v2252, %v2251
        %v2264 = vpack.c.b16 %v2254, %v2253
        %v2265 = vpack.c.b16 %v2256, %v2255
        %v2266 = vpack.c.b16 %v2258, %v2257
        %2275 = vmatprep.subr.bf16.mxu0 0
        %2276 = vmatpush1.bf16.msra.mxu0 %v2259
        %2277 = vmatprep.subr.bf16.mxu0 0
        %2278 = vmatpush1.bf16.msra.mxu0 %v2260
        %2279 = vmatprep.subr.bf16.mxu0 0
        %2280 = vmatpush1.bf16.msra.mxu0 %v2261
        %2281 = vmatprep.subr.bf16.mxu0 0
        %2282 = vmatpush1.bf16.msra.mxu0 %v2262
        %2283 = vmatprep.subr.bf16.mxu0 0
        %2284 = vmatpush1.bf16.msra.mxu0 %v2263
        %2285 = vmatprep.subr.bf16.mxu0 0
        %2286 = vmatpush1.bf16.msra.mxu0 %v2264
        %2287 = vmatprep.subr.bf16.mxu0 0
        %2288 = vmatpush1.bf16.msra.mxu0 %v2265
        %2289 = vmatprep.subr.bf16.mxu0 0
        %2290 = vmatpush1.bf16.msra.mxu0 %v2266
        %2291 = vmatprep.subr.bf16.mxu0 0
        %2292 = vmatpush1.bf16.msra.mxu0 0
        %2293 = vmatprep.subr.bf16.mxu0 0
        %2294 = vmatpush1.bf16.msra.mxu0 0
        %2295 = vmatprep.subr.bf16.mxu0 0
        %2296 = vmatpush1.bf16.msra.mxu0 0
        %2297 = vmatprep.subr.bf16.mxu0 0
        %2298 = vmatpush1.bf16.msra.mxu0 0
        %2299 = vmatprep.subr.bf16.mxu0 0
        %2300 = vmatpush1.bf16.msra.mxu0 0
        %2301 = vmatprep.subr.bf16.mxu0 0
        %2302 = vmatpush1.bf16.msra.mxu0 0
        %2303 = vmatprep.subr.bf16.mxu0 0
        %2304 = vmatpush1.bf16.msra.mxu0 0
        %2305 = vmatprep.subr.bf16.mxu0 0
        %2306 = vmatpush1.bf16.msra.mxu0 0
        %2307 = vmatprep.mubr.bf16.mxu0 0
        %2308 = vmatmul.mubr.bf16.gmra.mrb[0].mxu0 %v2225
        %v2309 = vpop.f32.mrb[0].mxu0
        %v2310 = vadd.f32 0.0, %v2309
        %v2311 = vpop.f32.mrb[0].mxu0
        %v2312 = vpop.f32.mrb[0].mxu0
        %v2313 = vpop.f32.mrb[0].mxu0
        %2314 = vdwg.mxu0
        %v2315 = vadd.f32 %v2217, %v2310
        %v2316 = vadd.f32 %v2315, %v895
        %v2317 = vsel %vm329, %v2316, 0.0
        %2318 = vadd.xlane.f32.xlu0 %v2317
        %v2319 = vpop.xlane.xlu0 %2318
        %v2320 = vmul.f32 %v2319, %v354
        %v2321 = vsub.f32 %v2316, %v2320
        %v2322 = vmul.f32 %v2321, %v2321
        %v2323 = vsel %vm329, %v2322, 0.0
        %2324 = vadd.xlane.f32.xlu0 %v2323
        %v2325 = vpop.xlane.xlu0 %2324
        %v2326 = vmul.f32 %v2325, %v354
        %v2327 = vadd.f32 %v2326, 1e-05
        %v2328 = vrsqrt.pop %v2327
        %v2329 = vmul.f32 %v2321, %v2328
        %v2330 = vmul.f32 %v2329, %v601
        %v2331 = vadd.f32 %v2330, %v605
        %v2332 = vpack.c.bf16 %v2331, %v2331
        %v2334 = vsel %vm329, %v2332, 0
        %2336 = vmatprep.subr.bf16.mxu0 0
        %2337 = vmatpush1.bf16.msra.mxu0 %v617
        %2338 = vmatprep.subr.bf16.mxu0 0
        %2339 = vmatpush1.bf16.msra.mxu0 %v618
        %2340 = vmatprep.subr.bf16.mxu0 0
        %2341 = vmatpush1.bf16.msra.mxu0 0
        %2342 = vmatprep.subr.bf16.mxu0 0
        %2343 = vmatpush1.bf16.msra.mxu0 0
        %2344 = vmatprep.subr.bf16.mxu0 0
        %2345 = vmatpush1.bf16.msra.mxu0 0
        %2346 = vmatprep.subr.bf16.mxu0 0
        %2347 = vmatpush1.bf16.msra.mxu0 0
        %2348 = vmatprep.subr.bf16.mxu0 0
        %2349 = vmatpush1.bf16.msra.mxu0 0
        %2350 = vmatprep.subr.bf16.mxu0 0
        %2351 = vmatpush1.bf16.msra.mxu0 0
        %2352 = vmatprep.subr.bf16.mxu0 0
        %2353 = vmatpush1.bf16.msra.mxu0 0
        %2354 = vmatprep.subr.bf16.mxu0 0
        %2355 = vmatpush1.bf16.msra.mxu0 0
        %2356 = vmatprep.subr.bf16.mxu0 0
        %2357 = vmatpush1.bf16.msra.mxu0 0
        %2358 = vmatprep.subr.bf16.mxu0 0
        %2359 = vmatpush1.bf16.msra.mxu0 0
        %2360 = vmatprep.subr.bf16.mxu0 0
        %2361 = vmatpush1.bf16.msra.mxu0 0
        %2362 = vmatprep.subr.bf16.mxu0 0
        %2363 = vmatpush1.bf16.msra.mxu0 0
        %2364 = vmatprep.subr.bf16.mxu0 0
        %2365 = vmatpush1.bf16.msra.mxu0 0
        %2366 = vmatprep.subr.bf16.mxu0 0
        %2367 = vmatpush1.bf16.msra.mxu0 0
        %2368 = vmatprep.mubr.bf16.mxu0 0
        %2369 = vmatmul.mubr.bf16.gmra.mrb[0].mxu0 %v2334
        %v2370 = vpop.f32.mrb[0].mxu0
        %v2371 = vadd.f32 0.0, %v2370
        %v2372 = vpop.f32.mrb[0].mxu0
        %v2373 = vpop.f32.mrb[0].mxu0
        %v2374 = vpop.f32.mrb[0].mxu0
        %2375 = vdwg.mxu0
        %v2376 = vpack.c.bf16 %v2371, %v2371
        %v2378 = vsel %vm329, %v2376, 0
        %2380 = vmatprep.subr.bf16.mxu0 0
        %2381 = vmatpush1.bf16.msra.mxu0 %v580
        %2382 = vmatprep.subr.bf16.mxu0 0
        %2383 = vmatpush1.bf16.msra.mxu0 %v581
        %2384 = vmatprep.subr.bf16.mxu0 0
        %2385 = vmatpush1.bf16.msra.mxu0 0
        %2386 = vmatprep.subr.bf16.mxu0 0
        %2387 = vmatpush1.bf16.msra.mxu0 0
        %2388 = vmatprep.subr.bf16.mxu0 0
        %2389 = vmatpush1.bf16.msra.mxu0 0
        %2390 = vmatprep.subr.bf16.mxu0 0
        %2391 = vmatpush1.bf16.msra.mxu0 0
        %2392 = vmatprep.subr.bf16.mxu0 0
        %2393 = vmatpush1.bf16.msra.mxu0 0
        %2394 = vmatprep.subr.bf16.mxu0 0
        %2395 = vmatpush1.bf16.msra.mxu0 0
        %2396 = vmatprep.subr.bf16.mxu0 0
        %2397 = vmatpush1.bf16.msra.mxu0 0
        %2398 = vmatprep.subr.bf16.mxu0 0
        %2399 = vmatpush1.bf16.msra.mxu0 0
        %2400 = vmatprep.subr.bf16.mxu0 0
        %2401 = vmatpush1.bf16.msra.mxu0 0
        %2402 = vmatprep.subr.bf16.mxu0 0
        %2403 = vmatpush1.bf16.msra.mxu0 0
        %2404 = vmatprep.subr.bf16.mxu0 0
        %2405 = vmatpush1.bf16.msra.mxu0 0
        %2406 = vmatprep.subr.bf16.mxu0 0
        %2407 = vmatpush1.bf16.msra.mxu0 0
        %2408 = vmatprep.subr.bf16.mxu0 0
        %2409 = vmatpush1.bf16.msra.mxu0 0
        %2410 = vmatprep.subr.bf16.mxu0 0
        %2411 = vmatpush1.bf16.msra.mxu0 0
        %2412 = vmatprep.mubr.bf16.mxu0 0
        %2413 = vmatmul.mubr.bf16.gmra.mrb[0].mxu0 %v2378
        %v2414 = vpop.f32.mrb[0].mxu0
        %v2415 = vadd.f32 0.0, %v2414
        %v2416 = vpop.f32.mrb[0].mxu0
        %v2417 = vpop.f32.mrb[0].mxu0
        %v2418 = vpop.f32.mrb[0].mxu0
        %2419 = vdwg.mxu0
        %v2420 = vmul.f32 %v2415, 0.17677669
        %v2421 = vsel %vm709, %v2420, -inf
        %v2422 = vrot.slane %v2421, 4
        %v2423 = vmax.f32 %v2421, %v2422
        %v2424 = vrot.slane %v2423, 2
        %v2425 = vmax.f32 %v2423, %v2424
        %v2426 = vrot.slane %v2425, 1
        %v2427 = vmax.f32 %v2425, %v2426
        %v2428 = vsub.f32 %v2420, %v2427
        %v2429 = vmul.f32 %v2428, 1.442695
        %v2430 = vpow.pop %v2429
        %v2431 = vsel %vm709, %v2430, 0.0
        %v2432 = vrot.slane %v2431, 4
        %v2433 = vadd.f32 %v2431, %v2432
        %v2434 = vrot.slane %v2433, 2
        %v2435 = vadd.f32 %v2433, %v2434
        %v2436 = vrot.slane %v2435, 1
        %v2437 = vadd.f32 %v2435, %v2436
        %v2438 = vrcp.pop %v2437
        %v2439 = vmul.f32 %v2430, %v2438
        %v2440 = vadd.f32 %v2439, 1e-08
        %v2441 = vsel %vm709, %v2440, 0.0
        %2442 = vadd.xlane.f32.xlu0 %v2441
        %v2443 = vpop.xlane.xlu0 %2442
        %v2444 = vrcp.pop %v2443
        %v2445 = vmul.f32 %v2440, %v2444
        %v2446 = vpack.c.bf16 %v2445, %v2445
        %v2448 = vsel %vm709, %v2446, 0
        %2450 = vmatprep.subr.bf16.mxu0 0
        %2451 = vmatpush1.bf16.msra.mxu0 %v741
        %2452 = vmatprep.subr.bf16.mxu0 0
        %2453 = vmatpush1.bf16.msra.mxu0 %v743
        %2454 = vmatprep.subr.bf16.mxu0 0
        %2455 = vmatpush1.bf16.msra.mxu0 %v745
        %2456 = vmatprep.subr.bf16.mxu0 0
        %2457 = vmatpush1.bf16.msra.mxu0 %v747
        %2458 = vmatprep.subr.bf16.mxu0 0
        %2459 = vmatpush1.bf16.msra.mxu0 0
        %2460 = vmatprep.subr.bf16.mxu0 0
        %2461 = vmatpush1.bf16.msra.mxu0 0
        %2462 = vmatprep.subr.bf16.mxu0 0
        %2463 = vmatpush1.bf16.msra.mxu0 0
        %2464 = vmatprep.subr.bf16.mxu0 0
        %2465 = vmatpush1.bf16.msra.mxu0 0
        %2466 = vmatprep.subr.bf16.mxu0 0
        %2467 = vmatpush1.bf16.msra.mxu0 0
        %2468 = vmatprep.subr.bf16.mxu0 0
        %2469 = vmatpush1.bf16.msra.mxu0 0
        %2470 = vmatprep.subr.bf16.mxu0 0
        %2471 = vmatpush1.bf16.msra.mxu0 0
        %2472 = vmatprep.subr.bf16.mxu0 0
        %2473 = vmatpush1.bf16.msra.mxu0 0
        %2474 = vmatprep.subr.bf16.mxu0 0
        %2475 = vmatpush1.bf16.msra.mxu0 0
        %2476 = vmatprep.subr.bf16.mxu0 0
        %2477 = vmatpush1.bf16.msra.mxu0 0
        %2478 = vmatprep.subr.bf16.mxu0 0
        %2479 = vmatpush1.bf16.msra.mxu0 0
        %2480 = vmatprep.subr.bf16.mxu0 0
        %2481 = vmatpush1.bf16.msra.mxu0 0
        %2482 = vmatprep.mubr.bf16.mxu0 0
        %2483 = vmatmul.mubr.bf16.gmra.mrb[0].mxu0 %v2448
        %v2484 = vpop.f32.mrb[0].mxu0
        %v2485 = vadd.f32 0.0, %v2484
        %v2486 = vpop.f32.mrb[0].mxu0
        %v2487 = vpop.f32.mrb[0].mxu0
        %v2488 = vpop.f32.mrb[0].mxu0
        %2489 = vdwg.mxu0
        %2491 = vrot.lane.b32.xlu0 %v2316, 32
        %v2492 = vpop.permute.xlu0 %2491
        %v2494 = vsel %vm329, %v2485, %v2492
        %v2495 = vpack.c.bf16 %v2494, %v2494
        %v2497 = vsel %vm709, %v2495, 0
        %2499 = vmatprep.subr.bf16.mxu0 0
        %2500 = vmatpush1.bf16.msra.mxu0 %v817
        %2501 = vmatprep.subr.bf16.mxu0 0
        %2502 = vmatpush1.bf16.msra.mxu0 %v818
        %2503 = vmatprep.subr.bf16.mxu0 0
        %2504 = vmatpush1.bf16.msra.mxu0 %v819
        %2505 = vmatprep.subr.bf16.mxu0 0
        %2506 = vmatpush1.bf16.msra.mxu0 %v820
        %2507 = vmatprep.subr.bf16.mxu0 0
        %2508 = vmatpush1.bf16.msra.mxu0 0
        %2509 = vmatprep.subr.bf16.mxu0 0
        %2510 = vmatpush1.bf16.msra.mxu0 0
        %2511 = vmatprep.subr.bf16.mxu0 0
        %2512 = vmatpush1.bf16.msra.mxu0 0
        %2513 = vmatprep.subr.bf16.mxu0 0
        %2514 = vmatpush1.bf16.msra.mxu0 0
        %2515 = vmatprep.subr.bf16.mxu0 0
        %2516 = vmatpush1.bf16.msra.mxu0 0
        %2517 = vmatprep.subr.bf16.mxu0 0
        %2518 = vmatpush1.bf16.msra.mxu0 0
        %2519 = vmatprep.subr.bf16.mxu0 0
        %2520 = vmatpush1.bf16.msra.mxu0 0
        %2521 = vmatprep.subr.bf16.mxu0 0
        %2522 = vmatpush1.bf16.msra.mxu0 0
        %2523 = vmatprep.subr.bf16.mxu0 0
        %2524 = vmatpush1.bf16.msra.mxu0 0
        %2525 = vmatprep.subr.bf16.mxu0 0
        %2526 = vmatpush1.bf16.msra.mxu0 0
        %2527 = vmatprep.subr.bf16.mxu0 0
        %2528 = vmatpush1.bf16.msra.mxu0 0
        %2529 = vmatprep.subr.bf16.mxu0 0
        %2530 = vmatpush1.bf16.msra.mxu0 0
        %2531 = vmatprep.mubr.bf16.mxu0 0
        %2532 = vmatmul.mubr.bf16.gmra.mrb[0].mxu0 %v2497
        %v2533 = vpop.f32.mrb[0].mxu0
        %v2534 = vadd.f32 %v245, %v2533
        %v2535 = vpop.f32.mrb[0].mxu0
        %v2536 = vpop.f32.mrb[0].mxu0
        %v2537 = vpop.f32.mrb[0].mxu0
        %2538 = vdwg.mxu0
        %v2539 = vxor.u32 %v2534, 2147483648
        %v2540 = vmul.f32 %v2539, 1.442695
        %v2541 = vpow.pop %v2540
        %v2542 = vadd.f32 %v2541, 1.0
        %v2543 = vrcp.pop %v2542
        %v2544 = vmul.f32 1.0, %v2543
        %v2545 = vsub.f32 1.0, %v2544
        %2547 = vrot.lane.b32.xlu0 %v2534, 32
        %v2548 = vpop.permute.xlu0 %2547
        %v2550 = vmul.f32 %v2545, %v2548
        %2552 = vrot.lane.b32.xlu0 %v2550, 64
        %v2553 = vpop.permute.xlu0 %2552
        %v2555 = vsub.f32 %v2534, %v2553
        %v2556 = vtanh.pop %v2555
        %2558 = vrot.lane.b32.xlu0 %v2556, 96
        %v2559 = vpop.permute.xlu0 %2558
        %v2561 = vmul.f32 %v2545, %v2559
        %v2562 = vmul.f32 %v2544, %v2492
        %v2563 = vadd.f32 %v2561, %v2562
        %2565 = vrot.lane.b32.xlu0 %v2563, 96
        %v2566 = vpop.permute.xlu0 %2565
        %v2568 = vsel %vm329, %v2566, 0.0
        %2569 = vadd.xlane.f32.xlu0 %v2568
        %v2570 = vpop.xlane.xlu0 %2569
        %v2571 = vmul.f32 %v2570, %v354
        %v2572 = vsub.f32 %v2563, %v2571
        %v2573 = vmul.f32 %v2572, %v2572
        %2575 = vrot.lane.b32.xlu0 %v2573, 96
        %v2576 = vpop.permute.xlu0 %2575
        %v2578 = vsel %vm329, %v2576, 0.0
        %2579 = vadd.xlane.f32.xlu0 %v2578
        %v2580 = vpop.xlane.xlu0 %2579
        %v2581 = vmul.f32 %v2580, %v354
        %v2582 = vadd.f32 %v2581, 1e-05
        %v2583 = vrsqrt.pop %v2582
        %v2584 = vmul.f32 %v2572, %v2583
        %v2585 = vmul.f32 %v2584, %v916
        %v2586 = vadd.f32 %v2585, %v240
        %v2587 = vpack.c.bf16 %v2586, %v2586
        %2589 = vrot.lane.b32.xlu0 %v2587, 96
        %v2590 = vpop.permute.xlu0 %2589
        %v2592 = vsel %vm329, %v2590, 0
        %2594 = vmatprep.subr.bf16.mxu0 %v1997
        %2595 = vmatpush1.bf16.msra.mxu0 %v932
        %2596 = vmatprep.subr.bf16.mxu0 %v1998
        %2597 = vmatpush1.bf16.msra.mxu0 %v933
        %2598 = vmatprep.subr.bf16.mxu0 0
        %2599 = vmatpush1.bf16.msra.mxu0 0
        %2600 = vmatprep.subr.bf16.mxu0 0
        %2601 = vmatpush1.bf16.msra.mxu0 0
        %2602 = vmatprep.subr.bf16.mxu0 0
        %2603 = vmatpush1.bf16.msra.mxu0 0
        %2604 = vmatprep.subr.bf16.mxu0 0
        %2605 = vmatpush1.bf16.msra.mxu0 0
        %2606 = vmatprep.subr.bf16.mxu0 0
        %2607 = vmatpush1.bf16.msra.mxu0 0
        %2608 = vmatprep.subr.bf16.mxu0 0
        %2609 = vmatpush1.bf16.msra.mxu0 0
        %2610 = vmatprep.subr.bf16.mxu0 0
        %2611 = vmatpush1.bf16.msra.mxu0 0
        %2612 = vmatprep.subr.bf16.mxu0 0
        %2613 = vmatpush1.bf16.msra.mxu0 0
        %2614 = vmatprep.subr.bf16.mxu0 0
        %2615 = vmatpush1.bf16.msra.mxu0 0
        %2616 = vmatprep.subr.bf16.mxu0 0
        %2617 = vmatpush1.bf16.msra.mxu0 0
        %2618 = vmatprep.subr.bf16.mxu0 0
        %2619 = vmatpush1.bf16.msra.mxu0 0
        %2620 = vmatprep.subr.bf16.mxu0 0
        %2621 = vmatpush1.bf16.msra.mxu0 0
        %2622 = vmatprep.subr.bf16.mxu0 0
        %2623 = vmatpush1.bf16.msra.mxu0 0
        %2624 = vmatprep.subr.bf16.mxu0 0
        %2625 = vmatpush1.bf16.msra.mxu0 0
        %2626 = vmatprep.mubr.bf16.mxu0 0
        %2627 = vmatmul.mubr.bf16.gmra.mrb[0].mxu0 %v2592
        %v2628 = vpop.f32.mrb[0].mxu0
        %v2629 = vadd.f32 0.0, %v2628
        %v2630 = vpop.f32.mrb[0].mxu0
        %v2631 = vadd.f32 0.0, %v2630
        %v2632 = vpop.f32.mrb[0].mxu0
        %v2633 = vpop.f32.mrb[0].mxu0
        %2634 = vdwg.mxu0
        %v2635 = vmul.f32 %v2631, %v1992
        %v2636 = vpack.c.bf16 %v2635, %v2635
        %v2637 = vadd.f32 %v2629, %v250
        %2638 = vmatprep.subr.bf16.mxu0 0
        %2639 = vmatpush1.bf16.msra.mxu0 %v2077
        %2640 = vmatprep.subr.bf16.mxu0 0
        %2641 = vmatpush1.bf16.msra.mxu0 %v2078
        %2642 = vmatprep.subr.bf16.mxu0 0
        %2643 = vmatpush1.bf16.msra.mxu0 %v2079
        %2644 = vmatprep.subr.bf16.mxu0 0
        %2645 = vmatpush1.bf16.msra.mxu0 %v2080
        %2646 = vmatprep.subr.bf16.mxu0 0
        %2647 = vmatpush1.bf16.msra.mxu0 %v2081
        %2648 = vmatprep.subr.bf16.mxu0 0
        %2649 = vmatpush1.bf16.msra.mxu0 %v2082
        %2650 = vmatprep.subr.bf16.mxu0 0
        %2651 = vmatpush1.bf16.msra.mxu0 %v2083
        %2652 = vmatprep.subr.bf16.mxu0 0
        %2653 = vmatpush1.bf16.msra.mxu0 %v2084
        %2654 = vmatprep.subr.bf16.mxu0 0
        %2655 = vmatpush1.bf16.msra.mxu0 0
        %2656 = vmatprep.subr.bf16.mxu0 0
        %2657 = vmatpush1.bf16.msra.mxu0 0
        %2658 = vmatprep.subr.bf16.mxu0 0
        %2659 = vmatpush1.bf16.msra.mxu0 0
        %2660 = vmatprep.subr.bf16.mxu0 0
        %2661 = vmatpush1.bf16.msra.mxu0 0
        %2662 = vmatprep.subr.bf16.mxu0 0
        %2663 = vmatpush1.bf16.msra.mxu0 0
        %2664 = vmatprep.subr.bf16.mxu0 0
        %2665 = vmatpush1.bf16.msra.mxu0 0
        %2666 = vmatprep.subr.bf16.mxu0 0
        %2667 = vmatpush1.bf16.msra.mxu0 0
        %2668 = vmatprep.subr.bf16.mxu0 0
        %2669 = vmatpush1.bf16.msra.mxu0 0
        %2670 = vmatprep.mubr.bf16.mxu0 0
        %2671 = vmatmul.mubr.bf16.gmra.mrb[0].mxu0 %v2636
        %v2672 = vpop.f32.mrb[0].mxu0
        %v2673 = vadd.f32 0.0, %v2672
        %v2674 = vpop.f32.mrb[0].mxu0
        %v2675 = vpop.f32.mrb[0].mxu0
        %v2676 = vpop.f32.mrb[0].mxu0
        %2677 = vdwg.mxu0
        %v2678 = vadd.f32 %v2637, %v2673
        %v2679 = vmax.f32 %v2678, 0.0
        %v2680 = vpack.c.bf16 %v2679, %v2679
        %2681 = vmatprep.subr.bf16.mxu0 %v2152
        %2682 = vmatpush1.bf16.msra.mxu0 %v1013
        %2683 = vmatprep.subr.bf16.mxu0 %v2153
        %2684 = vmatpush1.bf16.msra.mxu0 %v1014
        %2685 = vmatprep.subr.bf16.mxu0 %v2154
        %2686 = vmatpush1.bf16.msra.mxu0 %v1015
        %2687 = vmatprep.subr.bf16.mxu0 %v2155
        %2688 = vmatpush1.bf16.msra.mxu0 %v1016
        %2689 = vmatprep.subr.bf16.mxu0 %v2156
        %2690 = vmatpush1.bf16.msra.mxu0 %v1017
        %2691 = vmatprep.subr.bf16.mxu0 %v2157
        %2692 = vmatpush1.bf16.msra.mxu0 %v1018
        %2693 = vmatprep.subr.bf16.mxu0 %v2158
        %2694 = vmatpush1.bf16.msra.mxu0 %v1019
        %2695 = vmatprep.subr.bf16.mxu0 %v2159
        %2696 = vmatpush1.bf16.msra.mxu0 %v1020
        %2697 = vmatprep.subr.bf16.mxu0 0
        %2698 = vmatpush1.bf16.msra.mxu0 0
        %2699 = vmatprep.subr.bf16.mxu0 0
        %2700 = vmatpush1.bf16.msra.mxu0 0
        %2701 = vmatprep.subr.bf16.mxu0 0
        %2702 = vmatpush1.bf16.msra.mxu0 0
        %2703 = vmatprep.subr.bf16.mxu0 0
        %2704 = vmatpush1.bf16.msra.mxu0 0
        %2705 = vmatprep.subr.bf16.mxu0 0
        %2706 = vmatpush1.bf16.msra.mxu0 0
        %2707 = vmatprep.subr.bf16.mxu0 0
        %2708 = vmatpush1.bf16.msra.mxu0 0
        %2709 = vmatprep.subr.bf16.mxu0 0
        %2710 = vmatpush1.bf16.msra.mxu0 0
        %2711 = vmatprep.subr.bf16.mxu0 0
        %2712 = vmatpush1.bf16.msra.mxu0 0
        %2713 = vmatprep.mubr.bf16.mxu0 0
        %2714 = vmatmul.mubr.bf16.gmra.mrb[0].mxu0 %v2680
        %v2715 = vpop.f32.mrb[0].mxu0
        %v2716 = vadd.f32 0.0, %v2715
        %v2717 = vpop.f32.mrb[0].mxu0
        %v2718 = vadd.f32 0.0, %v2717
        %v2719 = vpop.f32.mrb[0].mxu0
        %v2720 = vpop.f32.mrb[0].mxu0
        %2721 = vdwg.mxu0
        %v2722 = vmul.f32 %v2716, %v2211
        %v2723 = vmul.f32 %v2718, %v2211
        %v2724 = vpack.c.bf16 %v2722, %v2722
        %v2725 = vpack.c.bf16 %v2723, %v2723
        %v2726 = vadd.f32 %v2716, %v1030
        %2729 = vrot.lane.b32.xlu0 %v2724, 96
        %v2730 = vpop.permute.xlu0 %2729
        %2731 = vrot.lane.b32.xlu0 %v2725, 96
        %v2732 = vpop.permute.xlu0 %2731
        %v2733 = vsel %vm2224, %v2730, %v2732
        %2735 = vmatprep.subr.bf16.mxu0 0
        %2736 = vmatpush1.bf16.msra.mxu0 %v2259
        %2737 = vmatprep.subr.bf16.mxu0 0
        %2738 = vmatpush1.bf16.msra.mxu0 %v2260
        %2739 = vmatprep.subr.bf16.mxu0 0
        %2740 = vmatpush1.bf16.msra.mxu0 %v2261
        %2741 = vmatprep.subr.bf16.mxu0 0
        %2742 = vmatpush1.bf16.msra.mxu0 %v2262
        %2743 = vmatprep.subr.bf16.mxu0 0
        %2744 = vmatpush1.bf16.msra.mxu0 %v2263
        %2745 = vmatprep.subr.bf16.mxu0 0
        %2746 = vmatpush1.bf16.msra.mxu0 %v2264
        %2747 = vmatprep.subr.bf16.mxu0 0
        %2748 = vmatpush1.bf16.msra.mxu0 %v2265
        %2749 = vmatprep.subr.bf16.mxu0 0
        %2750 = vmatpush1.bf16.msra.mxu0 %v2266
        %2751 = vmatprep.subr.bf16.mxu0 0
        %2752 = vmatpush1.bf16.msra.mxu0 0
        %2753 = vmatprep.subr.bf16.mxu0 0
        %2754 = vmatpush1.bf16.msra.mxu0 0
        %2755 = vmatprep.subr.bf16.mxu0 0
        %2756 = vmatpush1.bf16.msra.mxu0 0
        %2757 = vmatprep.subr.bf16.mxu0 0
        %2758 = vmatpush1.bf16.msra.mxu0 0
        %2759 = vmatprep.subr.bf16.mxu0 0
        %2760 = vmatpush1.bf16.msra.mxu0 0
        %2761 = vmatprep.subr.bf16.mxu0 0
        %2762 = vmatpush1.bf16.msra.mxu0 0
        %2763 = vmatprep.subr.bf16.mxu0 0
        %2764 = vmatpush1.bf16.msra.mxu0 0
        %2765 = vmatprep.subr.bf16.mxu0 0
        %2766 = vmatpush1.bf16.msra.mxu0 0
        %2767 = vmatprep.mubr.bf16.mxu0 0
        %2768 = vmatmul.mubr.bf16.gmra.mrb[0].mxu0 %v2733
        %v2769 = vpop.f32.mrb[0].mxu0
        %v2770 = vadd.f32 0.0, %v2769
        %v2771 = vpop.f32.mrb[0].mxu0
        %v2772 = vpop.f32.mrb[0].mxu0
        %v2773 = vpop.f32.mrb[0].mxu0
        %2774 = vdwg.mxu0
        %v2775 = vadd.f32 %v2726, %v2770
        %v2776 = vadd.f32 %v2775, %v2566
        %v2777 = vsel %vm329, %v2776, 0.0
        %2778 = vadd.xlane.f32.xlu0 %v2777
        %v2779 = vpop.xlane.xlu0 %2778
        %v2780 = vmul.f32 %v2779, %v354
        %v2781 = vsub.f32 %v2776, %v2780
        %v2782 = vmul.f32 %v2781, %v2781
        %v2783 = vsel %vm329, %v2782, 0.0
        %2784 = vadd.xlane.f32.xlu0 %v2783
        %v2785 = vpop.xlane.xlu0 %2784
        %v2786 = vmul.f32 %v2785, %v354
        %v2787 = vadd.f32 %v2786, 1e-05
        %v2788 = vrsqrt.pop %v2787
        %v2789 = vmul.f32 %v2781, %v2788
        %v2790 = vmul.f32 %v2789, %v601
        %v2791 = vadd.f32 %v2790, %v605
        %v2792 = vpack.c.bf16 %v2791, %v2791
        %v2794 = vsel %vm329, %v2792, 0
        %2796 = vmatprep.subr.bf16.mxu0 0
        %2797 = vmatpush1.bf16.msra.mxu0 %v617
        %2798 = vmatprep.subr.bf16.mxu0 0
        %2799 = vmatpush1.bf16.msra.mxu0 %v618
        %2800 = vmatprep.subr.bf16.mxu0 0
        %2801 = vmatpush1.bf16.msra.mxu0 0
        %2802 = vmatprep.subr.bf16.mxu0 0
        %2803 = vmatpush1.bf16.msra.mxu0 0
        %2804 = vmatprep.subr.bf16.mxu0 0
        %2805 = vmatpush1.bf16.msra.mxu0 0
        %2806 = vmatprep.subr.bf16.mxu0 0
        %2807 = vmatpush1.bf16.msra.mxu0 0
        %2808 = vmatprep.subr.bf16.mxu0 0
        %2809 = vmatpush1.bf16.msra.mxu0 0
        %2810 = vmatprep.subr.bf16.mxu0 0
        %2811 = vmatpush1.bf16.msra.mxu0 0
        %2812 = vmatprep.subr.bf16.mxu0 0
        %2813 = vmatpush1.bf16.msra.mxu0 0
        %2814 = vmatprep.subr.bf16.mxu0 0
        %2815 = vmatpush1.bf16.msra.mxu0 0
        %2816 = vmatprep.subr.bf16.mxu0 0
        %2817 = vmatpush1.bf16.msra.mxu0 0
        %2818 = vmatprep.subr.bf16.mxu0 0
        %2819 = vmatpush1.bf16.msra.mxu0 0
        %2820 = vmatprep.subr.bf16.mxu0 0
        %2821 = vmatpush1.bf16.msra.mxu0 0
        %2822 = vmatprep.subr.bf16.mxu0 0
        %2823 = vmatpush1.bf16.msra.mxu0 0
        %2824 = vmatprep.subr.bf16.mxu0 0
        %2825 = vmatpush1.bf16.msra.mxu0 0
        %2826 = vmatprep.subr.bf16.mxu0 0
        %2827 = vmatpush1.bf16.msra.mxu0 0
        %2828 = vmatprep.mubr.bf16.mxu0 0
        %2829 = vmatmul.mubr.bf16.gmra.mrb[0].mxu0 %v2794
        %v2830 = vpop.f32.mrb[0].mxu0
        %v2831 = vadd.f32 0.0, %v2830
        %v2832 = vpop.f32.mrb[0].mxu0
        %v2833 = vpop.f32.mrb[0].mxu0
        %v2834 = vpop.f32.mrb[0].mxu0
        %2835 = vdwg.mxu0
        %v2836 = vpack.c.bf16 %v2831, %v2831
        %v2838 = vsel %vm329, %v2836, 0
        %2840 = vmatprep.subr.bf16.mxu0 0
        %2841 = vmatpush1.bf16.msra.mxu0 %v580
        %2842 = vmatprep.subr.bf16.mxu0 0
        %2843 = vmatpush1.bf16.msra.mxu0 %v581
        %2844 = vmatprep.subr.bf16.mxu0 0
        %2845 = vmatpush1.bf16.msra.mxu0 0
        %2846 = vmatprep.subr.bf16.mxu0 0
        %2847 = vmatpush1.bf16.msra.mxu0 0
        %2848 = vmatprep.subr.bf16.mxu0 0
        %2849 = vmatpush1.bf16.msra.mxu0 0
        %2850 = vmatprep.subr.bf16.mxu0 0
        %2851 = vmatpush1.bf16.msra.mxu0 0
        %2852 = vmatprep.subr.bf16.mxu0 0
        %2853 = vmatpush1.bf16.msra.mxu0 0
        %2854 = vmatprep.subr.bf16.mxu0 0
        %2855 = vmatpush1.bf16.msra.mxu0 0
        %2856 = vmatprep.subr.bf16.mxu0 0
        %2857 = vmatpush1.bf16.msra.mxu0 0
        %2858 = vmatprep.subr.bf16.mxu0 0
        %2859 = vmatpush1.bf16.msra.mxu0 0
        %2860 = vmatprep.subr.bf16.mxu0 0
        %2861 = vmatpush1.bf16.msra.mxu0 0
        %2862 = vmatprep.subr.bf16.mxu0 0
        %2863 = vmatpush1.bf16.msra.mxu0 0
        %2864 = vmatprep.subr.bf16.mxu0 0
        %2865 = vmatpush1.bf16.msra.mxu0 0
        %2866 = vmatprep.subr.bf16.mxu0 0
        %2867 = vmatpush1.bf16.msra.mxu0 0
        %2868 = vmatprep.subr.bf16.mxu0 0
        %2869 = vmatpush1.bf16.msra.mxu0 0
        %2870 = vmatprep.subr.bf16.mxu0 0
        %2871 = vmatpush1.bf16.msra.mxu0 0
        %2872 = vmatprep.mubr.bf16.mxu0 0
        %2873 = vmatmul.mubr.bf16.gmra.mrb[0].mxu0 %v2838
        %v2874 = vpop.f32.mrb[0].mxu0
        %v2875 = vadd.f32 0.0, %v2874
        %v2876 = vpop.f32.mrb[0].mxu0
        %v2877 = vpop.f32.mrb[0].mxu0
        %v2878 = vpop.f32.mrb[0].mxu0
        %2879 = vdwg.mxu0
        %v2880 = vmul.f32 %v2875, 0.17677669
        %v2881 = vsel %vm709, %v2880, -inf
        %v2882 = vrot.slane %v2881, 4
        %v2883 = vmax.f32 %v2881, %v2882
        %v2884 = vrot.slane %v2883, 2
        %v2885 = vmax.f32 %v2883, %v2884
        %v2886 = vrot.slane %v2885, 1
        %v2887 = vmax.f32 %v2885, %v2886
        %v2888 = vsub.f32 %v2880, %v2887
        %v2889 = vmul.f32 %v2888, 1.442695
        %v2890 = vpow.pop %v2889
        %v2891 = vsel %vm709, %v2890, 0.0
        %v2892 = vrot.slane %v2891, 4
        %v2893 = vadd.f32 %v2891, %v2892
        %v2894 = vrot.slane %v2893, 2
        %v2895 = vadd.f32 %v2893, %v2894
        %v2896 = vrot.slane %v2895, 1
        %v2897 = vadd.f32 %v2895, %v2896
        %v2898 = vrcp.pop %v2897
        %v2899 = vmul.f32 %v2890, %v2898
        %v2900 = vadd.f32 %v2899, 1e-08
        %v2901 = vsel %vm709, %v2900, 0.0
        %2902 = vadd.xlane.f32.xlu0 %v2901
        %v2903 = vpop.xlane.xlu0 %2902
        %v2904 = vrcp.pop %v2903
        %v2905 = vmul.f32 %v2900, %v2904
        %v2906 = vpack.c.bf16 %v2905, %v2905
        %v2908 = vsel %vm709, %v2906, 0
        %2910 = vmatprep.subr.bf16.mxu0 0
        %2911 = vmatpush1.bf16.msra.mxu0 %v741
        %2912 = vmatprep.subr.bf16.mxu0 0
        %2913 = vmatpush1.bf16.msra.mxu0 %v743
        %2914 = vmatprep.subr.bf16.mxu0 0
        %2915 = vmatpush1.bf16.msra.mxu0 %v745
        %2916 = vmatprep.subr.bf16.mxu0 0
        %2917 = vmatpush1.bf16.msra.mxu0 %v747
        %2918 = vmatprep.subr.bf16.mxu0 0
        %2919 = vmatpush1.bf16.msra.mxu0 0
        %2920 = vmatprep.subr.bf16.mxu0 0
        %2921 = vmatpush1.bf16.msra.mxu0 0
        %2922 = vmatprep.subr.bf16.mxu0 0
        %2923 = vmatpush1.bf16.msra.mxu0 0
        %2924 = vmatprep.subr.bf16.mxu0 0
        %2925 = vmatpush1.bf16.msra.mxu0 0
        %2926 = vmatprep.subr.bf16.mxu0 0
        %2927 = vmatpush1.bf16.msra.mxu0 0
        %2928 = vmatprep.subr.bf16.mxu0 0
        %2929 = vmatpush1.bf16.msra.mxu0 0
        %2930 = vmatprep.subr.bf16.mxu0 0
        %2931 = vmatpush1.bf16.msra.mxu0 0
        %2932 = vmatprep.subr.bf16.mxu0 0
        %2933 = vmatpush1.bf16.msra.mxu0 0
        %2934 = vmatprep.subr.bf16.mxu0 0
        %2935 = vmatpush1.bf16.msra.mxu0 0
        %2936 = vmatprep.subr.bf16.mxu0 0
        %2937 = vmatpush1.bf16.msra.mxu0 0
        %2938 = vmatprep.subr.bf16.mxu0 0
        %2939 = vmatpush1.bf16.msra.mxu0 0
        %2940 = vmatprep.subr.bf16.mxu0 0
        %2941 = vmatpush1.bf16.msra.mxu0 0
        %2942 = vmatprep.mubr.bf16.mxu0 0
        %2943 = vmatmul.mubr.bf16.gmra.mrb[0].mxu0 %v2908
        %v2944 = vpop.f32.mrb[0].mxu0
        %v2945 = vadd.f32 0.0, %v2944
        %v2946 = vpop.f32.mrb[0].mxu0
        %v2947 = vpop.f32.mrb[0].mxu0
        %v2948 = vpop.f32.mrb[0].mxu0
        %2949 = vdwg.mxu0
        %2951 = vrot.lane.b32.xlu0 %v2776, 32
        %v2952 = vpop.permute.xlu0 %2951
        %v2954 = vsel %vm329, %v2945, %v2952
        %v2955 = vpack.c.bf16 %v2954, %v2954
        %v2957 = vsel %vm709, %v2955, 0
        %2959 = vmatprep.subr.bf16.mxu0 0
        %2960 = vmatpush1.bf16.msra.mxu0 %v817
        %2961 = vmatprep.subr.bf16.mxu0 0
        %2962 = vmatpush1.bf16.msra.mxu0 %v818
        %2963 = vmatprep.subr.bf16.mxu0 0
        %2964 = vmatpush1.bf16.msra.mxu0 %v819
        %2965 = vmatprep.subr.bf16.mxu0 0
        %2966 = vmatpush1.bf16.msra.mxu0 %v820
        %2967 = vmatprep.subr.bf16.mxu0 0
        %2968 = vmatpush1.bf16.msra.mxu0 0
        %2969 = vmatprep.subr.bf16.mxu0 0
        %2970 = vmatpush1.bf16.msra.mxu0 0
        %2971 = vmatprep.subr.bf16.mxu0 0
        %2972 = vmatpush1.bf16.msra.mxu0 0
        %2973 = vmatprep.subr.bf16.mxu0 0
        %2974 = vmatpush1.bf16.msra.mxu0 0
        %2975 = vmatprep.subr.bf16.mxu0 0
        %2976 = vmatpush1.bf16.msra.mxu0 0
        %2977 = vmatprep.subr.bf16.mxu0 0
        %2978 = vmatpush1.bf16.msra.mxu0 0
        %2979 = vmatprep.subr.bf16.mxu0 0
        %2980 = vmatpush1.bf16.msra.mxu0 0
        %2981 = vmatprep.subr.bf16.mxu0 0
        %2982 = vmatpush1.bf16.msra.mxu0 0
        %2983 = vmatprep.subr.bf16.mxu0 0
        %2984 = vmatpush1.bf16.msra.mxu0 0
        %2985 = vmatprep.subr.bf16.mxu0 0
        %2986 = vmatpush1.bf16.msra.mxu0 0
        %2987 = vmatprep.subr.bf16.mxu0 0
        %2988 = vmatpush1.bf16.msra.mxu0 0
        %2989 = vmatprep.subr.bf16.mxu0 0
        %2990 = vmatpush1.bf16.msra.mxu0 0
        %2991 = vmatprep.mubr.bf16.mxu0 0
        %2992 = vmatmul.mubr.bf16.gmra.mrb[0].mxu0 %v2957
        %v2993 = vpop.f32.mrb[0].mxu0
        %v2994 = vadd.f32 %v245, %v2993
        %v2995 = vpop.f32.mrb[0].mxu0
        %v2996 = vpop.f32.mrb[0].mxu0
        %v2997 = vpop.f32.mrb[0].mxu0
        %2998 = vdwg.mxu0
        %v2999 = vxor.u32 %v2994, 2147483648
        %v3000 = vmul.f32 %v2999, 1.442695
        %v3001 = vpow.pop %v3000
        %v3002 = vadd.f32 %v3001, 1.0
        %v3003 = vrcp.pop %v3002
        %v3004 = vmul.f32 1.0, %v3003
        %v3005 = vsub.f32 1.0, %v3004
        %3007 = vrot.lane.b32.xlu0 %v2994, 32
        %v3008 = vpop.permute.xlu0 %3007
        %v3010 = vmul.f32 %v3005, %v3008
        %3012 = vrot.lane.b32.xlu0 %v3010, 64
        %v3013 = vpop.permute.xlu0 %3012
        %v3015 = vsub.f32 %v2994, %v3013
        %v3016 = vtanh.pop %v3015
        %3018 = vrot.lane.b32.xlu0 %v3016, 96
        %v3019 = vpop.permute.xlu0 %3018
        %v3021 = vmul.f32 %v3005, %v3019
        %v3022 = vmul.f32 %v3004, %v2952
        %v3023 = vadd.f32 %v3021, %v3022
        %3025 = vrot.lane.b32.xlu0 %v3023, 96
        %v3026 = vpop.permute.xlu0 %3025
        %v3028 = vsel %vm329, %v3026, 0.0
        %3029 = vadd.xlane.f32.xlu0 %v3028
        %v3030 = vpop.xlane.xlu0 %3029
        %v3031 = vmul.f32 %v3030, %v354
        %v3032 = vsub.f32 %v3023, %v3031
        %v3033 = vmul.f32 %v3032, %v3032
        %3035 = vrot.lane.b32.xlu0 %v3033, 96
        %v3036 = vpop.permute.xlu0 %3035
        %v3038 = vsel %vm329, %v3036, 0.0
        %3039 = vadd.xlane.f32.xlu0 %v3038
        %v3040 = vpop.xlane.xlu0 %3039
        %v3041 = vmul.f32 %v3040, %v354
        %v3042 = vadd.f32 %v3041, 1e-05
        %v3043 = vrsqrt.pop %v3042
        %v3044 = vmul.f32 %v3032, %v3043
        %v3045 = vmul.f32 %v3044, %v916
        %v3046 = vadd.f32 %v3045, %v240
        %v3047 = vpack.c.bf16 %v3046, %v3046
        %3049 = vrot.lane.b32.xlu0 %v3047, 96
        %v3050 = vpop.permute.xlu0 %3049
        %v3052 = vsel %vm329, %v3050, 0
        %3054 = vmatprep.subr.bf16.mxu0 %v1997
        %3055 = vmatpush1.bf16.msra.mxu0 %v932
        %3056 = vmatprep.subr.bf16.mxu0 %v1998
        %3057 = vmatpush1.bf16.msra.mxu0 %v933
        %3058 = vmatprep.subr.bf16.mxu0 0
        %3059 = vmatpush1.bf16.msra.mxu0 0
        %3060 = vmatprep.subr.bf16.mxu0 0
        %3061 = vmatpush1.bf16.msra.mxu0 0
        %3062 = vmatprep.subr.bf16.mxu0 0
        %3063 = vmatpush1.bf16.msra.mxu0 0
        %3064 = vmatprep.subr.bf16.mxu0 0
        %3065 = vmatpush1.bf16.msra.mxu0 0
        %3066 = vmatprep.subr.bf16.mxu0 0
        %3067 = vmatpush1.bf16.msra.mxu0 0
        %3068 = vmatprep.subr.bf16.mxu0 0
        %3069 = vmatpush1.bf16.msra.mxu0 0
        %3070 = vmatprep.subr.bf16.mxu0 0
        %3071 = vmatpush1.bf16.msra.mxu0 0
        %3072 = vmatprep.subr.bf16.mxu0 0
        %3073 = vmatpush1.bf16.msra.mxu0 0
        %3074 = vmatprep.subr.bf16.mxu0 0
        %3075 = vmatpush1.bf16.msra.mxu0 0
        %3076 = vmatprep.subr.bf16.mxu0 0
        %3077 = vmatpush1.bf16.msra.mxu0 0
        %3078 = vmatprep.subr.bf16.mxu0 0
        %3079 = vmatpush1.bf16.msra.mxu0 0
        %3080 = vmatprep.subr.bf16.mxu0 0
        %3081 = vmatpush1.bf16.msra.mxu0 0
        %3082 = vmatprep.subr.bf16.mxu0 0
        %3083 = vmatpush1.bf16.msra.mxu0 0
        %3084 = vmatprep.subr.bf16.mxu0 0
        %3085 = vmatpush1.bf16.msra.mxu0 0
        %3086 = vmatprep.mubr.bf16.mxu0 0
        %3087 = vmatmul.mubr.bf16.gmra.mrb[0].mxu0 %v3052
        %v3088 = vpop.f32.mrb[0].mxu0
        %v3089 = vadd.f32 0.0, %v3088
        %v3090 = vpop.f32.mrb[0].mxu0
        %v3091 = vadd.f32 0.0, %v3090
        %v3092 = vpop.f32.mrb[0].mxu0
        %v3093 = vpop.f32.mrb[0].mxu0
        %3094 = vdwg.mxu0
        %v3095 = vmul.f32 %v3091, %v1992
        %v3096 = vpack.c.bf16 %v3095, %v3095
        %v3097 = vadd.f32 %v3089, %v250
        %3098 = vmatprep.subr.bf16.mxu0 0
        %3099 = vmatpush1.bf16.msra.mxu0 %v2077
        %3100 = vmatprep.subr.bf16.mxu0 0
        %3101 = vmatpush1.bf16.msra.mxu0 %v2078
        %3102 = vmatprep.subr.bf16.mxu0 0
        %3103 = vmatpush1.bf16.msra.mxu0 %v2079
        %3104 = vmatprep.subr.bf16.mxu0 0
        %3105 = vmatpush1.bf16.msra.mxu0 %v2080
        %3106 = vmatprep.subr.bf16.mxu0 0
        %3107 = vmatpush1.bf16.msra.mxu0 %v2081
        %3108 = vmatprep.subr.bf16.mxu0 0
        %3109 = vmatpush1.bf16.msra.mxu0 %v2082
        %3110 = vmatprep.subr.bf16.mxu0 0
        %3111 = vmatpush1.bf16.msra.mxu0 %v2083
        %3112 = vmatprep.subr.bf16.mxu0 0
        %3113 = vmatpush1.bf16.msra.mxu0 %v2084
        %3114 = vmatprep.subr.bf16.mxu0 0
        %3115 = vmatpush1.bf16.msra.mxu0 0
        %3116 = vmatprep.subr.bf16.mxu0 0
        %3117 = vmatpush1.bf16.msra.mxu0 0
        %3118 = vmatprep.subr.bf16.mxu0 0
        %3119 = vmatpush1.bf16.msra.mxu0 0
        %3120 = vmatprep.subr.bf16.mxu0 0
        %3121 = vmatpush1.bf16.msra.mxu0 0
        %3122 = vmatprep.subr.bf16.mxu0 0
        %3123 = vmatpush1.bf16.msra.mxu0 0
        %3124 = vmatprep.subr.bf16.mxu0 0
        %3125 = vmatpush1.bf16.msra.mxu0 0
        %3126 = vmatprep.subr.bf16.mxu0 0
        %3127 = vmatpush1.bf16.msra.mxu0 0
        %3128 = vmatprep.subr.bf16.mxu0 0
        %3129 = vmatpush1.bf16.msra.mxu0 0
        %3130 = vmatprep.mubr.bf16.mxu0 0
        %3131 = vmatmul.mubr.bf16.gmra.mrb[0].mxu0 %v3096
        %v3132 = vpop.f32.mrb[0].mxu0
        %v3133 = vadd.f32 0.0, %v3132
        %v3134 = vpop.f32.mrb[0].mxu0
        %v3135 = vpop.f32.mrb[0].mxu0
        %v3136 = vpop.f32.mrb[0].mxu0
        %3137 = vdwg.mxu0
        %v3138 = vadd.f32 %v3097, %v3133
        %v3139 = vmax.f32 %v3138, 0.0
        %v3140 = vpack.c.bf16 %v3139, %v3139
        %3141 = vmatprep.subr.bf16.mxu0 %v2152
        %3142 = vmatpush1.bf16.msra.mxu0 %v1013
        %3143 = vmatprep.subr.bf16.mxu0 %v2153
        %3144 = vmatpush1.bf16.msra.mxu0 %v1014
        %3145 = vmatprep.subr.bf16.mxu0 %v2154
        %3146 = vmatpush1.bf16.msra.mxu0 %v1015
        %3147 = vmatprep.subr.bf16.mxu0 %v2155
        %3148 = vmatpush1.bf16.msra.mxu0 %v1016
        %3149 = vmatprep.subr.bf16.mxu0 %v2156
        %3150 = vmatpush1.bf16.msra.mxu0 %v1017
        %3151 = vmatprep.subr.bf16.mxu0 %v2157
        %3152 = vmatpush1.bf16.msra.mxu0 %v1018
        %3153 = vmatprep.subr.bf16.mxu0 %v2158
        %3154 = vmatpush1.bf16.msra.mxu0 %v1019
        %3155 = vmatprep.subr.bf16.mxu0 %v2159
        %3156 = vmatpush1.bf16.msra.mxu0 %v1020
        %3157 = vmatprep.subr.bf16.mxu0 0
        %3158 = vmatpush1.bf16.msra.mxu0 0
        %3159 = vmatprep.subr.bf16.mxu0 0
        %3160 = vmatpush1.bf16.msra.mxu0 0
        %3161 = vmatprep.subr.bf16.mxu0 0
        %3162 = vmatpush1.bf16.msra.mxu0 0
        %3163 = vmatprep.subr.bf16.mxu0 0
        %3164 = vmatpush1.bf16.msra.mxu0 0
        %3165 = vmatprep.subr.bf16.mxu0 0
        %3166 = vmatpush1.bf16.msra.mxu0 0
        %3167 = vmatprep.subr.bf16.mxu0 0
        %3168 = vmatpush1.bf16.msra.mxu0 0
        %3169 = vmatprep.subr.bf16.mxu0 0
        %3170 = vmatpush1.bf16.msra.mxu0 0
        %3171 = vmatprep.subr.bf16.mxu0 0
        %3172 = vmatpush1.bf16.msra.mxu0 0
        %3173 = vmatprep.mubr.bf16.mxu0 0
        %3174 = vmatmul.mubr.bf16.gmra.mrb[0].mxu0 %v3140
        %v3175 = vpop.f32.mrb[0].mxu0
        %v3176 = vadd.f32 0.0, %v3175
        %v3177 = vpop.f32.mrb[0].mxu0
        %v3178 = vadd.f32 0.0, %v3177
        %v3179 = vpop.f32.mrb[0].mxu0
        %v3180 = vpop.f32.mrb[0].mxu0
        %3181 = vdwg.mxu0
        %v3182 = vmul.f32 %v3176, %v2211
        %v3183 = vmul.f32 %v3178, %v2211
        %v3184 = vpack.c.bf16 %v3182, %v3182
        %v3185 = vpack.c.bf16 %v3183, %v3183
        %v3186 = vadd.f32 %v3176, %v1030
        %3189 = vrot.lane.b32.xlu0 %v3184, 96
        %v3190 = vpop.permute.xlu0 %3189
        %3191 = vrot.lane.b32.xlu0 %v3185, 96
        %v3192 = vpop.permute.xlu0 %3191
        %v3193 = vsel %vm2224, %v3190, %v3192
        %3195 = vmatprep.subr.bf16.mxu0 0
        %3196 = vmatpush1.bf16.msra.mxu0 %v2259
        %3197 = vmatprep.subr.bf16.mxu0 0
        %3198 = vmatpush1.bf16.msra.mxu0 %v2260
        %3199 = vmatprep.subr.bf16.mxu0 0
        %3200 = vmatpush1.bf16.msra.mxu0 %v2261
        %3201 = vmatprep.subr.bf16.mxu0 0
        %3202 = vmatpush1.bf16.msra.mxu0 %v2262
        %3203 = vmatprep.subr.bf16.mxu0 0
        %3204 = vmatpush1.bf16.msra.mxu0 %v2263
        %3205 = vmatprep.subr.bf16.mxu0 0
        %3206 = vmatpush1.bf16.msra.mxu0 %v2264
        %3207 = vmatprep.subr.bf16.mxu0 0
        %3208 = vmatpush1.bf16.msra.mxu0 %v2265
        %3209 = vmatprep.subr.bf16.mxu0 0
        %3210 = vmatpush1.bf16.msra.mxu0 %v2266
        %3211 = vmatprep.subr.bf16.mxu0 0
        %3212 = vmatpush1.bf16.msra.mxu0 0
        %3213 = vmatprep.subr.bf16.mxu0 0
        %3214 = vmatpush1.bf16.msra.mxu0 0
        %3215 = vmatprep.subr.bf16.mxu0 0
        %3216 = vmatpush1.bf16.msra.mxu0 0
        %3217 = vmatprep.subr.bf16.mxu0 0
        %3218 = vmatpush1.bf16.msra.mxu0 0
        %3219 = vmatprep.subr.bf16.mxu0 0
        %3220 = vmatpush1.bf16.msra.mxu0 0
        %3221 = vmatprep.subr.bf16.mxu0 0
        %3222 = vmatpush1.bf16.msra.mxu0 0
        %3223 = vmatprep.subr.bf16.mxu0 0
        %3224 = vmatpush1.bf16.msra.mxu0 0
        %3225 = vmatprep.subr.bf16.mxu0 0
        %3226 = vmatpush1.bf16.msra.mxu0 0
        %3227 = vmatprep.mubr.bf16.mxu0 0
        %3228 = vmatmul.mubr.bf16.gmra.mrb[0].mxu0 %v3193
        %v3229 = vpop.f32.mrb[0].mxu0
        %v3230 = vadd.f32 0.0, %v3229
        %v3231 = vpop.f32.mrb[0].mxu0
        %v3232 = vpop.f32.mrb[0].mxu0
        %v3233 = vpop.f32.mrb[0].mxu0
        %3234 = vdwg.mxu0
        %v3235 = vadd.f32 %v3186, %v3230
        %v3236 = vadd.f32 %v3235, %v3026
        %3238 = vrot.lane.b32.xlu0 %v2899, 32
        %v3239 = vpop.permute.xlu0 %3238
        %v3241 = vsel %vm329, %v3236, %v3239
        %vm3242 = vcmask 785408
        %v3243 = vsel %vm3242, %v3241, %v1981
        %vm3244 = vcmask 916480
        %v3245 = vsel %vm3244, %v3243, %v1983
        %3247 = vrot.lane.b32.xlu0 %v1555, 32
        %v3248 = vpop.permute.xlu0 %3247
        %v3250 = vsel %vm329, %v1792, %v3248
        %v3251 = vsel %vm3242, %v3250, 0.0
        %3252 = vst [vmem:[%s229] sm:$0xff] %v3245
        %3253 = vst [vmem:[%s229 + $0x8] sm:$0xff] %v3251
        %p3254 = scmp.lt.s32.totalorder %s16, 1
        %s3255 = scalar_select %p3254, %s16, 1
        %s3256 = smul.addr %s3255, 2
        %s3257 = smul.addr %s3256, 8
        %s3258 = scalar_lea.vmem %s4, %s3257
        // Predicated region
        $region41: #{grouping_forward.1} parent=35 // pred_check
          %p3259 = pneg %p128
        $region42: #{grouping_forward.1} parent=35 // pred_check_branch
          %3261 = sbr.rel (%p3259) target = $region44
        $region43: #{grouping_forward.1} parent=35 // pred_region
          _
        $region44: #{grouping_forward.1} parent=35 // pred_fallthru
          _
      $region36: #{grouping_forward.1} parent=5 // pred_fallthru
        _
      %p3262 = scmp.le.s32.totalorder 2, %s11
      // Predicated region
      $region45: #{grouping_forward.1} parent=5 // pred_check
        %p3263 = pneg %p3262
      $region46: #{grouping_forward.1} parent=5 // pred_check_branch
        %3265 = sbr.rel (%p3263) target = $region48
      $region47: #{grouping_forward.1} parent=5 // pred_region
        %s3266 = ssub.s32 %s11, 2
        // Predicated region
        $region49: #{grouping_forward.1} parent=47 // pred_check
          %p3267 = pneg %p134
        $region50: #{grouping_forward.1} parent=47 // pred_check_branch
          %3269 = sbr.rel (%p3267) target = $region52
        $region51: #{grouping_forward.1} parent=47 // pred_region
          %p3270 = scmp.lt.s32.totalorder %s17, 1
          %s3271 = scalar_select %p3270, %s17, 1
          %s3272 = smul.addr %s3271, 2
          %s3273 = smul.addr %s3272, 8
          %s3274 = scalar_lea.vmem %s4, %s3273
        $region52: #{grouping_forward.1} parent=47 // pred_fallthru
          _
      $region48: #{grouping_forward.1} parent=5 // pred_fallthru
        _
    $region6: #{grouping_forward.1} parent=1 // loop_footer
      %s15 = sadd.s32 1, %s11
    $region7: #{grouping_forward.1} parent=1 // loop_footer_branch
      %10 = sbr.rel target = $region3
    $region8: #{grouping_forward.1} parent=1 // loop_exit
      _
    %3275 = vsyncpa [#allocation3], 1
    %s3276 = scalar_lea.sflag [#allocation3], 1
    %3277 = vsyncpa %s3276, 1

</llo_original>
